<compile_context>
chip_gen: v6e
topology: v6e:2x2x1
jax: 0.10.0
libtpu: 0.0.40
codegen_flags: <defaults>
</compile_context>

<pallas_src>
import functools
import math

import jax
import jax.numpy as jnp
from jax.experimental import pallas as pl
from jax.experimental.pallas import tpu as pltpu


def _ru(x, m):
    return ((x + m - 1) // m) * m


# ----------------------------- Pallas kernels -----------------------------

def _project_kernel(x_ref, w_ref, o_ref):
    # xW = x @ [W_i || W_j]  -> (tile_n, 2*Cout_pad).  Pure MXU, N tiled "parallel".
    o_ref[...] = jnp.dot(x_ref[...], w_ref[...], preferred_element_type=jnp.float32)


def _conv_scatter_kernel(row_ref, aj_ref, ea_ref, xwi_ref, s_ref, inv_ref, b_ref,
                         out_ref, acc_ref, *, tile_n, tile_e, apply_relu):
    # Tiled scatter_mean over `row` with fused edge_attr scale + bias + relu.
    # Grid: (N tiles "parallel", E tiles "arbitrary"); acc_ref is the resident
    # (tile_n, Cout_pad) accumulator for the current N tile.
    k = pl.program_id(1)

    @pl.when(k == 0)
    def _init():
        acc_ref[...] = jnp.zeros_like(acc_ref)

    # One-hot built in-kernel from the int32 row ids (no dense (N,E) HBM matrix).
    node0 = pl.program_id(0) * tile_n
    node_ids = node0 + jax.lax.broadcasted_iota(jnp.int32, (tile_n, tile_e), 0)
    onehot = (node_ids == row_ref[...]).astype(jnp.float32)          # (tile_n, tile_e)
    contrib = ea_ref[...] * aj_ref[...]                              # (tile_e, Cp)  VPU
    acc_ref[...] += jnp.dot(onehot, contrib,                         # MXU segment-sum
                            preferred_element_type=jnp.float32)

    @pl.when(k == pl.num_programs(1) - 1)
    def _finalize():
        # sum_e ea_e*(xWi[i] + xWj[col_e]) = acc + S_i * xWi[i]; then mean, bias, relu.
        out = (acc_ref[...] + s_ref[...] * xwi_ref[...]) * inv_ref[...] + b_ref[...]
        if apply_relu:                                               # F.relu in SGAT.forward
            out = jnp.maximum(out, 0.0)
        out_ref[...] = out


def _segment_max_kernel(cid_ref, x_ref, cnt_ref, out_ref, acc_ref, *, tile_k):
    # scatter_max(x, cluster): K tiled "parallel", N tiled "arbitrary" (reduction).
    # seg ids come in as an (tile_n, 1) int32 column (no pre-broadcast int plane);
    # maxima accumulate in VMEM scratch and the output is written once at the end.
    j = pl.program_id(1)
    neg = jnp.float32(-3.0e38)

    @pl.when(j == 0)
    def _init():
        acc_ref[...] = jnp.full_like(acc_ref, neg)

    x = x_ref[...]
    cid = cid_ref[...]                                               # (tile_n, 1)
    k0 = pl.program_id(0) * tile_k
    for kk in range(tile_k):                                         # static unroll, tile_k small
        sel = cid == (k0 + kk)
        m = jnp.max(jnp.where(sel, x, neg), axis=0, keepdims=True)
        acc_ref[kk:kk + 1, :] = jnp.maximum(acc_ref[kk:kk + 1, :], m)

    @pl.when(j == pl.num_programs(1) - 1)
    def _finalize():
        # clamp empty (incl. padded) segments to 0 instead of leaking -3e38
        out_ref[...] = jnp.where(cnt_ref[...] > 0, acc_ref[...], 0.0)


def _tail_kernel(cid_ref, cnt_ref, gid_ref, x_ref, w1_ref, b1_ref, w2_ref, fb2_ref,
                 out_ref, x2_ref, *, k1p, bp):
    # Fused tail: max_pool_x (scatter_max over cluster1) + per-graph scatter_mean
    # readout + fc1/relu/fc2 -- one launch for a few KB of data.
    neg = jnp.float32(-3.0e38)
    x = x_ref[...]
    cid = cid_ref[...]                                               # (n1p, 1) int32, pad = -1
    for k in range(k1p):                                             # static unroll, k1p small
        sel = cid == k
        x2_ref[k:k + 1, :] = jnp.max(jnp.where(sel, x, neg), axis=0, keepdims=True)
    x2 = jnp.where(cnt_ref[...] > 0, x2_ref[...], 0.0)               # (k1p, Cp)

    # per-graph mean readout: one-hot built from graph ids in-kernel
    gids = jax.lax.broadcasted_iota(jnp.int32, (bp, k1p), 0)
    gsel = (gids == gid_ref[...]).astype(jnp.float32)                # (bp, k1p)
    gcnt = jnp.sum(gsel, axis=1, keepdims=True)
    mean_w = gsel * jnp.where(gcnt > 0, 1.0 / jnp.maximum(gcnt, 1.0), 0.0)
    xg = jnp.dot(mean_w, x2, preferred_element_type=jnp.float32)     # (bp, Cp)

    h = jnp.dot(xg, w1_ref[...], preferred_element_type=jnp.float32) + b1_ref[...]
    h = jnp.maximum(h, 0.0)
    out_ref[...] = jnp.dot(h, w2_ref[...], preferred_element_type=jnp.float32) + fb2_ref[...]


# --------------------------- wrappers (JAX glue) ---------------------------

def sgat_conv(x, edge_index, edge_attr, weight, bias, edge_mask=None,
              *, tile_n=256, tile_e=512, apply_relu=True):
    """SGraphAttentionLayer: relu( scatter_mean(edge_attr * ([x_i||x_j] W), row) + b )."""
    n, cin = x.shape
    cout = weight.shape[1]
    row = edge_index[0].astype(jnp.int32)
    col = edge_index[1].astype(jnp.int32)
    e = row.shape[0]

    if edge_attr.ndim == 1:
        ea_vec = edge_attr.astype(jnp.float32)
    else:
        # TODO(synk): only scalar per-edge attributes are supported (matches SGAT usage).
        ea_vec = edge_attr[:, 0].astype(jnp.float32)
    mask = jnp.ones((e,), jnp.float32) if edge_mask is None else edge_mask.astype(jnp.float32)
    ea_eff = ea_vec * mask

    # --- padded / tiled sizes (lane-dense 128 features, sublane-mult-8 rows) ---
    cp = _ru(cout, 128)
    cinp = _ru(cin, 128)
    npad = _ru(max(n, 8), 8)
    tn = max(8, min(_ru(tile_n, 8), npad))
    npad = _ru(npad, tn)
    epad = _ru(max(e, 128), 128)
    te = max(128, min(_ru(tile_e, 128), epad))
    epad = _ru(epad, te)
    # VMEM per E step (defaults): ~2*(te*cp*4) + tn*cp*4 + acc  << 32 MiB, fits v7x too.

    # --- projection xW = x @ [W_i || W_j] (two N-sized matmuls fused in one) ---
    xp = jnp.zeros((npad, cinp), jnp.float32).at[:n, :cin].set(x.astype(jnp.float32))
    wcat = jnp.zeros((cinp, 2 * cp), jnp.float32)
    wcat = wcat.at[:cin, :cout].set(weight[:cin].astype(jnp.float32))
    wcat = wcat.at[:cin, cp:cp + cout].set(weight[cin:].astype(jnp.float32))
    xw = pl.pallas_call(
        _project_kernel,
        out_shape=jax.ShapeDtypeStruct((npad, 2 * cp), jnp.float32),
        grid=(npad // tn,),
        in_specs=[pl.BlockSpec((tn, cinp), lambda i: (i, 0)),
                  pl.BlockSpec((cinp, 2 * cp), lambda i: (0, 0))],
        out_specs=pl.BlockSpec((tn, 2 * cp), lambda i: (i, 0)),
        compiler_params=pltpu.CompilerParams(dimension_semantics=("parallel",)),
    )(xp, wcat)
    xwi = xw[:, :cp]
    xwj = xw[:, cp:]

    # --- O(E) per-node bookkeeping (segment ops, no dense matrices) ---
    cnt = jax.ops.segment_sum(mask, row, num_segments=npad)
    inv = jnp.where(cnt > 0, 1.0 / jnp.maximum(cnt, 1.0), 0.0).reshape(npad, 1)
    s = jax.ops.segment_sum(ea_eff, row, num_segments=npad).reshape(npad, 1)

    # --- per-edge operands (padded edges have ea=0 -> contribute nothing) ---
    row_p = jnp.zeros((epad,), jnp.int32).at[:e].set(row)
    col_p = jnp.zeros((epad,), jnp.int32).at[:e].set(col)
    ea_p = jnp.zeros((epad, 1), jnp.float32).at[:e, 0].set(ea_eff)
    aj = xwj[col_p]                 # gather of 128-wide rows, O(E*Cout) minimal traffic
    row2d = row_p.reshape(1, epad)
    b2d = jnp.zeros((1, cp), jnp.float32).at[0, :cout].set(bias.astype(jnp.float32))

    kern = functools.partial(_conv_scatter_kernel, tile_n=tn, tile_e=te, apply_relu=apply_relu)
    out = pl.pallas_call(
        kern,
        out_shape=jax.ShapeDtypeStruct((npad, cp), jnp.float32),
        grid=(npad // tn, epad // te),
        in_specs=[
            pl.BlockSpec((1, te), lambda i, k: (0, k)),     # row ids
            pl.BlockSpec((te, cp), lambda i, k: (k, 0)),    # xWj[col]
            pl.BlockSpec((te, 1), lambda i, k: (k, 0)),     # masked edge_attr
            pl.BlockSpec((tn, cp), lambda i, k: (i, 0)),    # xWi
            pl.BlockSpec((tn, 1), lambda i, k: (i, 0)),     # sum_e ea  per node
            pl.BlockSpec((tn, 1), lambda i, k: (i, 0)),     # 1/deg
            pl.BlockSpec((1, cp), lambda i, k: (0, 0)),     # bias
        ],
        out_specs=pl.BlockSpec((tn, cp), lambda i, k: (i, 0)),
        scratch_shapes=[pltpu.VMEM((tn, cp), jnp.float32)],
        compiler_params=pltpu.CompilerParams(dimension_semantics=("parallel", "arbitrary")),
    )(row2d, aj, ea_p, xwi, s, inv, b2d)
    return out[:n, :cout]


def segment_max_pool(x, seg_ids, num_segments, *, tile_k=8, tile_n=256):
    """scatter_max over seg_ids (K tiled parallel, N tiled reduction), lane-padded."""
    n, c = x.shape
    cp = _ru(c, 128)
    npad = _ru(max(n, 8), 8)
    tn = max(8, min(_ru(tile_n, 8), npad))
    npad = _ru(npad, tn)
    kp = _ru(max(num_segments, 8), 8)
    tk = max(8, min(_ru(tile_k, 8), kp))
    kp = _ru(kp, tk)

    xp = jnp.zeros((npad, cp), jnp.float32).at[:n, :c].set(x.astype(jnp.float32))
    cid = jnp.full((npad, 1), -1, jnp.int32).at[:n, 0].set(seg_ids.astype(jnp.int32))
    cnt = jax.ops.segment_sum(jnp.ones((n,), jnp.float32), seg_ids,
                              num_segments=kp).reshape(kp, 1)

    kern = functools.partial(_segment_max_kernel, tile_k=tk)
    out = pl.pallas_call(
        kern,
        out_shape=jax.ShapeDtypeStruct((kp, cp), jnp.float32),
        grid=(kp // tk, npad // tn),
        in_specs=[pl.BlockSpec((tn, 1), lambda i, j: (j, 0)),
                  pl.BlockSpec((tn, cp), lambda i, j: (j, 0)),
                  pl.BlockSpec((tk, 1), lambda i, j: (i, 0))],
        out_specs=pl.BlockSpec((tk, cp), lambda i, j: (i, 0)),
        scratch_shapes=[pltpu.VMEM((tk, cp), jnp.float32)],
        compiler_params=pltpu.CompilerParams(dimension_semantics=("parallel", "arbitrary")),
    )(cid, xp, cnt)
    return out[:num_segments, :c]


def get_preloaded_cluster(cluster, batch, num_graphs):
    # cumulative per-graph offsets: cluster[batch==b] += max(cluster[batch==b-1]) + 1
    gmax = jax.ops.segment_max(cluster, batch, num_segments=num_graphs)
    offs = jnp.concatenate([jnp.zeros((1,), cluster.dtype), jnp.cumsum(gmax + 1)[:-1]])
    return cluster + offs[batch]


def community_pooling(cluster, x, edge_index, edge_attr, batch, num_clusters):
    # NOTE: synthetic cluster labels are already consecutive 0..num_clusters-1,
    # so torch_geometric's consecutive_cluster relabel is the identity here.
    # TODO(synk): general consecutive_cluster / coalesce produce dynamic output
    # shapes; emulated with static shapes + an edge validity mask instead.
    x_pool = segment_max_pool(x, cluster, num_clusters)                      # scatter_max
    batch_pool = jax.ops.segment_max(batch, cluster, num_segments=num_clusters)

    row, col = edge_index[0], edge_index[1]
    e = row.shape[0]
    src = cluster[row]
    dst = cluster[col]
    valid = src != dst                                                       # remove_self_loops
    nk2 = num_clusters * num_clusters
    key = jnp.where(valid, src * num_clusters + dst, nk2)                    # invalid -> dump seg
    ea = edge_attr if edge_attr.ndim == 2 else edge_attr[:, None]
    ea = ea.astype(jnp.float32) * valid[:, None].astype(jnp.float32)
    # O(E + K^2) coalesce: first-occurrence mask + summed attrs via segment ops
    first = jax.ops.segment_min(jnp.arange(e, dtype=jnp.int32), key, num_segments=nk2 + 1)
    is_first = valid & (first[key] == jnp.arange(e, dtype=jnp.int32))
    ea_sum = jax.ops.segment_sum(ea, key, num_segments=nk2 + 1)
    ea_pool = jnp.where(is_first[:, None], ea_sum[key], 0.0)
    new_edge_index = jnp.stack([src, dst]).astype(jnp.int32)
    return x_pool, new_edge_index, ea_pool, batch_pool.astype(jnp.int32), is_first.astype(jnp.float32)


def sgat_head(x1, cluster1, batch1, num_clusters, num_graphs, w_fc1, b_fc1, w_fc2, b_fc2):
    """Fused tail: max_pool_x + per-graph scatter_mean + fc1/relu/fc2 in one kernel."""
    n1, c1 = x1.shape
    cp = _ru(c1, 128)
    n1p = _ru(max(n1, 8), 8)
    k1p = _ru(max(num_clusters, 8), 8)
    bp = _ru(max(num_graphs, 8), 8)
    hid = w_fc1.shape[1]
    odim = w_fc2.shape[1]
    hp = _ru(hid, 128)
    outp = _ru(odim, 128)

    xp = jnp.zeros((n1p, cp), jnp.float32).at[:n1, :c1].set(x1.astype(jnp.float32))
    cid = jnp.full((n1p, 1), -1, jnp.int32).at[:n1, 0].set(cluster1.astype(jnp.int32))
    cnt = jax.ops.segment_sum(jnp.ones((n1,), jnp.float32), cluster1,
                              num_segments=k1p).reshape(k1p, 1)
    batch2 = jax.ops.segment_max(batch1, cluster1, num_segments=num_clusters)
    gid = jnp.full((1, k1p), -1, jnp.int32).at[0, :num_clusters].set(batch2.astype(jnp.int32))

    w1p = jnp.zeros((cp, hp), jnp.float32).at[:c1, :hid].set(w_fc1.astype(jnp.float32))
    b1p = jnp.zeros((1, hp), jnp.float32).at[0, :hid].set(b_fc1.astype(jnp.float32))
    w2p = jnp.zeros((hp, outp), jnp.float32).at[:hid, :odim].set(w_fc2.astype(jnp.float32))
    b2p = jnp.zeros((1, outp), jnp.float32).at[0, :odim].set(b_fc2.astype(jnp.float32))

    kern = functools.partial(_tail_kernel, k1p=k1p, bp=bp)
    out = pl.pallas_call(
        kern,
        out_shape=jax.ShapeDtypeStruct((bp, outp), jnp.float32),
        grid=(1,),
        in_specs=[pl.BlockSpec((n1p, 1), lambda i: (0, 0)),
                  pl.BlockSpec((k1p, 1), lambda i: (0, 0)),
                  pl.BlockSpec((1, k1p), lambda i: (0, 0)),
                  pl.BlockSpec((n1p, cp), lambda i: (0, 0)),
                  pl.BlockSpec((cp, hp), lambda i: (0, 0)),
                  pl.BlockSpec((1, hp), lambda i: (0, 0)),
                  pl.BlockSpec((hp, outp), lambda i: (0, 0)),
                  pl.BlockSpec((1, outp), lambda i: (0, 0))],
        out_specs=pl.BlockSpec((bp, outp), lambda i: (0, 0)),
        scratch_shapes=[pltpu.VMEM((k1p, cp), jnp.float32)],
    )(cid, cnt, gid, xp, w1p, b1p, w2p, b2p)
    return out[:num_graphs, :odim]


def init_params(key, input_shape, output_shape=1):
    ks = jax.random.split(key, 8)

    def u(k, shape, fan):
        bound = 1.0 / math.sqrt(fan)
        return jax.random.uniform(k, shape, jnp.float32, -bound, bound)

    return {
        "w_conv1": u(ks[0], (2 * input_shape, 16), 2 * input_shape),
        "b_conv1": u(ks[1], (16,), 2 * input_shape),
        "w_conv2": u(ks[2], (2 * 16, 32), 2 * 16),
        "b_conv2": u(ks[3], (32,), 2 * 16),
        "w_fc1": u(ks[4], (32, 64), 32),
        "b_fc1": u(ks[5], (64,), 32),
        "w_fc2": u(ks[6], (64, output_shape), 64),
        "b_fc2": u(ks[7], (output_shape,), 64),
    }


def sgat_forward(params, x, edge_index, edge_attr, cluster0, cluster1, batch,
                 num_graphs, k0_total, k1_total, *, tile_n=256, tile_e=512):
    # conv1 + relu
    h = sgat_conv(x, edge_index, edge_attr, params["w_conv1"], params["b_conv1"],
                  tile_n=tile_n, tile_e=tile_e)
    # community pooling on preloaded cluster0
    c0 = get_preloaded_cluster(cluster0, batch, num_graphs)
    x1, ei1, ea1, batch1, emask1 = community_pooling(c0, h, edge_index, edge_attr, batch, k0_total)
    # conv2 + relu on the pooled graph (mask hides coalesced / self-loop edge slots)
    h1 = sgat_conv(x1, ei1, ea1, params["w_conv2"], params["b_conv2"], edge_mask=emask1,
                   tile_n=tile_n, tile_e=tile_e)
    # fused tail: max_pool_x(cluster1) + per-graph mean + fc1/relu/fc2
    c1 = get_preloaded_cluster(cluster1, batch1, num_graphs)
    return sgat_head(h1, c1, batch1, k1_total, num_graphs,
                     params["w_fc1"], params["b_fc1"], params["w_fc2"], params["b_fc2"])


if __name__ == "__main__":
    key = jax.random.PRNGKey(0)
    F_IN, OUT = 4, 1      # SGAT(input_shape=4, output_shape=1)
    B = 2                 # graphs in the batch
    NP = 12               # nodes per graph
    EP = 72               # edges per graph (enough to give 2 E-reduction tiles below)
    K0P = 4               # cluster0 clusters per graph
    K1P = 2               # cluster1 clusters per (pooled) graph
    N, E = B * NP, B * EP
    K0, K1 = B * K0P, B * K1P

    kx, kr, kc, ka, kc0, kc1, kp = jax.random.split(key, 7)
    x = jax.random.normal(kx, (N, F_IN), jnp.float32)
    batch = jnp.repeat(jnp.arange(B, dtype=jnp.int32), NP)

    rows, cols = [], []
    for g in range(B):
        r = jax.random.randint(jax.random.fold_in(kr, g), (EP,), 0, NP)
        c = jax.random.randint(jax.random.fold_in(kc, g), (EP,), 0, NP)
        c = jnp.where(c == r, (c + 1) % NP, c)          # no self loops in the raw graph
        rows.append(r + g * NP)
        cols.append(c + g * NP)
    edge_index = jnp.stack([jnp.concatenate(rows), jnp.concatenate(cols)]).astype(jnp.int32)
    edge_attr = jax.random.uniform(ka, (E,), jnp.float32)            # 1-D edge attribute

    # cluster0: per-graph labels in [0, K0P), every label present
    c0_parts = []
    for g in range(B):
        extra = jax.random.randint(jax.random.fold_in(kc0, g), (NP - K0P,), 0, K0P)
        c0_parts.append(jnp.concatenate([jnp.arange(K0P, dtype=jnp.int32), extra.astype(jnp.int32)]))
    cluster0 = jnp.concatenate(c0_parts)

    # cluster1: defined on the K0P pooled nodes of each graph, labels in [0, K1P)
    c1_parts = []
    for g in range(B):
        extra = jax.random.randint(jax.random.fold_in(kc1, g), (K0P - K1P,), 0, K1P)
        c1_parts.append(jnp.concatenate([jnp.arange(K1P, dtype=jnp.int32), extra.astype(jnp.int32)]))
    cluster1 = jnp.concatenate(c1_parts)

    params = init_params(kp, F_IN, OUT)

    # small tiles here so the toy shapes actually exercise the multi-step
    # parallel/arbitrary grid + accumulator logic; production defaults are 256/512.
    fwd = jax.jit(functools.partial(sgat_forward, num_graphs=B, k0_total=K0, k1_total=K1,
                                    tile_n=8, tile_e=128))
    out = fwd(params, x, edge_index, edge_attr, cluster0, cluster1, batch)
    jax.block_until_ready(out)
    assert out.shape == (B, OUT)
    print("KERNEL_OK")
</pallas_src>

<mosaic_0001>
module attributes {stable_mosaic.version = 11 : i64} {
  func.func private @main(%arg0: i32) attributes {dimension_semantics = [#tpu.dimension_semantics<core_parallel>], iteration_bounds = array<i64: 2>, tpu.core_type = #tpu.core_type<sc_scalar_subcore>, window_params = []} {
    return
  }
}

module attributes {stable_mosaic.version = 11 : i64} {
  func.func private @main(%arg0: i32) attributes {dimension_semantics = [#tpu.dimension_semantics<core_parallel>], iteration_bounds = array<i64: 2>, tpu.core_type = #tpu.core_type<sc_scalar_subcore>, window_params = []} {
    return
  }
}

module attributes {stable_mosaic.version = 11 : i64} {
  func.func @_project_kernel(%arg0: i32, %arg1: memref<8x128xf32, #tpu.memory_space<vmem>>, %arg2: memref<128x256xf32, #tpu.memory_space<vmem>>, %arg3: memref<8x256xf32, #tpu.memory_space<vmem>>) attributes {dimension_semantics = [#tpu.dimension_semantics<parallel>], iteration_bounds = array<i64: 3>, scalar_prefetch = 0 : i64, scratch_operands = 0 : i64, tpu.core_type = #tpu.core_type<tc>, window_params = [{transform_indices = @transform_0, window_bounds = array<i64: 8, 128>}, {pipeline_mode = #tpu.pipeline_mode<synchronous>, transform_indices = @transform_1, window_bounds = array<i64: 128, 256>}, {transform_indices = @transform_2, window_bounds = array<i64: 8, 256>}]} {
    %c0 = arith.constant 0 : index
    %c0_0 = arith.constant 0 : index
    %0 = vector.load %arg1[%c0, %c0_0] : memref<8x128xf32, #tpu.memory_space<vmem>>, vector<8x128xf32>
    %c0_1 = arith.constant 0 : index
    %c0_2 = arith.constant 0 : index
    %1 = vector.load %arg2[%c0_1, %c0_2] : memref<128x256xf32, #tpu.memory_space<vmem>>, vector<128x256xf32>
    %cst = arith.constant dense<0.000000e+00> : vector<8x256xf32>
    %2 = tpu.matmul %0, %1, %cst {dimension_numbers = #tpu.dot_dimension_numbers<[1], [0], [0], [1], [0, 0, 1, 1], [], []>} : vector<8x128xf32>, vector<128x256xf32>, vector<8x256xf32> -> vector<8x256xf32>
    %c0_3 = arith.constant 0 : index
    %c0_4 = arith.constant 0 : index
    %3 = vector.load %arg3[%c0_3, %c0_4] : memref<8x256xf32, #tpu.memory_space<vmem>>, vector<8x256xf32>
    tpu.vector_store %arg3[%c0_3, %c0_4], %2 {strides = array<i32>} : memref<8x256xf32, #tpu.memory_space<vmem>>, vector<8x256xf32>,
    return
  }
  func.func @transform_0(%arg0: i32) -> (i32, i32) {
    %c0_i32 = arith.constant 0 : i32
    %c0_i32_0 = arith.constant 0 : i32
    return %arg0, %c0_i32 : i32, i32
  }
  func.func @transform_1(%arg0: i32) -> (i32, i32) {
    %c0_i32 = arith.constant 0 : i32
    %c0_i32_0 = arith.constant 0 : i32
    %c0_i32_1 = arith.constant 0 : i32
    return %c0_i32, %c0_i32_0 : i32, i32
  }
  func.func @transform_2(%arg0: i32) -> (i32, i32) {
    %c0_i32 = arith.constant 0 : i32
    %c0_i32_0 = arith.constant 0 : i32
    return %arg0, %c0_i32 : i32, i32
  }
}

module attributes {stable_mosaic.version = 11 : i64} {
  func.func @_conv_scatter_kernel(%arg0: i32, %arg1: i32, %arg2: memref<1x128xi32, #tpu.memory_space<vmem>>, %arg3: memref<128x128xf32, #tpu.memory_space<vmem>>, %arg4: memref<128x1xf32, #tpu.memory_space<vmem>>, %arg5: memref<8x128xf32, #tpu.memory_space<vmem>>, %arg6: memref<8x1xf32, #tpu.memory_space<vmem>>, %arg7: memref<8x1xf32, #tpu.memory_space<vmem>>, %arg8: memref<1x128xf32, #tpu.memory_space<vmem>>, %arg9: memref<8x128xf32, #tpu.memory_space<vmem>>, %arg10: memref<8x128xf32, #tpu.memory_space<vmem>>) attributes {dimension_semantics = [#tpu.dimension_semantics<parallel>, #tpu.dimension_semantics<arbitrary>], iteration_bounds = array<i64: 3, 2>, scalar_prefetch = 0 : i64, scratch_operands = 1 : i64, tpu.core_type = #tpu.core_type<tc>, window_params = [{transform_indices = @transform_0, window_bounds = array<i64: 1, 128>}, {transform_indices = @transform_1, window_bounds = array<i64: 128, 128>}, {transform_indices = @transform_2, window_bounds = array<i64: 128, 1>}, {transform_indices = @transform_3, window_bounds = array<i64: 8, 128>}, {transform_indices = @transform_4, window_bounds = array<i64: 8, 1>}, {transform_indices = @transform_5, window_bounds = array<i64: 8, 1>}, {pipeline_mode = #tpu.pipeline_mode<synchronous>, transform_indices = @transform_6, window_bounds = array<i64: 1, 128>}, {transform_indices = @transform_7, window_bounds = array<i64: 8, 128>}]} {
    %c0_i32 = arith.constant 0 : i32
    %0 = arith.cmpi eq, %arg1, %c0_i32 : i32
    %1 = arith.extui %0 : i1 to i32
    %c0_i32_0 = arith.constant 0 : i32
    %2 = arith.cmpi ne, %1, %c0_i32_0 : i32
    scf.if %2 {
      %cst_11 = arith.constant 0.000000e+00 : f32
      %23 = vector.broadcast %cst_11 : f32 to vector<8x128xf32>
      %c0_12 = arith.constant 0 : index
      %c0_13 = arith.constant 0 : index
      %24 = vector.load %arg10[%c0_12, %c0_13] : memref<8x128xf32, #tpu.memory_space<vmem>>, vector<8x128xf32>
      tpu.vector_store %arg10[%c0_12, %c0_13], %23 {strides = array<i32>} : memref<8x128xf32, #tpu.memory_space<vmem>>, vector<8x128xf32>,
    } else {
    }
    %c8_i32 = arith.constant 8 : i32
    %3 = arith.muli %arg0, %c8_i32 : i32
    %4 = tpu.iota {dimensions = array<i32: 0>} : vector<8x128xi32>
    %5 = vector.broadcast %3 : i32 to vector<8x128xi32>
    %6 = arith.addi %5, %4 : vector<8x128xi32>
    %c0 = arith.constant 0 : index
    %c0_1 = arith.constant 0 : index
    %7 = vector.load %arg2[%c0, %c0_1] : memref<1x128xi32, #tpu.memory_space<vmem>>, vector<1x128xi32>
    %8 = vector.broadcast %7 : vector<1x128xi32> to vector<8x128xi32>
    %9 = arith.cmpi eq, %6, %8 : vector<8x128xi32>
    %10 = arith.extui %9 : vector<8x128xi1> to vector<8x128xi32>
    %11 = arith.sitofp %10 : vector<8x128xi32> to vector<8x128xf32>
    %c0_2 = arith.constant 0 : index
    %c0_3 = arith.constant 0 : index
    %12 = vector.load %arg4[%c0_2, %c0_3] : memref<128x1xf32, #tpu.memory_space<vmem>>, vector<128x1xf32>
    %c0_4 = arith.constant 0 : index
    %c0_5 = arith.constant 0 : index
    %13 = vector.load %arg3[%c0_4, %c0_5] : memref<128x128xf32, #tpu.memory_space<vmem>>, vector<128x128xf32>
    %14 = vector.broadcast %12 : vector<128x1xf32> to vector<128x128xf32>
    %15 = arith.mulf %14, %13 : vector<128x128xf32>
    %c0_6 = arith.constant 0 : index
    %c0_7 = arith.constant 0 : index
    %16 = vector.load %arg10[%c0_6, %c0_7] : memref<8x128xf32, #tpu.memory_space<vmem>>, vector<8x128xf32>
    %cst = arith.constant dense<0.000000e+00> : vector<8x128xf32>
    %17 = tpu.matmul %11, %15, %cst {dimension_numbers = #tpu.dot_dimension_numbers<[1], [0], [0], [1], [0, 0, 1, 1], [], []>} : vector<8x128xf32>, vector<128x128xf32>, vector<8x128xf32> -> vector<8x128xf32>
    %18 = arith.addf %16, %17 : vector<8x128xf32>
    %c0_8 = arith.constant 0 : index
    %c0_9 = arith.constant 0 : index
    %19 = vector.load %arg10[%c0_8, %c0_9] : memref<8x128xf32, #tpu.memory_space<vmem>>, vector<8x128xf32>
    tpu.vector_store %arg10[%c0_8, %c0_9], %18 {strides = array<i32>} : memref<8x128xf32, #tpu.memory_space<vmem>>, vector<8x128xf32>,
    %c1_i32 = arith.constant 1 : i32
    %20 = arith.cmpi eq, %arg1, %c1_i32 : i32
    %21 = arith.extui %20 : i1 to i32
    %c0_i32_10 = arith.constant 0 : i32
    %22 = arith.cmpi ne, %21, %c0_i32_10 : i32
    scf.if %22 {
      %c0_11 = arith.constant 0 : index
      %c0_12 = arith.constant 0 : index
      %23 = vector.load %arg10[%c0_11, %c0_12] : memref<8x128xf32, #tpu.memory_space<vmem>>, vector<8x128xf32>
      %c0_13 = arith.constant 0 : index
      %c0_14 = arith.constant 0 : index
      %24 = vector.load %arg6[%c0_13, %c0_14] : memref<8x1xf32, #tpu.memory_space<vmem>>, vector<8x1xf32>
      %c0_15 = arith.constant 0 : index
      %c0_16 = arith.constant 0 : index
      %25 = vector.load %arg5[%c0_15, %c0_16] : memref<8x128xf32, #tpu.memory_space<vmem>>, vector<8x128xf32>
      %26 = vector.broadcast %24 : vector<8x1xf32> to vector<8x128xf32>
      %27 = arith.mulf %26, %25 : vector<8x128xf32>
      %28 = arith.addf %23, %27 : vector<8x128xf32>
      %c0_17 = arith.constant 0 : index
      %c0_18 = arith.constant 0 : index
      %29 = vector.load %arg7[%c0_17, %c0_18] : memref<8x1xf32, #tpu.memory_space<vmem>>, vector<8x1xf32>
      %30 = vector.broadcast %29 : vector<8x1xf32> to vector<8x128xf32>
      %31 = arith.mulf %28, %30 : vector<8x128xf32>
      %c0_19 = arith.constant 0 : index
      %c0_20 = arith.constant 0 : index
      %32 = vector.load %arg8[%c0_19, %c0_20] : memref<1x128xf32, #tpu.memory_space<vmem>>, vector<1x128xf32>
      %33 = vector.broadcast %32 : vector<1x128xf32> to vector<8x128xf32>
      %34 = arith.addf %31, %33 : vector<8x128xf32>
      %cst_21 = arith.constant 0.000000e+00 : f32
      %35 = vector.broadcast %cst_21 : f32 to vector<8x128xf32>
      %36 = arith.maximumf %34, %35 : vector<8x128xf32>
      %c0_22 = arith.constant 0 : index
      %c0_23 = arith.constant 0 : index
      %37 = vector.load %arg9[%c0_22, %c0_23] : memref<8x128xf32, #tpu.memory_space<vmem>>, vector<8x128xf32>
      tpu.vector_store %arg9[%c0_22, %c0_23], %36 {strides = array<i32>} : memref<8x128xf32, #tpu.memory_space<vmem>>, vector<8x128xf32>,
    } else {
    }
    return
  }
  func.func @transform_0(%arg0: i32, %arg1: i32) -> (i32, i32) {
    %c0_i32 = arith.constant 0 : i32
    %c0_i32_0 = arith.constant 0 : i32
    return %c0_i32, %arg1 : i32, i32
  }
  func.func @transform_1(%arg0: i32, %arg1: i32) -> (i32, i32) {
    %c0_i32 = arith.constant 0 : i32
    %c0_i32_0 = arith.constant 0 : i32
    return %arg1, %c0_i32 : i32, i32
  }
  func.func @transform_2(%arg0: i32, %arg1: i32) -> (i32, i32) {
    %c0_i32 = arith.constant 0 : i32
    %c0_i32_0 = arith.constant 0 : i32
    return %arg1, %c0_i32 : i32, i32
  }
  func.func @transform_3(%arg0: i32, %arg1: i32) -> (i32, i32) {
    %c0_i32 = arith.constant 0 : i32
    %c0_i32_0 = arith.constant 0 : i32
    return %arg0, %c0_i32 : i32, i32
  }
  func.func @transform_4(%arg0: i32, %arg1: i32) -> (i32, i32) {
    %c0_i32 = arith.constant 0 : i32
    %c0_i32_0 = arith.constant 0 : i32
    return %arg0, %c0_i32 : i32, i32
  }
  func.func @transform_5(%arg0: i32, %arg1: i32) -> (i32, i32) {
    %c0_i32 = arith.constant 0 : i32
    %c0_i32_0 = arith.constant 0 : i32
    return %arg0, %c0_i32 : i32, i32
  }
  func.func @transform_6(%arg0: i32, %arg1: i32) -> (i32, i32) {
    %c0_i32 = arith.constant 0 : i32
    %c0_i32_0 = arith.constant 0 : i32
    %c0_i32_1 = arith.constant 0 : i32
    return %c0_i32, %c0_i32_0 : i32, i32
  }
  func.func @transform_7(%arg0: i32, %arg1: i32) -> (i32, i32) {
    %c0_i32 = arith.constant 0 : i32
    %c0_i32_0 = arith.constant 0 : i32
    return %arg0, %c0_i32 : i32, i32
  }
}

module attributes {stable_mosaic.version = 11 : i64} {
  func.func @_segment_max_kernel(%arg0: i32, %arg1: i32, %arg2: memref<24x1xi32, #tpu.memory_space<vmem>>, %arg3: memref<24x128xf32, #tpu.memory_space<vmem>>, %arg4: memref<8x1xf32, #tpu.memory_space<vmem>>, %arg5: memref<8x128xf32, #tpu.memory_space<vmem>>, %arg6: memref<8x128xf32, #tpu.memory_space<vmem>>) attributes {dimension_semantics = [#tpu.dimension_semantics<parallel>, #tpu.dimension_semantics<arbitrary>], iteration_bounds = array<i64: 1, 1>, scalar_prefetch = 0 : i64, scratch_operands = 1 : i64, tpu.core_type = #tpu.core_type<tc>, window_params = [{transform_indices = @transform_0, window_bounds = array<i64: 24, 1>}, {transform_indices = @transform_1, window_bounds = array<i64: 24, 128>}, {transform_indices = @transform_2, window_bounds = array<i64: 8, 1>}, {transform_indices = @transform_3, window_bounds = array<i64: 8, 128>}]} {
    %c0_i32 = arith.constant 0 : i32
    %0 = arith.cmpi eq, %arg1, %c0_i32 : i32
    %1 = arith.extui %0 : i1 to i32
    %cst = arith.constant -3.000000e+38 : f32
    %c0_i32_0 = arith.constant 0 : i32
    %2 = arith.cmpi ne, %1, %c0_i32_0 : i32
    scf.if %2 {
      %105 = vector.broadcast %cst : f32 to vector<8x128xf32>
      %c0_48 = arith.constant 0 : index
      %c0_49 = arith.constant 0 : index
      %106 = vector.load %arg6[%c0_48, %c0_49] : memref<8x128xf32, #tpu.memory_space<vmem>>, vector<8x128xf32>
      tpu.vector_store %arg6[%c0_48, %c0_49], %105 {strides = array<i32>} : memref<8x128xf32, #tpu.memory_space<vmem>>, vector<8x128xf32>,
    } else {
    }
    %c0 = arith.constant 0 : index
    %c0_1 = arith.constant 0 : index
    %3 = vector.load %arg3[%c0, %c0_1] : memref<24x128xf32, #tpu.memory_space<vmem>>, vector<24x128xf32>
    %c0_2 = arith.constant 0 : index
    %c0_3 = arith.constant 0 : index
    %4 = vector.load %arg2[%c0_2, %c0_3] : memref<24x1xi32, #tpu.memory_space<vmem>>, vector<24x1xi32>
    %c8_i32 = arith.constant 8 : i32
    %5 = arith.muli %arg0, %c8_i32 : i32
    %c0_i32_4 = arith.constant 0 : i32
    %6 = arith.addi %5, %c0_i32_4 : i32
    %7 = vector.broadcast %6 : i32 to vector<24x1xi32>
    %8 = arith.cmpi eq, %4, %7 : vector<24x1xi32>
    %cst_5 = arith.constant -3.000000e+38 : f32
    %9 = vector.shape_cast %8 : vector<24x1xi1> to vector<24x1xi1>
    %10 = vector.broadcast %9 : vector<24x1xi1> to vector<24x128xi1>
    %11 = vector.broadcast %cst_5 : f32 to vector<24x128xf32>
    %12 = arith.select %10, %3, %11 : vector<24x128xi1>, vector<24x128xf32>
    %cst_6 = arith.constant dense<0xFF800000> : vector<128xf32>
    %13 = vector.multi_reduction <maximumf>, %12, %cst_6 [0] : vector<24x128xf32> to vector<128xf32>
    %14 = vector.shape_cast %13 : vector<128xf32> to vector<1x128xf32>
    %c0_7 = arith.constant 0 : index
    %c0_8 = arith.constant 0 : index
    %15 = vector.load %arg6[%c0_7, %c0_8] : memref<8x128xf32, #tpu.memory_space<vmem>>, vector<1x128xf32>
    %16 = arith.maximumf %15, %14 : vector<1x128xf32>
    %c0_9 = arith.constant 0 : index
    %c0_10 = arith.constant 0 : index
    %17 = vector.load %arg6[%c0_9, %c0_10] : memref<8x128xf32, #tpu.memory_space<vmem>>, vector<1x128xf32>
    tpu.vector_store %arg6[%c0_9, %c0_10], %16 {strides = array<i32>} : memref<8x128xf32, #tpu.memory_space<vmem>>, vector<1x128xf32>,
    %c1_i32 = arith.constant 1 : i32
    %18 = arith.addi %5, %c1_i32 : i32
    %19 = vector.broadcast %18 : i32 to vector<24x1xi32>
    %20 = arith.cmpi eq, %4, %19 : vector<24x1xi32>
    %cst_11 = arith.constant -3.000000e+38 : f32
    %21 = vector.shape_cast %20 : vector<24x1xi1> to vector<24x1xi1>
    %22 = vector.broadcast %21 : vector<24x1xi1> to vector<24x128xi1>
    %23 = vector.broadcast %cst_11 : f32 to vector<24x128xf32>
    %24 = arith.select %22, %3, %23 : vector<24x128xi1>, vector<24x128xf32>
    %cst_12 = arith.constant dense<0xFF800000> : vector<128xf32>
    %25 = vector.multi_reduction <maximumf>, %24, %cst_12 [0] : vector<24x128xf32> to vector<128xf32>
    %26 = vector.shape_cast %25 : vector<128xf32> to vector<1x128xf32>
    %c1 = arith.constant 1 : index
    %c0_13 = arith.constant 0 : index
    %27 = vector.load %arg6[%c1, %c0_13] : memref<8x128xf32, #tpu.memory_space<vmem>>, vector<1x128xf32>
    %28 = arith.maximumf %27, %26 : vector<1x128xf32>
    %c1_14 = arith.constant 1 : index
    %c0_15 = arith.constant 0 : index
    %29 = vector.load %arg6[%c1_14, %c0_15] : memref<8x128xf32, #tpu.memory_space<vmem>>, vector<1x128xf32>
    tpu.vector_store %arg6[%c1_14, %c0_15], %28 {strides = array<i32>} : memref<8x128xf32, #tpu.memory_space<vmem>>, vector<1x128xf32>,
    %c2_i32 = arith.constant 2 : i32
    %30 = arith.addi %5, %c2_i32 : i32
    %31 = vector.broadcast %30 : i32 to vector<24x1xi32>
    %32 = arith.cmpi eq, %4, %31 : vector<24x1xi32>
    %cst_16 = arith.constant -3.000000e+38 : f32
    %33 = vector.shape_cast %32 : vector<24x1xi1> to vector<24x1xi1>
    %34 = vector.broadcast %33 : vector<24x1xi1> to vector<24x128xi1>
    %35 = vector.broadcast %cst_16 : f32 to vector<24x128xf32>
    %36 = arith.select %34, %3, %35 : vector<24x128xi1>, vector<24x128xf32>
    %cst_17 = arith.constant dense<0xFF800000> : vector<128xf32>
    %37 = vector.multi_reduction <maximumf>, %36, %cst_17 [0] : vector<24x128xf32> to vector<128xf32>
    %38 = vector.shape_cast %37 : vector<128xf32> to vector<1x128xf32>
    %c2 = arith.constant 2 : index
    %c0_18 = arith.constant 0 : index
    %39 = vector.load %arg6[%c2, %c0_18] : memref<8x128xf32, #tpu.memory_space<vmem>>, vector<1x128xf32>
    %40 = arith.maximumf %39, %38 : vector<1x128xf32>
    %c2_19 = arith.constant 2 : index
    %c0_20 = arith.constant 0 : index
    %41 = vector.load %arg6[%c2_19, %c0_20] : memref<8x128xf32, #tpu.memory_space<vmem>>, vector<1x128xf32>
    tpu.vector_store %arg6[%c2_19, %c0_20], %40 {strides = array<i32>} : memref<8x128xf32, #tpu.memory_space<vmem>>, vector<1x128xf32>,
    %c3_i32 = arith.constant 3 : i32
    %42 = arith.addi %5, %c3_i32 : i32
    %43 = vector.broadcast %42 : i32 to vector<24x1xi32>
    %44 = arith.cmpi eq, %4, %43 : vector<24x1xi32>
    %cst_21 = arith.constant -3.000000e+38 : f32
    %45 = vector.shape_cast %44 : vector<24x1xi1> to vector<24x1xi1>
    %46 = vector.broadcast %45 : vector<24x1xi1> to vector<24x128xi1>
    %47 = vector.broadcast %cst_21 : f32 to vector<24x128xf32>
    %48 = arith.select %46, %3, %47 : vector<24x128xi1>, vector<24x128xf32>
    %cst_22 = arith.constant dense<0xFF800000> : vector<128xf32>
    %49 = vector.multi_reduction <maximumf>, %48, %cst_22 [0] : vector<24x128xf32> to vector<128xf32>
    %50 = vector.shape_cast %49 : vector<128xf32> to vector<1x128xf32>
    %c3 = arith.constant 3 : index
    %c0_23 = arith.constant 0 : index
    %51 = vector.load %arg6[%c3, %c0_23] : memref<8x128xf32, #tpu.memory_space<vmem>>, vector<1x128xf32>
    %52 = arith.maximumf %51, %50 : vector<1x128xf32>
    %c3_24 = arith.constant 3 : index
    %c0_25 = arith.constant 0 : index
    %53 = vector.load %arg6[%c3_24, %c0_25] : memref<8x128xf32, #tpu.memory_space<vmem>>, vector<1x128xf32>
    tpu.vector_store %arg6[%c3_24, %c0_25], %52 {strides = array<i32>} : memref<8x128xf32, #tpu.memory_space<vmem>>, vector<1x128xf32>,
    %c4_i32 = arith.constant 4 : i32
    %54 = arith.addi %5, %c4_i32 : i32
    %55 = vector.broadcast %54 : i32 to vector<24x1xi32>
    %56 = arith.cmpi eq, %4, %55 : vector<24x1xi32>
    %cst_26 = arith.constant -3.000000e+38 : f32
    %57 = vector.shape_cast %56 : vector<24x1xi1> to vector<24x1xi1>
    %58 = vector.broadcast %57 : vector<24x1xi1> to vector<24x128xi1>
    %59 = vector.broadcast %cst_26 : f32 to vector<24x128xf32>
    %60 = arith.select %58, %3, %59 : vector<24x128xi1>, vector<24x128xf32>
    %cst_27 = arith.constant dense<0xFF800000> : vector<128xf32>
    %61 = vector.multi_reduction <maximumf>, %60, %cst_27 [0] : vector<24x128xf32> to vector<128xf32>
    %62 = vector.shape_cast %61 : vector<128xf32> to vector<1x128xf32>
    %c4 = arith.constant 4 : index
    %c0_28 = arith.constant 0 : index
    %63 = vector.load %arg6[%c4, %c0_28] : memref<8x128xf32, #tpu.memory_space<vmem>>, vector<1x128xf32>
    %64 = arith.maximumf %63, %62 : vector<1x128xf32>
    %c4_29 = arith.constant 4 : index
    %c0_30 = arith.constant 0 : index
    %65 = vector.load %arg6[%c4_29, %c0_30] : memref<8x128xf32, #tpu.memory_space<vmem>>, vector<1x128xf32>
    tpu.vector_store %arg6[%c4_29, %c0_30], %64 {strides = array<i32>} : memref<8x128xf32, #tpu.memory_space<vmem>>, vector<1x128xf32>,
    %c5_i32 = arith.constant 5 : i32
    %66 = arith.addi %5, %c5_i32 : i32
    %67 = vector.broadcast %66 : i32 to vector<24x1xi32>
    %68 = arith.cmpi eq, %4, %67 : vector<24x1xi32>
    %cst_31 = arith.constant -3.000000e+38 : f32
    %69 = vector.shape_cast %68 : vector<24x1xi1> to vector<24x1xi1>
    %70 = vector.broadcast %69 : vector<24x1xi1> to vector<24x128xi1>
    %71 = vector.broadcast %cst_31 : f32 to vector<24x128xf32>
    %72 = arith.select %70, %3, %71 : vector<24x128xi1>, vector<24x128xf32>
    %cst_32 = arith.constant dense<0xFF800000> : vector<128xf32>
    %73 = vector.multi_reduction <maximumf>, %72, %cst_32 [0] : vector<24x128xf32> to vector<128xf32>
    %74 = vector.shape_cast %73 : vector<128xf32> to vector<1x128xf32>
    %c5 = arith.constant 5 : index
    %c0_33 = arith.constant 0 : index
    %75 = vector.load %arg6[%c5, %c0_33] : memref<8x128xf32, #tpu.memory_space<vmem>>, vector<1x128xf32>
    %76 = arith.maximumf %75, %74 : vector<1x128xf32>
    %c5_34 = arith.constant 5 : index
    %c0_35 = arith.constant 0 : index
    %77 = vector.load %arg6[%c5_34, %c0_35] : memref<8x128xf32, #tpu.memory_space<vmem>>, vector<1x128xf32>
    tpu.vector_store %arg6[%c5_34, %c0_35], %76 {strides = array<i32>} : memref<8x128xf32, #tpu.memory_space<vmem>>, vector<1x128xf32>,
    %c6_i32 = arith.constant 6 : i32
    %78 = arith.addi %5, %c6_i32 : i32
    %79 = vector.broadcast %78 : i32 to vector<24x1xi32>
    %80 = arith.cmpi eq, %4, %79 : vector<24x1xi32>
    %cst_36 = arith.constant -3.000000e+38 : f32
    %81 = vector.shape_cast %80 : vector<24x1xi1> to vector<24x1xi1>
    %82 = vector.broadcast %81 : vector<24x1xi1> to vector<24x128xi1>
    %83 = vector.broadcast %cst_36 : f32 to vector<24x128xf32>
    %84 = arith.select %82, %3, %83 : vector<24x128xi1>, vector<24x128xf32>
    %cst_37 = arith.constant dense<0xFF800000> : vector<128xf32>
    %85 = vector.multi_reduction <maximumf>, %84, %cst_37 [0] : vector<24x128xf32> to vector<128xf32>
    %86 = vector.shape_cast %85 : vector<128xf32> to vector<1x128xf32>
    %c6 = arith.constant 6 : index
    %c0_38 = arith.constant 0 : index
    %87 = vector.load %arg6[%c6, %c0_38] : memref<8x128xf32, #tpu.memory_space<vmem>>, vector<1x128xf32>
    %88 = arith.maximumf %87, %86 : vector<1x128xf32>
    %c6_39 = arith.constant 6 : index
    %c0_40 = arith.constant 0 : index
    %89 = vector.load %arg6[%c6_39, %c0_40] : memref<8x128xf32, #tpu.memory_space<vmem>>, vector<1x128xf32>
    tpu.vector_store %arg6[%c6_39, %c0_40], %88 {strides = array<i32>} : memref<8x128xf32, #tpu.memory_space<vmem>>, vector<1x128xf32>,
    %c7_i32 = arith.constant 7 : i32
    %90 = arith.addi %5, %c7_i32 : i32
    %91 = vector.broadcast %90 : i32 to vector<24x1xi32>
    %92 = arith.cmpi eq, %4, %91 : vector<24x1xi32>
    %cst_41 = arith.constant -3.000000e+38 : f32
    %93 = vector.shape_cast %92 : vector<24x1xi1> to vector<24x1xi1>
    %94 = vector.broadcast %93 : vector<24x1xi1> to vector<24x128xi1>
    %95 = vector.broadcast %cst_41 : f32 to vector<24x128xf32>
    %96 = arith.select %94, %3, %95 : vector<24x128xi1>, vector<24x128xf32>
    %cst_42 = arith.constant dense<0xFF800000> : vector<128xf32>
    %97 = vector.multi_reduction <maximumf>, %96, %cst_42 [0] : vector<24x128xf32> to vector<128xf32>
    %98 = vector.shape_cast %97 : vector<128xf32> to vector<1x128xf32>
    %c7 = arith.constant 7 : index
    %c0_43 = arith.constant 0 : index
    %99 = vector.load %arg6[%c7, %c0_43] : memref<8x128xf32, #tpu.memory_space<vmem>>, vector<1x128xf32>
    %100 = arith.maximumf %99, %98 : vector<1x128xf32>
    %c7_44 = arith.constant 7 : index
    %c0_45 = arith.constant 0 : index
    %101 = vector.load %arg6[%c7_44, %c0_45] : memref<8x128xf32, #tpu.memory_space<vmem>>, vector<1x128xf32>
    tpu.vector_store %arg6[%c7_44, %c0_45], %100 {strides = array<i32>} : memref<8x128xf32, #tpu.memory_space<vmem>>, vector<1x128xf32>,
    %c0_i32_46 = arith.constant 0 : i32
    %102 = arith.cmpi eq, %arg1, %c0_i32_46 : i32
    %103 = arith.extui %102 : i1 to i32
    %c0_i32_47 = arith.constant 0 : i32
    %104 = arith.cmpi ne, %103, %c0_i32_47 : i32
    scf.if %104 {
      %c0_48 = arith.constant 0 : index
      %c0_49 = arith.constant 0 : index
      %105 = vector.load %arg4[%c0_48, %c0_49] : memref<8x1xf32, #tpu.memory_space<vmem>>, vector<8x1xf32>
      %cst_50 = arith.constant 0.000000e+00 : f32
      %106 = vector.broadcast %cst_50 : f32 to vector<8x1xf32>
      %107 = arith.cmpf ogt, %105, %106 : vector<8x1xf32>
      %c0_51 = arith.constant 0 : index
      %c0_52 = arith.constant 0 : index
      %108 = vector.load %arg6[%c0_51, %c0_52] : memref<8x128xf32, #tpu.memory_space<vmem>>, vector<8x128xf32>
      %cst_53 = arith.constant 0.000000e+00 : f32
      %109 = vector.shape_cast %107 : vector<8x1xi1> to vector<8x1xi1>
      %110 = vector.broadcast %109 : vector<8x1xi1> to vector<8x128xi1>
      %111 = vector.broadcast %cst_53 : f32 to vector<8x128xf32>
      %112 = arith.select %110, %108, %111 : vector<8x128xi1>, vector<8x128xf32>
      %c0_54 = arith.constant 0 : index
      %c0_55 = arith.constant 0 : index
      %113 = vector.load %arg5[%c0_54, %c0_55] : memref<8x128xf32, #tpu.memory_space<vmem>>, vector<8x128xf32>
      tpu.vector_store %arg5[%c0_54, %c0_55], %112 {strides = array<i32>} : memref<8x128xf32, #tpu.memory_space<vmem>>, vector<8x128xf32>,
    } else {
    }
    return
  }
  func.func @transform_0(%arg0: i32, %arg1: i32) -> (i32, i32) {
    %c0_i32 = arith.constant 0 : i32
    %c0_i32_0 = arith.constant 0 : i32
    return %arg1, %c0_i32 : i32, i32
  }
  func.func @transform_1(%arg0: i32, %arg1: i32) -> (i32, i32) {
    %c0_i32 = arith.constant 0 : i32
    %c0_i32_0 = arith.constant 0 : i32
    return %arg1, %c0_i32 : i32, i32
  }
  func.func @transform_2(%arg0: i32, %arg1: i32) -> (i32, i32) {
    %c0_i32 = arith.constant 0 : i32
    %c0_i32_0 = arith.constant 0 : i32
    return %arg0, %c0_i32 : i32, i32
  }
  func.func @transform_3(%arg0: i32, %arg1: i32) -> (i32, i32) {
    %c0_i32 = arith.constant 0 : i32
    %c0_i32_0 = arith.constant 0 : i32
    return %arg0, %c0_i32 : i32, i32
  }
}

module attributes {stable_mosaic.version = 11 : i64} {
  func.func @_project_kernel(%arg0: i32, %arg1: memref<8x128xf32, #tpu.memory_space<vmem>>, %arg2: memref<128x256xf32, #tpu.memory_space<vmem>>, %arg3: memref<8x256xf32, #tpu.memory_space<vmem>>) attributes {dimension_semantics = [#tpu.dimension_semantics<parallel>], iteration_bounds = array<i64: 1>, scalar_prefetch = 0 : i64, scratch_operands = 0 : i64, tpu.core_type = #tpu.core_type<tc>, window_params = [{transform_indices = @transform_0, window_bounds = array<i64: 8, 128>}, {pipeline_mode = #tpu.pipeline_mode<synchronous>, transform_indices = @transform_1, window_bounds = array<i64: 128, 256>}, {transform_indices = @transform_2, window_bounds = array<i64: 8, 256>}]} {
    %c0 = arith.constant 0 : index
    %c0_0 = arith.constant 0 : index
    %0 = vector.load %arg1[%c0, %c0_0] : memref<8x128xf32, #tpu.memory_space<vmem>>, vector<8x128xf32>
    %c0_1 = arith.constant 0 : index
    %c0_2 = arith.constant 0 : index
    %1 = vector.load %arg2[%c0_1, %c0_2] : memref<128x256xf32, #tpu.memory_space<vmem>>, vector<128x256xf32>
    %cst = arith.constant dense<0.000000e+00> : vector<8x256xf32>
    %2 = tpu.matmul %0, %1, %cst {dimension_numbers = #tpu.dot_dimension_numbers<[1], [0], [0], [1], [0, 0, 1, 1], [], []>} : vector<8x128xf32>, vector<128x256xf32>, vector<8x256xf32> -> vector<8x256xf32>
    %c0_3 = arith.constant 0 : index
    %c0_4 = arith.constant 0 : index
    %3 = vector.load %arg3[%c0_3, %c0_4] : memref<8x256xf32, #tpu.memory_space<vmem>>, vector<8x256xf32>
    tpu.vector_store %arg3[%c0_3, %c0_4], %2 {strides = array<i32>} : memref<8x256xf32, #tpu.memory_space<vmem>>, vector<8x256xf32>,
    return
  }
  func.func @transform_0(%arg0: i32) -> (i32, i32) {
    %c0_i32 = arith.constant 0 : i32
    %c0_i32_0 = arith.constant 0 : i32
    return %arg0, %c0_i32 : i32, i32
  }
  func.func @transform_1(%arg0: i32) -> (i32, i32) {
    %c0_i32 = arith.constant 0 : i32
    %c0_i32_0 = arith.constant 0 : i32
    %c0_i32_1 = arith.constant 0 : i32
    return %c0_i32, %c0_i32_0 : i32, i32
  }
  func.func @transform_2(%arg0: i32) -> (i32, i32) {
    %c0_i32 = arith.constant 0 : i32
    %c0_i32_0 = arith.constant 0 : i32
    return %arg0, %c0_i32 : i32, i32
  }
}

module attributes {stable_mosaic.version = 11 : i64} {
  func.func @_conv_scatter_kernel(%arg0: i32, %arg1: i32, %arg2: memref<1x128xi32, #tpu.memory_space<vmem>>, %arg3: memref<128x128xf32, #tpu.memory_space<vmem>>, %arg4: memref<128x1xf32, #tpu.memory_space<vmem>>, %arg5: memref<8x128xf32, #tpu.memory_space<vmem>>, %arg6: memref<8x1xf32, #tpu.memory_space<vmem>>, %arg7: memref<8x1xf32, #tpu.memory_space<vmem>>, %arg8: memref<1x128xf32, #tpu.memory_space<vmem>>, %arg9: memref<8x128xf32, #tpu.memory_space<vmem>>, %arg10: memref<8x128xf32, #tpu.memory_space<vmem>>) attributes {dimension_semantics = [#tpu.dimension_semantics<parallel>, #tpu.dimension_semantics<arbitrary>], iteration_bounds = array<i64: 1, 2>, scalar_prefetch = 0 : i64, scratch_operands = 1 : i64, tpu.core_type = #tpu.core_type<tc>, window_params = [{transform_indices = @transform_0, window_bounds = array<i64: 1, 128>}, {transform_indices = @transform_1, window_bounds = array<i64: 128, 128>}, {transform_indices = @transform_2, window_bounds = array<i64: 128, 1>}, {transform_indices = @transform_3, window_bounds = array<i64: 8, 128>}, {transform_indices = @transform_4, window_bounds = array<i64: 8, 1>}, {transform_indices = @transform_5, window_bounds = array<i64: 8, 1>}, {pipeline_mode = #tpu.pipeline_mode<synchronous>, transform_indices = @transform_6, window_bounds = array<i64: 1, 128>}, {transform_indices = @transform_7, window_bounds = array<i64: 8, 128>}]} {
    %c0_i32 = arith.constant 0 : i32
    %0 = arith.cmpi eq, %arg1, %c0_i32 : i32
    %1 = arith.extui %0 : i1 to i32
    %c0_i32_0 = arith.constant 0 : i32
    %2 = arith.cmpi ne, %1, %c0_i32_0 : i32
    scf.if %2 {
      %cst_11 = arith.constant 0.000000e+00 : f32
      %23 = vector.broadcast %cst_11 : f32 to vector<8x128xf32>
      %c0_12 = arith.constant 0 : index
      %c0_13 = arith.constant 0 : index
      %24 = vector.load %arg10[%c0_12, %c0_13] : memref<8x128xf32, #tpu.memory_space<vmem>>, vector<8x128xf32>
      tpu.vector_store %arg10[%c0_12, %c0_13], %23 {strides = array<i32>} : memref<8x128xf32, #tpu.memory_space<vmem>>, vector<8x128xf32>,
    } else {
    }
    %c8_i32 = arith.constant 8 : i32
    %3 = arith.muli %arg0, %c8_i32 : i32
    %4 = tpu.iota {dimensions = array<i32: 0>} : vector<8x128xi32>
    %5 = vector.broadcast %3 : i32 to vector<8x128xi32>
    %6 = arith.addi %5, %4 : vector<8x128xi32>
    %c0 = arith.constant 0 : index
    %c0_1 = arith.constant 0 : index
    %7 = vector.load %arg2[%c0, %c0_1] : memref<1x128xi32, #tpu.memory_space<vmem>>, vector<1x128xi32>
    %8 = vector.broadcast %7 : vector<1x128xi32> to vector<8x128xi32>
    %9 = arith.cmpi eq, %6, %8 : vector<8x128xi32>
    %10 = arith.extui %9 : vector<8x128xi1> to vector<8x128xi32>
    %11 = arith.sitofp %10 : vector<8x128xi32> to vector<8x128xf32>
    %c0_2 = arith.constant 0 : index
    %c0_3 = arith.constant 0 : index
    %12 = vector.load %arg4[%c0_2, %c0_3] : memref<128x1xf32, #tpu.memory_space<vmem>>, vector<128x1xf32>
    %c0_4 = arith.constant 0 : index
    %c0_5 = arith.constant 0 : index
    %13 = vector.load %arg3[%c0_4, %c0_5] : memref<128x128xf32, #tpu.memory_space<vmem>>, vector<128x128xf32>
    %14 = vector.broadcast %12 : vector<128x1xf32> to vector<128x128xf32>
    %15 = arith.mulf %14, %13 : vector<128x128xf32>
    %c0_6 = arith.constant 0 : index
    %c0_7 = arith.constant 0 : index
    %16 = vector.load %arg10[%c0_6, %c0_7] : memref<8x128xf32, #tpu.memory_space<vmem>>, vector<8x128xf32>
    %cst = arith.constant dense<0.000000e+00> : vector<8x128xf32>
    %17 = tpu.matmul %11, %15, %cst {dimension_numbers = #tpu.dot_dimension_numbers<[1], [0], [0], [1], [0, 0, 1, 1], [], []>} : vector<8x128xf32>, vector<128x128xf32>, vector<8x128xf32> -> vector<8x128xf32>
    %18 = arith.addf %16, %17 : vector<8x128xf32>
    %c0_8 = arith.constant 0 : index
    %c0_9 = arith.constant 0 : index
    %19 = vector.load %arg10[%c0_8, %c0_9] : memref<8x128xf32, #tpu.memory_space<vmem>>, vector<8x128xf32>
    tpu.vector_store %arg10[%c0_8, %c0_9], %18 {strides = array<i32>} : memref<8x128xf32, #tpu.memory_space<vmem>>, vector<8x128xf32>,
    %c1_i32 = arith.constant 1 : i32
    %20 = arith.cmpi eq, %arg1, %c1_i32 : i32
    %21 = arith.extui %20 : i1 to i32
    %c0_i32_10 = arith.constant 0 : i32
    %22 = arith.cmpi ne, %21, %c0_i32_10 : i32
    scf.if %22 {
      %c0_11 = arith.constant 0 : index
      %c0_12 = arith.constant 0 : index
      %23 = vector.load %arg10[%c0_11, %c0_12] : memref<8x128xf32, #tpu.memory_space<vmem>>, vector<8x128xf32>
      %c0_13 = arith.constant 0 : index
      %c0_14 = arith.constant 0 : index
      %24 = vector.load %arg6[%c0_13, %c0_14] : memref<8x1xf32, #tpu.memory_space<vmem>>, vector<8x1xf32>
      %c0_15 = arith.constant 0 : index
      %c0_16 = arith.constant 0 : index
      %25 = vector.load %arg5[%c0_15, %c0_16] : memref<8x128xf32, #tpu.memory_space<vmem>>, vector<8x128xf32>
      %26 = vector.broadcast %24 : vector<8x1xf32> to vector<8x128xf32>
      %27 = arith.mulf %26, %25 : vector<8x128xf32>
      %28 = arith.addf %23, %27 : vector<8x128xf32>
      %c0_17 = arith.constant 0 : index
      %c0_18 = arith.constant 0 : index
      %29 = vector.load %arg7[%c0_17, %c0_18] : memref<8x1xf32, #tpu.memory_space<vmem>>, vector<8x1xf32>
      %30 = vector.broadcast %29 : vector<8x1xf32> to vector<8x128xf32>
      %31 = arith.mulf %28, %30 : vector<8x128xf32>
      %c0_19 = arith.constant 0 : index
      %c0_20 = arith.constant 0 : index
      %32 = vector.load %arg8[%c0_19, %c0_20] : memref<1x128xf32, #tpu.memory_space<vmem>>, vector<1x128xf32>
      %33 = vector.broadcast %32 : vector<1x128xf32> to vector<8x128xf32>
      %34 = arith.addf %31, %33 : vector<8x128xf32>
      %cst_21 = arith.constant 0.000000e+00 : f32
      %35 = vector.broadcast %cst_21 : f32 to vector<8x128xf32>
      %36 = arith.maximumf %34, %35 : vector<8x128xf32>
      %c0_22 = arith.constant 0 : index
      %c0_23 = arith.constant 0 : index
      %37 = vector.load %arg9[%c0_22, %c0_23] : memref<8x128xf32, #tpu.memory_space<vmem>>, vector<8x128xf32>
      tpu.vector_store %arg9[%c0_22, %c0_23], %36 {strides = array<i32>} : memref<8x128xf32, #tpu.memory_space<vmem>>, vector<8x128xf32>,
    } else {
    }
    return
  }
  func.func @transform_0(%arg0: i32, %arg1: i32) -> (i32, i32) {
    %c0_i32 = arith.constant 0 : i32
    %c0_i32_0 = arith.constant 0 : i32
    return %c0_i32, %arg1 : i32, i32
  }
  func.func @transform_1(%arg0: i32, %arg1: i32) -> (i32, i32) {
    %c0_i32 = arith.constant 0 : i32
    %c0_i32_0 = arith.constant 0 : i32
    return %arg1, %c0_i32 : i32, i32
  }
  func.func @transform_2(%arg0: i32, %arg1: i32) -> (i32, i32) {
    %c0_i32 = arith.constant 0 : i32
    %c0_i32_0 = arith.constant 0 : i32
    return %arg1, %c0_i32 : i32, i32
  }
  func.func @transform_3(%arg0: i32, %arg1: i32) -> (i32, i32) {
    %c0_i32 = arith.constant 0 : i32
    %c0_i32_0 = arith.constant 0 : i32
    return %arg0, %c0_i32 : i32, i32
  }
  func.func @transform_4(%arg0: i32, %arg1: i32) -> (i32, i32) {
    %c0_i32 = arith.constant 0 : i32
    %c0_i32_0 = arith.constant 0 : i32
    return %arg0, %c0_i32 : i32, i32
  }
  func.func @transform_5(%arg0: i32, %arg1: i32) -> (i32, i32) {
    %c0_i32 = arith.constant 0 : i32
    %c0_i32_0 = arith.constant 0 : i32
    return %arg0, %c0_i32 : i32, i32
  }
  func.func @transform_6(%arg0: i32, %arg1: i32) -> (i32, i32) {
    %c0_i32 = arith.constant 0 : i32
    %c0_i32_0 = arith.constant 0 : i32
    %c0_i32_1 = arith.constant 0 : i32
    return %c0_i32, %c0_i32_0 : i32, i32
  }
  func.func @transform_7(%arg0: i32, %arg1: i32) -> (i32, i32) {
    %c0_i32 = arith.constant 0 : i32
    %c0_i32_0 = arith.constant 0 : i32
    return %arg0, %c0_i32 : i32, i32
  }
}

module attributes {stable_mosaic.version = 11 : i64} {
  func.func @_tail_kernel(%arg0: i32, %arg1: memref<8x1xi32, #tpu.memory_space<vmem>>, %arg2: memref<8x1xf32, #tpu.memory_space<vmem>>, %arg3: memref<1x8xi32, #tpu.memory_space<vmem>>, %arg4: memref<8x128xf32, #tpu.memory_space<vmem>>, %arg5: memref<128x128xf32, #tpu.memory_space<vmem>>, %arg6: memref<1x128xf32, #tpu.memory_space<vmem>>, %arg7: memref<128x128xf32, #tpu.memory_space<vmem>>, %arg8: memref<1x128xf32, #tpu.memory_space<vmem>>, %arg9: memref<8x128xf32, #tpu.memory_space<vmem>>, %arg10: memref<8x128xf32, #tpu.memory_space<vmem>>) attributes {dimension_semantics = [#tpu.dimension_semantics<arbitrary>], iteration_bounds = array<i64: 1>, scalar_prefetch = 0 : i64, scratch_operands = 1 : i64, tpu.core_type = #tpu.core_type<tc>, window_params = [{pipeline_mode = #tpu.pipeline_mode<synchronous>, transform_indices = @transform_0, window_bounds = array<i64: 8, 1>}, {pipeline_mode = #tpu.pipeline_mode<synchronous>, transform_indices = @transform_1, window_bounds = array<i64: 8, 1>}, {pipeline_mode = #tpu.pipeline_mode<synchronous>, transform_indices = @transform_2, window_bounds = array<i64: 1, 8>}, {pipeline_mode = #tpu.pipeline_mode<synchronous>, transform_indices = @transform_3, window_bounds = array<i64: 8, 128>}, {pipeline_mode = #tpu.pipeline_mode<synchronous>, transform_indices = @transform_4, window_bounds = array<i64: 128, 128>}, {pipeline_mode = #tpu.pipeline_mode<synchronous>, transform_indices = @transform_5, window_bounds = array<i64: 1, 128>}, {pipeline_mode = #tpu.pipeline_mode<synchronous>, transform_indices = @transform_6, window_bounds = array<i64: 128, 128>}, {pipeline_mode = #tpu.pipeline_mode<synchronous>, transform_indices = @transform_7, window_bounds = array<i64: 1, 128>}, {pipeline_mode = #tpu.pipeline_mode<synchronous>, transform_indices = @transform_8, window_bounds = array<i64: 8, 128>}]} {
    %c0 = arith.constant 0 : index
    %c0_0 = arith.constant 0 : index
    %0 = vector.load %arg4[%c0, %c0_0] : memref<8x128xf32, #tpu.memory_space<vmem>>, vector<8x128xf32>
    %c0_1 = arith.constant 0 : index
    %c0_2 = arith.constant 0 : index
    %1 = vector.load %arg1[%c0_1, %c0_2] : memref<8x1xi32, #tpu.memory_space<vmem>>, vector<8x1xi32>
    %c0_i32 = arith.constant 0 : i32
    %2 = vector.broadcast %c0_i32 : i32 to vector<8x1xi32>
    %3 = arith.cmpi eq, %1, %2 : vector<8x1xi32>
    %cst = arith.constant -3.000000e+38 : f32
    %4 = vector.shape_cast %3 : vector<8x1xi1> to vector<8x1xi1>
    %5 = vector.broadcast %4 : vector<8x1xi1> to vector<8x128xi1>
    %6 = vector.broadcast %cst : f32 to vector<8x128xf32>
    %7 = arith.select %5, %0, %6 : vector<8x128xi1>, vector<8x128xf32>
    %cst_3 = arith.constant dense<0xFF800000> : vector<128xf32>
    %8 = vector.multi_reduction <maximumf>, %7, %cst_3 [0] : vector<8x128xf32> to vector<128xf32>
    %9 = vector.shape_cast %8 : vector<128xf32> to vector<1x128xf32>
    %c0_4 = arith.constant 0 : index
    %c0_5 = arith.constant 0 : index
    %10 = vector.load %arg10[%c0_4, %c0_5] : memref<8x128xf32, #tpu.memory_space<vmem>>, vector<1x128xf32>
    tpu.vector_store %arg10[%c0_4, %c0_5], %9 {strides = array<i32>} : memref<8x128xf32, #tpu.memory_space<vmem>>, vector<1x128xf32>,
    %c1_i32 = arith.constant 1 : i32
    %11 = vector.broadcast %c1_i32 : i32 to vector<8x1xi32>
    %12 = arith.cmpi eq, %1, %11 : vector<8x1xi32>
    %cst_6 = arith.constant -3.000000e+38 : f32
    %13 = vector.shape_cast %12 : vector<8x1xi1> to vector<8x1xi1>
    %14 = vector.broadcast %13 : vector<8x1xi1> to vector<8x128xi1>
    %15 = vector.broadcast %cst_6 : f32 to vector<8x128xf32>
    %16 = arith.select %14, %0, %15 : vector<8x128xi1>, vector<8x128xf32>
    %cst_7 = arith.constant dense<0xFF800000> : vector<128xf32>
    %17 = vector.multi_reduction <maximumf>, %16, %cst_7 [0] : vector<8x128xf32> to vector<128xf32>
    %18 = vector.shape_cast %17 : vector<128xf32> to vector<1x128xf32>
    %c1 = arith.constant 1 : index
    %c0_8 = arith.constant 0 : index
    %19 = vector.load %arg10[%c1, %c0_8] : memref<8x128xf32, #tpu.memory_space<vmem>>, vector<1x128xf32>
    tpu.vector_store %arg10[%c1, %c0_8], %18 {strides = array<i32>} : memref<8x128xf32, #tpu.memory_space<vmem>>, vector<1x128xf32>,
    %c2_i32 = arith.constant 2 : i32
    %20 = vector.broadcast %c2_i32 : i32 to vector<8x1xi32>
    %21 = arith.cmpi eq, %1, %20 : vector<8x1xi32>
    %cst_9 = arith.constant -3.000000e+38 : f32
    %22 = vector.shape_cast %21 : vector<8x1xi1> to vector<8x1xi1>
    %23 = vector.broadcast %22 : vector<8x1xi1> to vector<8x128xi1>
    %24 = vector.broadcast %cst_9 : f32 to vector<8x128xf32>
    %25 = arith.select %23, %0, %24 : vector<8x128xi1>, vector<8x128xf32>
    %cst_10 = arith.constant dense<0xFF800000> : vector<128xf32>
    %26 = vector.multi_reduction <maximumf>, %25, %cst_10 [0] : vector<8x128xf32> to vector<128xf32>
    %27 = vector.shape_cast %26 : vector<128xf32> to vector<1x128xf32>
    %c2 = arith.constant 2 : index
    %c0_11 = arith.constant 0 : index
    %28 = vector.load %arg10[%c2, %c0_11] : memref<8x128xf32, #tpu.memory_space<vmem>>, vector<1x128xf32>
    tpu.vector_store %arg10[%c2, %c0_11], %27 {strides = array<i32>} : memref<8x128xf32, #tpu.memory_space<vmem>>, vector<1x128xf32>,
    %c3_i32 = arith.constant 3 : i32
    %29 = vector.broadcast %c3_i32 : i32 to vector<8x1xi32>
    %30 = arith.cmpi eq, %1, %29 : vector<8x1xi32>
    %cst_12 = arith.constant -3.000000e+38 : f32
    %31 = vector.shape_cast %30 : vector<8x1xi1> to vector<8x1xi1>
    %32 = vector.broadcast %31 : vector<8x1xi1> to vector<8x128xi1>
    %33 = vector.broadcast %cst_12 : f32 to vector<8x128xf32>
    %34 = arith.select %32, %0, %33 : vector<8x128xi1>, vector<8x128xf32>
    %cst_13 = arith.constant dense<0xFF800000> : vector<128xf32>
    %35 = vector.multi_reduction <maximumf>, %34, %cst_13 [0] : vector<8x128xf32> to vector<128xf32>
    %36 = vector.shape_cast %35 : vector<128xf32> to vector<1x128xf32>
    %c3 = arith.constant 3 : index
    %c0_14 = arith.constant 0 : index
    %37 = vector.load %arg10[%c3, %c0_14] : memref<8x128xf32, #tpu.memory_space<vmem>>, vector<1x128xf32>
    tpu.vector_store %arg10[%c3, %c0_14], %36 {strides = array<i32>} : memref<8x128xf32, #tpu.memory_space<vmem>>, vector<1x128xf32>,
    %c4_i32 = arith.constant 4 : i32
    %38 = vector.broadcast %c4_i32 : i32 to vector<8x1xi32>
    %39 = arith.cmpi eq, %1, %38 : vector<8x1xi32>
    %cst_15 = arith.constant -3.000000e+38 : f32
    %40 = vector.shape_cast %39 : vector<8x1xi1> to vector<8x1xi1>
    %41 = vector.broadcast %40 : vector<8x1xi1> to vector<8x128xi1>
    %42 = vector.broadcast %cst_15 : f32 to vector<8x128xf32>
    %43 = arith.select %41, %0, %42 : vector<8x128xi1>, vector<8x128xf32>
    %cst_16 = arith.constant dense<0xFF800000> : vector<128xf32>
    %44 = vector.multi_reduction <maximumf>, %43, %cst_16 [0] : vector<8x128xf32> to vector<128xf32>
    %45 = vector.shape_cast %44 : vector<128xf32> to vector<1x128xf32>
    %c4 = arith.constant 4 : index
    %c0_17 = arith.constant 0 : index
    %46 = vector.load %arg10[%c4, %c0_17] : memref<8x128xf32, #tpu.memory_space<vmem>>, vector<1x128xf32>
    tpu.vector_store %arg10[%c4, %c0_17], %45 {strides = array<i32>} : memref<8x128xf32, #tpu.memory_space<vmem>>, vector<1x128xf32>,
    %c5_i32 = arith.constant 5 : i32
    %47 = vector.broadcast %c5_i32 : i32 to vector<8x1xi32>
    %48 = arith.cmpi eq, %1, %47 : vector<8x1xi32>
    %cst_18 = arith.constant -3.000000e+38 : f32
    %49 = vector.shape_cast %48 : vector<8x1xi1> to vector<8x1xi1>
    %50 = vector.broadcast %49 : vector<8x1xi1> to vector<8x128xi1>
    %51 = vector.broadcast %cst_18 : f32 to vector<8x128xf32>
    %52 = arith.select %50, %0, %51 : vector<8x128xi1>, vector<8x128xf32>
    %cst_19 = arith.constant dense<0xFF800000> : vector<128xf32>
    %53 = vector.multi_reduction <maximumf>, %52, %cst_19 [0] : vector<8x128xf32> to vector<128xf32>
    %54 = vector.shape_cast %53 : vector<128xf32> to vector<1x128xf32>
    %c5 = arith.constant 5 : index
    %c0_20 = arith.constant 0 : index
    %55 = vector.load %arg10[%c5, %c0_20] : memref<8x128xf32, #tpu.memory_space<vmem>>, vector<1x128xf32>
    tpu.vector_store %arg10[%c5, %c0_20], %54 {strides = array<i32>} : memref<8x128xf32, #tpu.memory_space<vmem>>, vector<1x128xf32>,
    %c6_i32 = arith.constant 6 : i32
    %56 = vector.broadcast %c6_i32 : i32 to vector<8x1xi32>
    %57 = arith.cmpi eq, %1, %56 : vector<8x1xi32>
    %cst_21 = arith.constant -3.000000e+38 : f32
    %58 = vector.shape_cast %57 : vector<8x1xi1> to vector<8x1xi1>
    %59 = vector.broadcast %58 : vector<8x1xi1> to vector<8x128xi1>
    %60 = vector.broadcast %cst_21 : f32 to vector<8x128xf32>
    %61 = arith.select %59, %0, %60 : vector<8x128xi1>, vector<8x128xf32>
    %cst_22 = arith.constant dense<0xFF800000> : vector<128xf32>
    %62 = vector.multi_reduction <maximumf>, %61, %cst_22 [0] : vector<8x128xf32> to vector<128xf32>
    %63 = vector.shape_cast %62 : vector<128xf32> to vector<1x128xf32>
    %c6 = arith.constant 6 : index
    %c0_23 = arith.constant 0 : index
    %64 = vector.load %arg10[%c6, %c0_23] : memref<8x128xf32, #tpu.memory_space<vmem>>, vector<1x128xf32>
    tpu.vector_store %arg10[%c6, %c0_23], %63 {strides = array<i32>} : memref<8x128xf32, #tpu.memory_space<vmem>>, vector<1x128xf32>,
    %c7_i32 = arith.constant 7 : i32
    %65 = vector.broadcast %c7_i32 : i32 to vector<8x1xi32>
    %66 = arith.cmpi eq, %1, %65 : vector<8x1xi32>
    %cst_24 = arith.constant -3.000000e+38 : f32
    %67 = vector.shape_cast %66 : vector<8x1xi1> to vector<8x1xi1>
    %68 = vector.broadcast %67 : vector<8x1xi1> to vector<8x128xi1>
    %69 = vector.broadcast %cst_24 : f32 to vector<8x128xf32>
    %70 = arith.select %68, %0, %69 : vector<8x128xi1>, vector<8x128xf32>
    %cst_25 = arith.constant dense<0xFF800000> : vector<128xf32>
    %71 = vector.multi_reduction <maximumf>, %70, %cst_25 [0] : vector<8x128xf32> to vector<128xf32>
    %72 = vector.shape_cast %71 : vector<128xf32> to vector<1x128xf32>
    %c7 = arith.constant 7 : index
    %c0_26 = arith.constant 0 : index
    %73 = vector.load %arg10[%c7, %c0_26] : memref<8x128xf32, #tpu.memory_space<vmem>>, vector<1x128xf32>
    tpu.vector_store %arg10[%c7, %c0_26], %72 {strides = array<i32>} : memref<8x128xf32, #tpu.memory_space<vmem>>, vector<1x128xf32>,
    %c0_27 = arith.constant 0 : index
    %c0_28 = arith.constant 0 : index
    %74 = vector.load %arg2[%c0_27, %c0_28] : memref<8x1xf32, #tpu.memory_space<vmem>>, vector<8x1xf32>
    %cst_29 = arith.constant 0.000000e+00 : f32
    %75 = vector.broadcast %cst_29 : f32 to vector<8x1xf32>
    %76 = arith.cmpf ogt, %74, %75 : vector<8x1xf32>
    %c0_30 = arith.constant 0 : index
    %c0_31 = arith.constant 0 : index
    %77 = vector.load %arg10[%c0_30, %c0_31] : memref<8x128xf32, #tpu.memory_space<vmem>>, vector<8x128xf32>
    %cst_32 = arith.constant 0.000000e+00 : f32
    %78 = vector.shape_cast %76 : vector<8x1xi1> to vector<8x1xi1>
    %79 = vector.broadcast %78 : vector<8x1xi1> to vector<8x128xi1>
    %80 = vector.broadcast %cst_32 : f32 to vector<8x128xf32>
    %81 = arith.select %79, %77, %80 : vector<8x128xi1>, vector<8x128xf32>
    %82 = tpu.iota {dimensions = array<i32: 0>} : vector<8x8xi32>
    %c0_33 = arith.constant 0 : index
    %c0_34 = arith.constant 0 : index
    %83 = vector.load %arg3[%c0_33, %c0_34] : memref<1x8xi32, #tpu.memory_space<vmem>>, vector<1x8xi32>
    %84 = vector.broadcast %83 : vector<1x8xi32> to vector<8x8xi32>
    %85 = arith.cmpi eq, %82, %84 : vector<8x8xi32>
    %86 = arith.extui %85 : vector<8x8xi1> to vector<8x8xi32>
    %87 = arith.sitofp %86 : vector<8x8xi32> to vector<8x8xf32>
    %cst_35 = arith.constant dense<0.000000e+00> : vector<8xf32>
    %88 = vector.multi_reduction <add>, %87, %cst_35 [1] : vector<8x8xf32> to vector<8xf32>
    %89 = vector.shape_cast %88 : vector<8xf32> to vector<8x1xf32>
    %cst_36 = arith.constant 0.000000e+00 : f32
    %90 = vector.broadcast %cst_36 : f32 to vector<8x1xf32>
    %91 = arith.cmpf ogt, %89, %90 : vector<8x1xf32>
    %cst_37 = arith.constant 1.000000e+00 : f32
    %92 = vector.broadcast %cst_37 : f32 to vector<8x1xf32>
    %93 = arith.maximumf %89, %92 : vector<8x1xf32>
    %cst_38 = arith.constant 1.000000e+00 : f32
    %94 = vector.broadcast %cst_38 : f32 to vector<8x1xf32>
    %95 = arith.divf %94, %93 : vector<8x1xf32>
    %cst_39 = arith.constant 0.000000e+00 : f32
    %96 = vector.broadcast %cst_39 : f32 to vector<8x1xf32>
    %97 = arith.select %91, %95, %96 : vector<8x1xi1>, vector<8x1xf32>
    %98 = vector.broadcast %97 : vector<8x1xf32> to vector<8x8xf32>
    %99 = arith.mulf %87, %98 : vector<8x8xf32>
    %cst_40 = arith.constant dense<0.000000e+00> : vector<8x128xf32>
    %100 = tpu.matmul %99, %81, %cst_40 {dimension_numbers = #tpu.dot_dimension_numbers<[1], [0], [0], [1], [0, 0, 1, 1], [], []>} : vector<8x8xf32>, vector<8x128xf32>, vector<8x128xf32> -> vector<8x128xf32>
    %c0_41 = arith.constant 0 : index
    %c0_42 = arith.constant 0 : index
    %101 = vector.load %arg5[%c0_41, %c0_42] : memref<128x128xf32, #tpu.memory_space<vmem>>, vector<128x128xf32>
    %cst_43 = arith.constant dense<0.000000e+00> : vector<8x128xf32>
    %102 = tpu.matmul %100, %101, %cst_43 {dimension_numbers = #tpu.dot_dimension_numbers<[1], [0], [0], [1], [0, 0, 1, 1], [], []>} : vector<8x128xf32>, vector<128x128xf32>, vector<8x128xf32> -> vector<8x128xf32>
    %c0_44 = arith.constant 0 : index
    %c0_45 = arith.constant 0 : index
    %103 = vector.load %arg6[%c0_44, %c0_45] : memref<1x128xf32, #tpu.memory_space<vmem>>, vector<1x128xf32>
    %104 = vector.broadcast %103 : vector<1x128xf32> to vector<8x128xf32>
    %105 = arith.addf %102, %104 : vector<8x128xf32>
    %cst_46 = arith.constant 0.000000e+00 : f32
    %106 = vector.broadcast %cst_46 : f32 to vector<8x128xf32>
    %107 = arith.maximumf %105, %106 : vector<8x128xf32>
    %c0_47 = arith.constant 0 : index
    %c0_48 = arith.constant 0 : index
    %108 = vector.load %arg7[%c0_47, %c0_48] : memref<128x128xf32, #tpu.memory_space<vmem>>, vector<128x128xf32>
    %cst_49 = arith.constant dense<0.000000e+00> : vector<8x128xf32>
    %109 = tpu.matmul %107, %108, %cst_49 {dimension_numbers = #tpu.dot_dimension_numbers<[1], [0], [0], [1], [0, 0, 1, 1], [], []>} : vector<8x128xf32>, vector<128x128xf32>, vector<8x128xf32> -> vector<8x128xf32>
    %c0_50 = arith.constant 0 : index
    %c0_51 = arith.constant 0 : index
    %110 = vector.load %arg8[%c0_50, %c0_51] : memref<1x128xf32, #tpu.memory_space<vmem>>, vector<1x128xf32>
    %111 = vector.broadcast %110 : vector<1x128xf32> to vector<8x128xf32>
    %112 = arith.addf %109, %111 : vector<8x128xf32>
    %c0_52 = arith.constant 0 : index
    %c0_53 = arith.constant 0 : index
    %113 = vector.load %arg9[%c0_52, %c0_53] : memref<8x128xf32, #tpu.memory_space<vmem>>, vector<8x128xf32>
    tpu.vector_store %arg9[%c0_52, %c0_53], %112 {strides = array<i32>} : memref<8x128xf32, #tpu.memory_space<vmem>>, vector<8x128xf32>,
    return
  }
  func.func @transform_0(%arg0: i32) -> (i32, i32) {
    %c0_i32 = arith.constant 0 : i32
    %c0_i32_0 = arith.constant 0 : i32
    %c0_i32_1 = arith.constant 0 : i32
    return %c0_i32, %c0_i32_0 : i32, i32
  }
  func.func @transform_1(%arg0: i32) -> (i32, i32) {
    %c0_i32 = arith.constant 0 : i32
    %c0_i32_0 = arith.constant 0 : i32
    %c0_i32_1 = arith.constant 0 : i32
    return %c0_i32, %c0_i32_0 : i32, i32
  }
  func.func @transform_2(%arg0: i32) -> (i32, i32) {
    %c0_i32 = arith.constant 0 : i32
    %c0_i32_0 = arith.constant 0 : i32
    %c0_i32_1 = arith.constant 0 : i32
    return %c0_i32, %c0_i32_0 : i32, i32
  }
  func.func @transform_3(%arg0: i32) -> (i32, i32) {
    %c0_i32 = arith.constant 0 : i32
    %c0_i32_0 = arith.constant 0 : i32
    %c0_i32_1 = arith.constant 0 : i32
    return %c0_i32, %c0_i32_0 : i32, i32
  }
  func.func @transform_4(%arg0: i32) -> (i32, i32) {
    %c0_i32 = arith.constant 0 : i32
    %c0_i32_0 = arith.constant 0 : i32
    %c0_i32_1 = arith.constant 0 : i32
    return %c0_i32, %c0_i32_0 : i32, i32
  }
  func.func @transform_5(%arg0: i32) -> (i32, i32) {
    %c0_i32 = arith.constant 0 : i32
    %c0_i32_0 = arith.constant 0 : i32
    %c0_i32_1 = arith.constant 0 : i32
    return %c0_i32, %c0_i32_0 : i32, i32
  }
  func.func @transform_6(%arg0: i32) -> (i32, i32) {
    %c0_i32 = arith.constant 0 : i32
    %c0_i32_0 = arith.constant 0 : i32
    %c0_i32_1 = arith.constant 0 : i32
    return %c0_i32, %c0_i32_0 : i32, i32
  }
  func.func @transform_7(%arg0: i32) -> (i32, i32) {
    %c0_i32 = arith.constant 0 : i32
    %c0_i32_0 = arith.constant 0 : i32
    %c0_i32_1 = arith.constant 0 : i32
    return %c0_i32, %c0_i32_0 : i32, i32
  }
  func.func @transform_8(%arg0: i32) -> (i32, i32) {
    %c0_i32 = arith.constant 0 : i32
    %c0_i32_0 = arith.constant 0 : i32
    %c0_i32_1 = arith.constant 0 : i32
    return %c0_i32, %c0_i32_0 : i32, i32
  }
}

</mosaic_0001>

<llo_original>
// kernel: sgat_forward.6
$region0: #{sgat_forward.6}
  #allocation0 [shape = 'u32[]', space=smem, size = 0x4, offset = 0x4, fixed_abs, tag = 'smem constant byte address 0x4 - core index']
  #allocation1 [shape = 'u32[144,128]{1,0:T(1,128)}', space=vmem, size = 0x12000, scoped, tag = 'internal scratch']
  %s0 = inlined_call_operand.vmem [shape: f32[24,128], index: 0, kind: input, shape index: {}]
  %s1 = inlined_call_operand.vmem [shape: f32[128,256], index: 1, kind: input, shape index: {}]
  %s2 = inlined_call_operand.vmem [shape: f32[24,256], index: 2, kind: output, shape index: {}]
  %s3 = sld [smem:[#allocation0]]
  $region41: #{sgat_forward.6} parent=0
    _
  %s5 = ssub.s32 1, %s3
  %s6 = scalar_select 0, %s5, %s3
  loop: start=0, step=1, limit=5
  $region2: #{sgat_forward.6} parent=0 // loop_pre_header
    _
  $region3: #{sgat_forward.6} parent=0 // loop_header
    %s8 = sphi 0, %s12
    %p9 = scmp.ge.s32.totalorder %s8, 5
    %s18 = sphi 0, %s20
    %s21 = sphi 0, %s18
    %s22 = sphi 0, %s21
    %s38 = sphi 0, %s22
    %s42 = sphi 0, %s42
    %s44 = sphi 0, %s42
    %s45 = sphi 0, %s44
    %s59 = sphi 0, %s45
    %s65 = sphi 0, %s67
    %s68 = sphi 0, %s65
    %s69 = sphi 0, %s68
    %s85 = sphi 0, %s69
  $region4: #{sgat_forward.6} parent=0 // loop_header_branch
    %11 = sbr.rel (%p9) target = $region8
  $region5: #{sgat_forward.6} parent=0 // loop_body
    %s13 = ssub.s32 %s8, 1
    %s14 = ssub.s32 %s8, 2
    %s15 = sadd.s32 %s8, 1
    %s16 = ssub.s32 %s8, %s15
    %p17 = scmp.eq.s32.totalorder %s16, 0
    %s19 = sadd.s32 %s18, 1
    %s20 = scalar_select %p17, %s18, %s19
    %p23 = pneg %p17
    %p24 = scmp.eq.s32.totalorder %s8, 2
    %p25 = por %p23, %p24
    %p26 = scmp.ne.s32.totalorder %s18, %s21
    %p27 = scmp.eq.s32.totalorder %s8, 0
    %p28 = por %p26, %p27
    %p29 = scmp.ne.s32.totalorder %s18, %s21
    %p30 = scmp.eq.s32.totalorder %s13, 2
    %p31 = por %p29, %p30
    %p32 = scmp.ne.s32.totalorder %s21, %s22
    %p33 = scmp.eq.s32.totalorder %s13, 0
    %p34 = por %p32, %p33
    %p35 = scmp.ne.s32.totalorder %s21, %s22
    %p36 = scmp.eq.s32.totalorder %s14, 2
    %p37 = por %p35, %p36
    %p39 = scmp.ne.s32.totalorder %s22, %s38
    %p40 = scmp.eq.s32.totalorder %s14, 0
    %p41 = por %p39, %p40
    %s43 = sadd.s32 %s42, 1
    %p46 = scmp.eq.s32.totalorder %s8, 2
    %p47 = scmp.ne.s32.totalorder %s42, %s44
    %p48 = scmp.eq.s32.totalorder %s8, 0
    %p49 = por %p47, %p48
    %p50 = scmp.ne.s32.totalorder %s42, %s44
    %p51 = scmp.eq.s32.totalorder %s13, 2
    %p52 = por %p50, %p51
    %p53 = scmp.ne.s32.totalorder %s44, %s45
    %p54 = scmp.eq.s32.totalorder %s13, 0
    %p55 = por %p53, %p54
    %p56 = scmp.ne.s32.totalorder %s44, %s45
    %p57 = scmp.eq.s32.totalorder %s14, 2
    %p58 = por %p56, %p57
    %p60 = scmp.ne.s32.totalorder %s45, %s59
    %p61 = scmp.eq.s32.totalorder %s14, 0
    %p62 = por %p60, %p61
    %s63 = ssub.s32 %s8, %s15
    %p64 = scmp.eq.s32.totalorder %s63, 0
    %s66 = sadd.s32 %s65, 1
    %s67 = scalar_select %p64, %s65, %s66
    %p70 = pneg %p64
    %p71 = scmp.eq.s32.totalorder %s8, 2
    %p72 = por %p70, %p71
    %p73 = scmp.ne.s32.totalorder %s65, %s68
    %p74 = scmp.eq.s32.totalorder %s8, 0
    %p75 = por %p73, %p74
    %p76 = scmp.ne.s32.totalorder %s65, %s68
    %p77 = scmp.eq.s32.totalorder %s13, 2
    %p78 = por %p76, %p77
    %p79 = scmp.ne.s32.totalorder %s68, %s69
    %p80 = scmp.eq.s32.totalorder %s13, 0
    %p81 = por %p79, %p80
    %p82 = scmp.ne.s32.totalorder %s68, %s69
    %p83 = scmp.eq.s32.totalorder %s14, 2
    %p84 = por %p82, %p83
    %p86 = scmp.ne.s32.totalorder %s69, %s85
    %p87 = scmp.eq.s32.totalorder %s14, 0
    %p88 = por %p86, %p87
    %p89 = scmp.le.s32.totalorder 1, %s8
    %p90 = scmp.lt.s32.totalorder %s8, 4
    %p91 = pnand %p89, %p90
    %p92 = pneg %p91
    // Predicated region
    $region9: #{sgat_forward.6} parent=5 // pred_check
      _
    $region10: #{sgat_forward.6} parent=5 // pred_check_branch
      %94 = sbr.rel (%p91) target = $region12
    $region11: #{sgat_forward.6} parent=5 // pred_region
      %s95 = ssub.s32 %s8, 1
      // Predicated region
      $region13: #{sgat_forward.6} parent=11 // pred_check
        %p96 = pneg %p55
      $region14: #{sgat_forward.6} parent=11 // pred_check_branch
        %98 = sbr.rel (%p96) target = $region16
      $region15: #{sgat_forward.6} parent=11 // pred_region
        _
      $region16: #{sgat_forward.6} parent=11 // pred_fallthru
        _
    $region12: #{sgat_forward.6} parent=5 // pred_fallthru
      _
    %p99 = scmp.lt.s32.totalorder %s8, 3
    // Predicated region
    $region17: #{sgat_forward.6} parent=5 // pred_check
      %p100 = pneg %p99
    $region18: #{sgat_forward.6} parent=5 // pred_check_branch
      %102 = sbr.rel (%p100) target = $region20
    $region19: #{sgat_forward.6} parent=5 // pred_region
      // Predicated region
      $region21: #{sgat_forward.6} parent=19 // pred_check
        %p103 = pneg %p28
      $region22: #{sgat_forward.6} parent=19 // pred_check_branch
        %105 = sbr.rel (%p103) target = $region24
      $region23: #{sgat_forward.6} parent=19 // pred_region
        %p106 = scmp.lt.s32.totalorder %s8, 2
        %s107 = scalar_select %p106, %s8, 2
        %s108 = smul.addr %s107, 8
        %s109 = scalar_lea.vmem %s0, %s108
      $region24: #{sgat_forward.6} parent=19 // pred_fallthru
        _
    $region20: #{sgat_forward.6} parent=5 // pred_fallthru
      _
    %p110 = scmp.le.s32.totalorder 1, %s8
    %p111 = scmp.lt.s32.totalorder %s8, 4
    %p112 = pnand %p110, %p111
    %p113 = pneg %p112
    // Predicated region
    $region25: #{sgat_forward.6} parent=5 // pred_check
      _
    $region26: #{sgat_forward.6} parent=5 // pred_check_branch
      %115 = sbr.rel (%p112) target = $region28
    $region27: #{sgat_forward.6} parent=5 // pred_region
      %s116 = ssub.s32 %s8, 1
      %p117 = scmp.lt.s32.totalorder %s13, 2
      %s118 = scalar_select %p117, %s13, 2
      %s119 = smul.addr %s118, 8
      %s120 = scalar_lea.vmem %s0, %s119
      %p121 = pneg %p34
      %p122 = pneg %p31
      %p123 = pneg %p55
      %p124 = pneg %p52
      %p125 = pneg %p81
      %p126 = pneg %p78
      %p127 = scmp.lt.s32.totalorder %s13, 2
      %s128 = scalar_select %p127, %s13, 2
      %s129 = smul.addr %s128, 2
      %s130 = smul.addr %s129, 8
      %s131 = scalar_lea.vmem %s2, %s130
      %p132 = scmp.lt.s32.totalorder %s13, 2
      %s133 = scalar_select %p132, %s13, 2
      %s134 = smul.addr %s133, 8
      %s135 = scalar_lea.vmem %s0, %s134
      %p136 = scmp.lt.s32.totalorder %s13, 2
      %s137 = scalar_select %p136, %s13, 2
      %s138 = smul.addr %s137, 2
      %s139 = smul.addr %s138, 8
      %s140 = scalar_lea.vmem %s2, %s139
      %v141 = vld [vmem:[%s135] sm:$0xff]
      %v142 = vld [vmem:[%s1] sm:$0xff]
      %v143 = vld [vmem:[%s1 + $0x8] sm:$0xff]
      %v144 = vld [vmem:[%s1 + $0x10] sm:$0xff]
      %v145 = vld [vmem:[%s1 + $0x18] sm:$0xff]
      %v146 = vld [vmem:[%s1 + $0x20] sm:$0xff]
      %v147 = vld [vmem:[%s1 + $0x28] sm:$0xff]
      %v148 = vld [vmem:[%s1 + $0x30] sm:$0xff]
      %v149 = vld [vmem:[%s1 + $0x38] sm:$0xff]
      %v150 = vld [vmem:[%s1 + $0x40] sm:$0xff]
      %v151 = vld [vmem:[%s1 + $0x48] sm:$0xff]
      %v152 = vld [vmem:[%s1 + $0x50] sm:$0xff]
      %v153 = vld [vmem:[%s1 + $0x58] sm:$0xff]
      %v154 = vld [vmem:[%s1 + $0x60] sm:$0xff]
      %v155 = vld [vmem:[%s1 + $0x68] sm:$0xff]
      %v156 = vld [vmem:[%s1 + $0x70] sm:$0xff]
      %v157 = vld [vmem:[%s1 + $0x78] sm:$0xff]
      %v158 = vld [vmem:[%s1 + $0x80] sm:$0xff]
      %v159 = vld [vmem:[%s1 + $0x88] sm:$0xff]
      %v160 = vld [vmem:[%s1 + $0x90] sm:$0xff]
      %v161 = vld [vmem:[%s1 + $0x98] sm:$0xff]
      %v162 = vld [vmem:[%s1 + $0xa0] sm:$0xff]
      %v163 = vld [vmem:[%s1 + $0xa8] sm:$0xff]
      %v164 = vld [vmem:[%s1 + $0xb0] sm:$0xff]
      %v165 = vld [vmem:[%s1 + $0xb8] sm:$0xff]
      %v166 = vld [vmem:[%s1 + $0xc0] sm:$0xff]
      %v167 = vld [vmem:[%s1 + $0xc8] sm:$0xff]
      %v168 = vld [vmem:[%s1 + $0xd0] sm:$0xff]
      %v169 = vld [vmem:[%s1 + $0xd8] sm:$0xff]
      %v170 = vld [vmem:[%s1 + $0xe0] sm:$0xff]
      %v171 = vld [vmem:[%s1 + $0xe8] sm:$0xff]
      %v172 = vld [vmem:[%s1 + $0xf0] sm:$0xff]
      %v173 = vld [vmem:[%s1 + $0xf8] sm:$0xff]
      %174 = vmatprep.subr.mxu0 %v173
      %175 = vmatpush1.msra.mxu0 %v172
      %176 = vmatprep.subr.mxu0 %v171
      %177 = vmatpush1.msra.mxu0 %v170
      %178 = vmatprep.subr.mxu0 %v169
      %179 = vmatpush1.msra.mxu0 %v168
      %180 = vmatprep.subr.mxu0 %v167
      %181 = vmatpush1.msra.mxu0 %v166
      %182 = vmatprep.subr.mxu0 %v165
      %183 = vmatpush1.msra.mxu0 %v164
      %184 = vmatprep.subr.mxu0 %v163
      %185 = vmatpush1.msra.mxu0 %v162
      %186 = vmatprep.subr.mxu0 %v161
      %187 = vmatpush1.msra.mxu0 %v160
      %188 = vmatprep.subr.mxu0 %v159
      %189 = vmatpush1.msra.mxu0 %v158
      %190 = vmatprep.subr.mxu0 %v157
      %191 = vmatpush1.msra.mxu0 %v156
      %192 = vmatprep.subr.mxu0 %v155
      %193 = vmatpush1.msra.mxu0 %v154
      %194 = vmatprep.subr.mxu0 %v153
      %195 = vmatpush1.msra.mxu0 %v152
      %196 = vmatprep.subr.mxu0 %v151
      %197 = vmatpush1.msra.mxu0 %v150
      %198 = vmatprep.subr.mxu0 %v149
      %199 = vmatpush1.msra.mxu0 %v148
      %200 = vmatprep.subr.mxu0 %v147
      %201 = vmatpush1.msra.mxu0 %v146
      %202 = vmatprep.subr.mxu0 %v145
      %203 = vmatpush1.msra.mxu0 %v144
      %204 = vmatprep.subr.mxu0 %v143
      %205 = vmatpush1.msra.mxu0 %v142
      %206 = vmatprep.subr.mxu0 0.0
      %207 = vmatpush2.msra.mxu0 0.0
      %208 = vmatprep.subr.mxu0 0.0
      %209 = vmatpush2.msra.mxu0 0.0
      %210 = vmatprep.subr.mxu0 0.0
      %211 = vmatpush2.msra.mxu0 0.0
      %212 = vmatprep.subr.mxu0 0.0
      %213 = vmatpush2.msra.mxu0 0.0
      %214 = vmatprep.subr.mxu0 0.0
      %215 = vmatpush2.msra.mxu0 0.0
      %216 = vmatprep.subr.mxu0 0.0
      %217 = vmatpush2.msra.mxu0 0.0
      %218 = vmatprep.subr.mxu0 0.0
      %219 = vmatpush2.msra.mxu0 0.0
      %220 = vmatprep.subr.mxu0 0.0
      %221 = vmatpush2.msra.mxu0 0.0
      %222 = vmatprep.subr.mxu0 0.0
      %223 = vmatpush2.msra.mxu0 0.0
      %224 = vmatprep.subr.mxu0 0.0
      %225 = vmatpush2.msra.mxu0 0.0
      %226 = vmatprep.subr.mxu0 0.0
      %227 = vmatpush2.msra.mxu0 0.0
      %228 = vmatprep.subr.mxu0 0.0
      %229 = vmatpush2.msra.mxu0 0.0
      %230 = vmatprep.subr.mxu0 0.0
      %231 = vmatpush2.msra.mxu0 0.0
      %232 = vmatprep.subr.mxu0 0.0
      %233 = vmatpush2.msra.mxu0 0.0
      %234 = vmatprep.subr.mxu0 0.0
      %235 = vmatpush2.msra.mxu0 0.0
      %236 = vmatprep.subr.mxu0 0.0
      %237 = vmatpush2.msra.mxu0 0.0
      %238 = vmatprep.mubr.f32.mxu0 0.0
      %239 = vmatmul.mubr.f32.gmra.mxu0 %v141
      %v240 = vpop.f32.mrf.mxu0
      %v241 = vadd.f32 0.0, %v240
      %v242 = vpop.f32.mrf.mxu0
      %v243 = vadd.f32 0.0, %v242
      %244 = vdwg.mxu0
      %245 = vst [vmem:[%s140] sm:$0xff] %v241
      %246 = vst [vmem:[%s140 + $0x8] sm:$0xff] %v243
      %p247 = scmp.lt.s32.totalorder %s13, 2
      %s248 = scalar_select %p247, %s13, 2
      %s249 = smul.addr %s248, 2
      %s250 = smul.addr %s249, 8
      %s251 = scalar_lea.vmem %s2, %s250
      // Predicated region
      $region29: #{sgat_forward.6} parent=27 // pred_check
        %p252 = pneg %p78
      $region30: #{sgat_forward.6} parent=27 // pred_check_branch
        %254 = sbr.rel (%p252) target = $region32
      $region31: #{sgat_forward.6} parent=27 // pred_region
        _
      $region32: #{sgat_forward.6} parent=27 // pred_fallthru
        _
    $region28: #{sgat_forward.6} parent=5 // pred_fallthru
      _
    %p255 = scmp.le.s32.totalorder 2, %s8
    // Predicated region
    $region33: #{sgat_forward.6} parent=5 // pred_check
      %p256 = pneg %p255
    $region34: #{sgat_forward.6} parent=5 // pred_check_branch
      %258 = sbr.rel (%p256) target = $region36
    $region35: #{sgat_forward.6} parent=5 // pred_region
      %s259 = ssub.s32 %s8, 2
      // Predicated region
      $region37: #{sgat_forward.6} parent=35 // pred_check
        %p260 = pneg %p84
      $region38: #{sgat_forward.6} parent=35 // pred_check_branch
        %262 = sbr.rel (%p260) target = $region40
      $region39: #{sgat_forward.6} parent=35 // pred_region
        %p263 = scmp.lt.s32.totalorder %s14, 2
        %s264 = scalar_select %p263, %s14, 2
        %s265 = smul.addr %s264, 2
        %s266 = smul.addr %s265, 8
        %s267 = scalar_lea.vmem %s2, %s266
      $region40: #{sgat_forward.6} parent=35 // pred_fallthru
        _
    $region36: #{sgat_forward.6} parent=5 // pred_fallthru
      _
  $region6: #{sgat_forward.6} parent=0 // loop_footer
    %s12 = sadd.s32 1, %s8
  $region7: #{sgat_forward.6} parent=0 // loop_footer_branch
    %7 = sbr.rel target = $region3
  $region8: #{sgat_forward.6} parent=0 // loop_exit
    _

// kernel: sgat_forward.7
$region0: #{sgat_forward.7}
  #allocation0 [shape = 'u32[]', space=smem, size = 0x4, offset = 0x4, fixed_abs, tag = 'smem constant byte address 0x4 - core index']
  #allocation1 [shape = 'u32[144,128]{1,0:T(1,128)}', space=vmem, size = 0x12000, scoped, tag = 'internal scratch']
  #allocation2 [shape = 'f32[8,128]{1,0:T(8,128)}', space=vmem, size = 0x1000, scoped, tag = 'scratch operand']
  %s0 = inlined_call_operand.vmem [shape: s32[1,256], index: 0, kind: input, shape index: {}]
  %s1 = inlined_call_operand.vmem [shape: f32[256,128], index: 1, kind: input, shape index: {}]
  %s2 = inlined_call_operand.vmem [shape: f32[256,1], index: 2, kind: input, shape index: {}]
  %s3 = inlined_call_operand.vmem [shape: f32[24,128], index: 3, kind: input, shape index: {}]
  %s4 = inlined_call_operand.vmem [shape: f32[24,1], index: 4, kind: input, shape index: {}]
  %s5 = inlined_call_operand.vmem [shape: f32[24,1], index: 5, kind: input, shape index: {}]
  %s6 = inlined_call_operand.vmem [shape: f32[1,128], index: 6, kind: input, shape index: {}]
  %s7 = inlined_call_operand.vmem [shape: f32[24,128], index: 7, kind: output, shape index: {}]
  %s8 = sld [smem:[#allocation0]]
  $region69: #{sgat_forward.7} parent=0
    _
  %s10 = ssub.s32 1, %s8
  %s11 = scalar_select 0, %s10, %s8
  loop: start=0, step=1, limit=8
  $region2: #{sgat_forward.7} parent=0 // loop_pre_header
    _
  $region3: #{sgat_forward.7} parent=0 // loop_header
    %s13 = sphi 0, %s17
    %p14 = scmp.ge.s32.totalorder %s13, 8
    %s20 = sphi 0, %s32
    %s21 = sphi 0, %s28
    %s22 = sphi 0, %s20
    %s23 = sphi 0, %s21
    %s24 = sphi 0, %s22
    %s25 = sphi 0, %s23
    %s35 = sphi 0, %s37
    %s38 = sphi 0, %s35
    %s39 = sphi 0, %s38
    %s55 = sphi 0, %s39
    %s61 = sphi 0, %s63
    %s64 = sphi 0, %s61
    %s65 = sphi 0, %s64
    %s81 = sphi 0, %s65
    %s87 = sphi 0, %s89
    %s90 = sphi 0, %s87
    %s91 = sphi 0, %s90
    %s107 = sphi 0, %s91
    %s113 = sphi 0, %s115
    %s116 = sphi 0, %s113
    %s117 = sphi 0, %s116
    %s133 = sphi 0, %s117
    %s139 = sphi 0, %s141
    %s142 = sphi 0, %s139
    %s143 = sphi 0, %s142
    %s159 = sphi 0, %s143
    %s165 = sphi 0, %s167
    %s168 = sphi 0, %s165
    %s169 = sphi 0, %s168
    %s185 = sphi 0, %s169
    %s189 = sphi 0, %s189
    %s191 = sphi 0, %s189
    %s192 = sphi 0, %s191
    %s206 = sphi 0, %s192
    %s212 = sphi 0, %s214
    %s215 = sphi 0, %s212
    %s216 = sphi 0, %s215
    %s232 = sphi 0, %s216
  $region4: #{sgat_forward.7} parent=0 // loop_header_branch
    %16 = sbr.rel (%p14) target = $region8
  $region5: #{sgat_forward.7} parent=0 // loop_body
    %s18 = ssub.s32 %s13, 1
    %s19 = ssub.s32 %s13, 2
    %s26 = sadd.s32 1, %s21
    %p27 = scmp.ge.s32.totalorder %s26, 2
    %s28 = scalar_select %p27, 0, %s26
    %s29 = sadd.s32 1, %s20
    %s30 = scalar_select %p27, %s29, %s20
    %p31 = scmp.ge.s32.totalorder %s30, 3
    %s32 = scalar_select %p31, 0, %s30
    %s33 = ssub.s32 %s21, %s28
    %p34 = scmp.eq.s32.totalorder %s33, 0
    %s36 = sadd.s32 %s35, 1
    %s37 = scalar_select %p34, %s35, %s36
    %p40 = pneg %p34
    %p41 = scmp.eq.s32.totalorder %s13, 5
    %p42 = por %p40, %p41
    %p43 = scmp.ne.s32.totalorder %s35, %s38
    %p44 = scmp.eq.s32.totalorder %s13, 0
    %p45 = por %p43, %p44
    %p46 = scmp.ne.s32.totalorder %s35, %s38
    %p47 = scmp.eq.s32.totalorder %s18, 5
    %p48 = por %p46, %p47
    %p49 = scmp.ne.s32.totalorder %s38, %s39
    %p50 = scmp.eq.s32.totalorder %s18, 0
    %p51 = por %p49, %p50
    %p52 = scmp.ne.s32.totalorder %s38, %s39
    %p53 = scmp.eq.s32.totalorder %s19, 5
    %p54 = por %p52, %p53
    %p56 = scmp.ne.s32.totalorder %s39, %s55
    %p57 = scmp.eq.s32.totalorder %s19, 0
    %p58 = por %p56, %p57
    %s59 = ssub.s32 %s21, %s28
    %p60 = scmp.eq.s32.totalorder %s59, 0
    %s62 = sadd.s32 %s61, 1
    %s63 = scalar_select %p60, %s61, %s62
    %p66 = pneg %p60
    %p67 = scmp.eq.s32.totalorder %s13, 5
    %p68 = por %p66, %p67
    %p69 = scmp.ne.s32.totalorder %s61, %s64
    %p70 = scmp.eq.s32.totalorder %s13, 0
    %p71 = por %p69, %p70
    %p72 = scmp.ne.s32.totalorder %s61, %s64
    %p73 = scmp.eq.s32.totalorder %s18, 5
    %p74 = por %p72, %p73
    %p75 = scmp.ne.s32.totalorder %s64, %s65
    %p76 = scmp.eq.s32.totalorder %s18, 0
    %p77 = por %p75, %p76
    %p78 = scmp.ne.s32.totalorder %s64, %s65
    %p79 = scmp.eq.s32.totalorder %s19, 5
    %p80 = por %p78, %p79
    %p82 = scmp.ne.s32.totalorder %s65, %s81
    %p83 = scmp.eq.s32.totalorder %s19, 0
    %p84 = por %p82, %p83
    %s85 = ssub.s32 %s21, %s28
    %p86 = scmp.eq.s32.totalorder %s85, 0
    %s88 = sadd.s32 %s87, 1
    %s89 = scalar_select %p86, %s87, %s88
    %p92 = pneg %p86
    %p93 = scmp.eq.s32.totalorder %s13, 5
    %p94 = por %p92, %p93
    %p95 = scmp.ne.s32.totalorder %s87, %s90
    %p96 = scmp.eq.s32.totalorder %s13, 0
    %p97 = por %p95, %p96
    %p98 = scmp.ne.s32.totalorder %s87, %s90
    %p99 = scmp.eq.s32.totalorder %s18, 5
    %p100 = por %p98, %p99
    %p101 = scmp.ne.s32.totalorder %s90, %s91
    %p102 = scmp.eq.s32.totalorder %s18, 0
    %p103 = por %p101, %p102
    %p104 = scmp.ne.s32.totalorder %s90, %s91
    %p105 = scmp.eq.s32.totalorder %s19, 5
    %p106 = por %p104, %p105
    %p108 = scmp.ne.s32.totalorder %s91, %s107
    %p109 = scmp.eq.s32.totalorder %s19, 0
    %p110 = por %p108, %p109
    %s111 = ssub.s32 %s20, %s32
    %p112 = scmp.eq.s32.totalorder %s111, 0
    %s114 = sadd.s32 %s113, 1
    %s115 = scalar_select %p112, %s113, %s114
    %p118 = pneg %p112
    %p119 = scmp.eq.s32.totalorder %s13, 5
    %p120 = por %p118, %p119
    %p121 = scmp.ne.s32.totalorder %s113, %s116
    %p122 = scmp.eq.s32.totalorder %s13, 0
    %p123 = por %p121, %p122
    %p124 = scmp.ne.s32.totalorder %s113, %s116
    %p125 = scmp.eq.s32.totalorder %s18, 5
    %p126 = por %p124, %p125
    %p127 = scmp.ne.s32.totalorder %s116, %s117
    %p128 = scmp.eq.s32.totalorder %s18, 0
    %p129 = por %p127, %p128
    %p130 = scmp.ne.s32.totalorder %s116, %s117
    %p131 = scmp.eq.s32.totalorder %s19, 5
    %p132 = por %p130, %p131
    %p134 = scmp.ne.s32.totalorder %s117, %s133
    %p135 = scmp.eq.s32.totalorder %s19, 0
    %p136 = por %p134, %p135
    %s137 = ssub.s32 %s20, %s32
    %p138 = scmp.eq.s32.totalorder %s137, 0
    %s140 = sadd.s32 %s139, 1
    %s141 = scalar_select %p138, %s139, %s140
    %p144 = pneg %p138
    %p145 = scmp.eq.s32.totalorder %s13, 5
    %p146 = por %p144, %p145
    %p147 = scmp.ne.s32.totalorder %s139, %s142
    %p148 = scmp.eq.s32.totalorder %s13, 0
    %p149 = por %p147, %p148
    %p150 = scmp.ne.s32.totalorder %s139, %s142
    %p151 = scmp.eq.s32.totalorder %s18, 5
    %p152 = por %p150, %p151
    %p153 = scmp.ne.s32.totalorder %s142, %s143
    %p154 = scmp.eq.s32.totalorder %s18, 0
    %p155 = por %p153, %p154
    %p156 = scmp.ne.s32.totalorder %s142, %s143
    %p157 = scmp.eq.s32.totalorder %s19, 5
    %p158 = por %p156, %p157
    %p160 = scmp.ne.s32.totalorder %s143, %s159
    %p161 = scmp.eq.s32.totalorder %s19, 0
    %p162 = por %p160, %p161
    %s163 = ssub.s32 %s20, %s32
    %p164 = scmp.eq.s32.totalorder %s163, 0
    %s166 = sadd.s32 %s165, 1
    %s167 = scalar_select %p164, %s165, %s166
    %p170 = pneg %p164
    %p171 = scmp.eq.s32.totalorder %s13, 5
    %p172 = por %p170, %p171
    %p173 = scmp.ne.s32.totalorder %s165, %s168
    %p174 = scmp.eq.s32.totalorder %s13, 0
    %p175 = por %p173, %p174
    %p176 = scmp.ne.s32.totalorder %s165, %s168
    %p177 = scmp.eq.s32.totalorder %s18, 5
    %p178 = por %p176, %p177
    %p179 = scmp.ne.s32.totalorder %s168, %s169
    %p180 = scmp.eq.s32.totalorder %s18, 0
    %p181 = por %p179, %p180
    %p182 = scmp.ne.s32.totalorder %s168, %s169
    %p183 = scmp.eq.s32.totalorder %s19, 5
    %p184 = por %p182, %p183
    %p186 = scmp.ne.s32.totalorder %s169, %s185
    %p187 = scmp.eq.s32.totalorder %s19, 0
    %p188 = por %p186, %p187
    %s190 = sadd.s32 %s189, 1
    %p193 = scmp.eq.s32.totalorder %s13, 5
    %p194 = scmp.ne.s32.totalorder %s189, %s191
    %p195 = scmp.eq.s32.totalorder %s13, 0
    %p196 = por %p194, %p195
    %p197 = scmp.ne.s32.totalorder %s189, %s191
    %p198 = scmp.eq.s32.totalorder %s18, 5
    %p199 = por %p197, %p198
    %p200 = scmp.ne.s32.totalorder %s191, %s192
    %p201 = scmp.eq.s32.totalorder %s18, 0
    %p202 = por %p200, %p201
    %p203 = scmp.ne.s32.totalorder %s191, %s192
    %p204 = scmp.eq.s32.totalorder %s19, 5
    %p205 = por %p203, %p204
    %p207 = scmp.ne.s32.totalorder %s192, %s206
    %p208 = scmp.eq.s32.totalorder %s19, 0
    %p209 = por %p207, %p208
    %s210 = ssub.s32 %s20, %s32
    %p211 = scmp.eq.s32.totalorder %s210, 0
    %s213 = sadd.s32 %s212, 1
    %s214 = scalar_select %p211, %s212, %s213
    %p217 = pneg %p211
    %p218 = scmp.eq.s32.totalorder %s13, 5
    %p219 = por %p217, %p218
    %p220 = scmp.ne.s32.totalorder %s212, %s215
    %p221 = scmp.eq.s32.totalorder %s13, 0
    %p222 = por %p220, %p221
    %p223 = scmp.ne.s32.totalorder %s212, %s215
    %p224 = scmp.eq.s32.totalorder %s18, 5
    %p225 = por %p223, %p224
    %p226 = scmp.ne.s32.totalorder %s215, %s216
    %p227 = scmp.eq.s32.totalorder %s18, 0
    %p228 = por %p226, %p227
    %p229 = scmp.ne.s32.totalorder %s215, %s216
    %p230 = scmp.eq.s32.totalorder %s19, 5
    %p231 = por %p229, %p230
    %p233 = scmp.ne.s32.totalorder %s216, %s232
    %p234 = scmp.eq.s32.totalorder %s19, 0
    %p235 = por %p233, %p234
    %p236 = scmp.le.s32.totalorder 1, %s13
    %p237 = scmp.lt.s32.totalorder %s13, 7
    %p238 = pnand %p236, %p237
    %p239 = pneg %p238
    // Predicated region
    $region9: #{sgat_forward.7} parent=5 // pred_check
      _
    $region10: #{sgat_forward.7} parent=5 // pred_check_branch
      %241 = sbr.rel (%p238) target = $region12
    $region11: #{sgat_forward.7} parent=5 // pred_region
      %s242 = ssub.s32 %s13, 1
      // Predicated region
      $region13: #{sgat_forward.7} parent=11 // pred_check
        %p243 = pneg %p202
      $region14: #{sgat_forward.7} parent=11 // pred_check_branch
        %245 = sbr.rel (%p243) target = $region16
      $region15: #{sgat_forward.7} parent=11 // pred_region
        _
      $region16: #{sgat_forward.7} parent=11 // pred_fallthru
        _
    $region12: #{sgat_forward.7} parent=5 // pred_fallthru
      _
    %p246 = scmp.lt.s32.totalorder %s13, 6
    // Predicated region
    $region17: #{sgat_forward.7} parent=5 // pred_check
      %p247 = pneg %p246
    $region18: #{sgat_forward.7} parent=5 // pred_check_branch
      %249 = sbr.rel (%p247) target = $region20
    $region19: #{sgat_forward.7} parent=5 // pred_region
      // Predicated region
      $region21: #{sgat_forward.7} parent=19 // pred_check
        %p250 = pneg %p45
      $region22: #{sgat_forward.7} parent=19 // pred_check_branch
        %252 = sbr.rel (%p250) target = $region24
      $region23: #{sgat_forward.7} parent=19 // pred_region
        %p253 = scmp.lt.s32.totalorder %s21, 1
        %s254 = scalar_select %p253, %s21, 1
        %s255 = scalar_lea.vmem %s0, %s254
      $region24: #{sgat_forward.7} parent=19 // pred_fallthru
        _
      // Predicated region
      $region25: #{sgat_forward.7} parent=19 // pred_check
        %p256 = pneg %p71
      $region26: #{sgat_forward.7} parent=19 // pred_check_branch
        %258 = sbr.rel (%p256) target = $region28
      $region27: #{sgat_forward.7} parent=19 // pred_region
        %s259 = smul.u32 16, %s21
        %p260 = scmp.lt.s32.totalorder %s259, 31
        %s261 = scalar_select %p260, %s259, 31
        %s262 = smul.addr %s261, 8
        %s263 = scalar_lea.vmem %s1, %s262
        %s264 = smul.u32 16, %s21
      $region28: #{sgat_forward.7} parent=19 // pred_fallthru
        _
      // Predicated region
      $region29: #{sgat_forward.7} parent=19 // pred_check
        %p265 = pneg %p97
      $region30: #{sgat_forward.7} parent=19 // pred_check_branch
        %267 = sbr.rel (%p265) target = $region32
      $region31: #{sgat_forward.7} parent=19 // pred_region
        %s268 = smul.u32 16, %s21
        %p269 = scmp.lt.s32.totalorder %s268, 31
        %s270 = scalar_select %p269, %s268, 31
        %s271 = smul.addr %s270, 8
        %s272 = scalar_lea.vmem %s2, %s271
        %s273 = smul.u32 16, %s21
      $region32: #{sgat_forward.7} parent=19 // pred_fallthru
        _
      // Predicated region
      $region33: #{sgat_forward.7} parent=19 // pred_check
        %p274 = pneg %p123
      $region34: #{sgat_forward.7} parent=19 // pred_check_branch
        %276 = sbr.rel (%p274) target = $region36
      $region35: #{sgat_forward.7} parent=19 // pred_region
        %p277 = scmp.lt.s32.totalorder %s20, 2
        %s278 = scalar_select %p277, %s20, 2
        %s279 = smul.addr %s278, 8
        %s280 = scalar_lea.vmem %s3, %s279
      $region36: #{sgat_forward.7} parent=19 // pred_fallthru
        _
      // Predicated region
      $region37: #{sgat_forward.7} parent=19 // pred_check
        %p281 = pneg %p149
      $region38: #{sgat_forward.7} parent=19 // pred_check_branch
        %283 = sbr.rel (%p281) target = $region40
      $region39: #{sgat_forward.7} parent=19 // pred_region
        %p284 = scmp.lt.s32.totalorder %s20, 2
        %s285 = scalar_select %p284, %s20, 2
        %s286 = smul.addr %s285, 8
        %s287 = scalar_lea.vmem %s4, %s286
      $region40: #{sgat_forward.7} parent=19 // pred_fallthru
        _
      // Predicated region
      $region41: #{sgat_forward.7} parent=19 // pred_check
        %p288 = pneg %p175
      $region42: #{sgat_forward.7} parent=19 // pred_check_branch
        %290 = sbr.rel (%p288) target = $region44
      $region43: #{sgat_forward.7} parent=19 // pred_region
        %p291 = scmp.lt.s32.totalorder %s20, 2
        %s292 = scalar_select %p291, %s20, 2
        %s293 = smul.addr %s292, 8
        %s294 = scalar_lea.vmem %s5, %s293
      $region44: #{sgat_forward.7} parent=19 // pred_fallthru
        _
    $region20: #{sgat_forward.7} parent=5 // pred_fallthru
      _
    %p295 = scmp.le.s32.totalorder 1, %s13
    %p296 = scmp.lt.s32.totalorder %s13, 7
    %p297 = pnand %p295, %p296
    %p298 = pneg %p297
    // Predicated region
    $region45: #{sgat_forward.7} parent=5 // pred_check
      _
    $region46: #{sgat_forward.7} parent=5 // pred_check_branch
      %300 = sbr.rel (%p297) target = $region48
    $region47: #{sgat_forward.7} parent=5 // pred_region
      %s301 = ssub.s32 %s13, 1
      %p302 = scmp.lt.s32.totalorder %s23, 1
      %s303 = scalar_select %p302, %s23, 1
      %s304 = scalar_lea.vmem %s0, %s303
      %p305 = pneg %p51
      %p306 = pneg %p48
      %s307 = smul.u32 16, %s23
      %p308 = scmp.lt.s32.totalorder %s307, 31
      %s309 = scalar_select %p308, %s307, 31
      %s310 = smul.addr %s309, 8
      %s311 = scalar_lea.vmem %s1, %s310
      %p312 = pneg %p77
      %p313 = pneg %p74
      %s314 = smul.u32 16, %s23
      %p315 = scmp.lt.s32.totalorder %s314, 31
      %s316 = scalar_select %p315, %s314, 31
      %s317 = smul.addr %s316, 8
      %s318 = scalar_lea.vmem %s2, %s317
      %p319 = pneg %p103
      %p320 = pneg %p100
      %p321 = scmp.lt.s32.totalorder %s22, 2
      %s322 = scalar_select %p321, %s22, 2
      %s323 = smul.addr %s322, 8
      %s324 = scalar_lea.vmem %s3, %s323
      %p325 = pneg %p129
      %p326 = pneg %p126
      %p327 = scmp.lt.s32.totalorder %s22, 2
      %s328 = scalar_select %p327, %s22, 2
      %s329 = smul.addr %s328, 8
      %s330 = scalar_lea.vmem %s4, %s329
      %p331 = pneg %p155
      %p332 = pneg %p152
      %p333 = scmp.lt.s32.totalorder %s22, 2
      %s334 = scalar_select %p333, %s22, 2
      %s335 = smul.addr %s334, 8
      %s336 = scalar_lea.vmem %s5, %s335
      %p337 = pneg %p181
      %p338 = pneg %p178
      %p339 = pneg %p202
      %p340 = pneg %p199
      %p341 = pneg %p228
      %p342 = pneg %p225
      %p343 = scmp.lt.s32.totalorder %s22, 2
      %s344 = scalar_select %p343, %s22, 2
      %s345 = smul.addr %s344, 8
      %s346 = scalar_lea.vmem %s7, %s345
      %p347 = scmp.lt.s32.totalorder %s23, 1
      %s348 = scalar_select %p347, %s23, 1
      %s349 = scalar_lea.vmem %s0, %s348
      %s350 = smul.u32 16, %s23
      %p351 = scmp.lt.s32.totalorder %s350, 31
      %s352 = scalar_select %p351, %s350, 31
      %s353 = smul.addr %s352, 8
      %s354 = scalar_lea.vmem %s1, %s353
      %s355 = smul.u32 16, %s23
      %s356 = smul.u32 16, %s23
      %p357 = scmp.lt.s32.totalorder %s356, 31
      %s358 = scalar_select %p357, %s356, 31
      %s359 = smul.addr %s358, 8
      %s360 = scalar_lea.vmem %s2, %s359
      %s361 = smul.u32 16, %s23
      %p362 = scmp.lt.s32.totalorder %s22, 2
      %s363 = scalar_select %p362, %s22, 2
      %s364 = smul.addr %s363, 8
      %s365 = scalar_lea.vmem %s3, %s364
      %p366 = scmp.lt.s32.totalorder %s22, 2
      %s367 = scalar_select %p366, %s22, 2
      %s368 = smul.addr %s367, 8
      %s369 = scalar_lea.vmem %s4, %s368
      %p370 = scmp.lt.s32.totalorder %s22, 2
      %s371 = scalar_select %p370, %s22, 2
      %s372 = smul.addr %s371, 8
      %s373 = scalar_lea.vmem %s5, %s372
      %p374 = scmp.lt.s32.totalorder %s22, 2
      %s375 = scalar_select %p374, %s22, 2
      %s376 = smul.addr %s375, 8
      %s377 = scalar_lea.vmem %s7, %s376
      %p378 = scmp.eq.s32.totalorder %s23, 0
      // Predicated region
      $region49: #{sgat_forward.7} parent=47 // pred_check
        %p379 = pneg %p378
      $region50: #{sgat_forward.7} parent=47 // pred_check_branch
        %381 = sbr.rel (%p379) target = $region52
      $region51: #{sgat_forward.7} parent=47 // pred_region
        %382 = vst [vmem:[#allocation2] sm:$0xff] 0.0
      $region52: #{sgat_forward.7} parent=47 // pred_fallthru
        _
      %s383 = smul.u32 %s22, 8
      %v384 = vlaneseq
      %v385 = vshrl.u32 %v384, 7
      %v386 = vstv %s383
      %v387 = vadd.s32 %v386, %v385
      %v388 = vld [vmem:[%s349] sm:$0x1]
      %v389 = vlaneseq
      %v390 = vshrl.u32 %v389, 7
      %v391 = vsub.s32 0, %v390
      %v392 = vrot.slane %v388, %v391
      %vm393 = vcmp.eq.s32.totalorder %v387, %v392
      %v394 = vsel %vm393, 1, 0
      %v395 = vcvt.s32.f32 %v394
      %v396 = vld [vmem:[%s360] sm:$0xff]
      %v397 = vld [vmem:[%s360 + $0x8] sm:$0xff]
      %v398 = vld [vmem:[%s360 + $0x10] sm:$0xff]
      %v399 = vld [vmem:[%s360 + $0x18] sm:$0xff]
      %v400 = vld [vmem:[%s360 + $0x20] sm:$0xff]
      %v401 = vld [vmem:[%s360 + $0x28] sm:$0xff]
      %v402 = vld [vmem:[%s360 + $0x30] sm:$0xff]
      %v403 = vld [vmem:[%s360 + $0x38] sm:$0xff]
      %v404 = vld [vmem:[%s360 + $0x40] sm:$0xff]
      %v405 = vld [vmem:[%s360 + $0x48] sm:$0xff]
      %v406 = vld [vmem:[%s360 + $0x50] sm:$0xff]
      %v407 = vld [vmem:[%s360 + $0x58] sm:$0xff]
      %v408 = vld [vmem:[%s360 + $0x60] sm:$0xff]
      %v409 = vld [vmem:[%s360 + $0x68] sm:$0xff]
      %v410 = vld [vmem:[%s360 + $0x70] sm:$0xff]
      %v411 = vld [vmem:[%s360 + $0x78] sm:$0xff]
      %v412 = vld [vmem:[%s354] sm:$0xff]
      %v413 = vld [vmem:[%s354 + $0x8] sm:$0xff]
      %v414 = vld [vmem:[%s354 + $0x10] sm:$0xff]
      %v415 = vld [vmem:[%s354 + $0x18] sm:$0xff]
      %v416 = vld [vmem:[%s354 + $0x20] sm:$0xff]
      %v417 = vld [vmem:[%s354 + $0x28] sm:$0xff]
      %v418 = vld [vmem:[%s354 + $0x30] sm:$0xff]
      %v419 = vld [vmem:[%s354 + $0x38] sm:$0xff]
      %v420 = vld [vmem:[%s354 + $0x40] sm:$0xff]
      %v421 = vld [vmem:[%s354 + $0x48] sm:$0xff]
      %v422 = vld [vmem:[%s354 + $0x50] sm:$0xff]
      %v423 = vld [vmem:[%s354 + $0x58] sm:$0xff]
      %v424 = vld [vmem:[%s354 + $0x60] sm:$0xff]
      %v425 = vld [vmem:[%s354 + $0x68] sm:$0xff]
      %v426 = vld [vmem:[%s354 + $0x70] sm:$0xff]
      %v427 = vld [vmem:[%s354 + $0x78] sm:$0xff]
      %429 = vset.pattern.permute.xlu0 0
      %430 = vperm.xlu0 %429, %v396
      %v431 = vpop.permute.xlu0 %430
      %434 = vset.pattern.permute.xlu0 0
      %435 = vperm.xlu0 %434, %v397
      %v436 = vpop.permute.xlu0 %435
      %439 = vset.pattern.permute.xlu0 0
      %440 = vperm.xlu0 %439, %v398
      %v441 = vpop.permute.xlu0 %440
      %444 = vset.pattern.permute.xlu0 0
      %445 = vperm.xlu0 %444, %v399
      %v446 = vpop.permute.xlu0 %445
      %449 = vset.pattern.permute.xlu0 0
      %450 = vperm.xlu0 %449, %v400
      %v451 = vpop.permute.xlu0 %450
      %454 = vset.pattern.permute.xlu0 0
      %455 = vperm.xlu0 %454, %v401
      %v456 = vpop.permute.xlu0 %455
      %459 = vset.pattern.permute.xlu0 0
      %460 = vperm.xlu0 %459, %v402
      %v461 = vpop.permute.xlu0 %460
      %464 = vset.pattern.permute.xlu0 0
      %465 = vperm.xlu0 %464, %v403
      %v466 = vpop.permute.xlu0 %465
      %469 = vset.pattern.permute.xlu0 0
      %470 = vperm.xlu0 %469, %v404
      %v471 = vpop.permute.xlu0 %470
      %474 = vset.pattern.permute.xlu0 0
      %475 = vperm.xlu0 %474, %v405
      %v476 = vpop.permute.xlu0 %475
      %479 = vset.pattern.permute.xlu0 0
      %480 = vperm.xlu0 %479, %v406
      %v481 = vpop.permute.xlu0 %480
      %484 = vset.pattern.permute.xlu0 0
      %485 = vperm.xlu0 %484, %v407
      %v486 = vpop.permute.xlu0 %485
      %489 = vset.pattern.permute.xlu0 0
      %490 = vperm.xlu0 %489, %v408
      %v491 = vpop.permute.xlu0 %490
      %494 = vset.pattern.permute.xlu0 0
      %495 = vperm.xlu0 %494, %v409
      %v496 = vpop.permute.xlu0 %495
      %499 = vset.pattern.permute.xlu0 0
      %500 = vperm.xlu0 %499, %v410
      %v501 = vpop.permute.xlu0 %500
      %504 = vset.pattern.permute.xlu0 0
      %505 = vperm.xlu0 %504, %v411
      %v506 = vpop.permute.xlu0 %505
      %v508 = vmul.f32 %v431, %v412
      %v509 = vmul.f32 %v436, %v413
      %v510 = vmul.f32 %v441, %v414
      %v511 = vmul.f32 %v446, %v415
      %v512 = vmul.f32 %v451, %v416
      %v513 = vmul.f32 %v456, %v417
      %v514 = vmul.f32 %v461, %v418
      %v515 = vmul.f32 %v466, %v419
      %v516 = vmul.f32 %v471, %v420
      %v517 = vmul.f32 %v476, %v421
      %v518 = vmul.f32 %v481, %v422
      %v519 = vmul.f32 %v486, %v423
      %v520 = vmul.f32 %v491, %v424
      %v521 = vmul.f32 %v496, %v425
      %v522 = vmul.f32 %v501, %v426
      %v523 = vmul.f32 %v506, %v427
      %v524 = vld [vmem:[#allocation2] sm:$0xff]
      %525 = vmatprep.subr.mxu0 0.0
      %526 = vmatpush1.msra.mxu0 %v523
      %527 = vmatprep.subr.mxu0 0.0
      %528 = vmatpush1.msra.mxu0 %v522
      %529 = vmatprep.subr.mxu0 0.0
      %530 = vmatpush1.msra.mxu0 %v521
      %531 = vmatprep.subr.mxu0 0.0
      %532 = vmatpush1.msra.mxu0 %v520
      %533 = vmatprep.subr.mxu0 0.0
      %534 = vmatpush1.msra.mxu0 %v519
      %535 = vmatprep.subr.mxu0 0.0
      %536 = vmatpush1.msra.mxu0 %v518
      %537 = vmatprep.subr.mxu0 0.0
      %538 = vmatpush1.msra.mxu0 %v517
      %539 = vmatprep.subr.mxu0 0.0
      %540 = vmatpush1.msra.mxu0 %v516
      %541 = vmatprep.subr.mxu0 0.0
      %542 = vmatpush1.msra.mxu0 %v515
      %543 = vmatprep.subr.mxu0 0.0
      %544 = vmatpush1.msra.mxu0 %v514
      %545 = vmatprep.subr.mxu0 0.0
      %546 = vmatpush1.msra.mxu0 %v513
      %547 = vmatprep.subr.mxu0 0.0
      %548 = vmatpush1.msra.mxu0 %v512
      %549 = vmatprep.subr.mxu0 0.0
      %550 = vmatpush1.msra.mxu0 %v511
      %551 = vmatprep.subr.mxu0 0.0
      %552 = vmatpush1.msra.mxu0 %v510
      %553 = vmatprep.subr.mxu0 0.0
      %554 = vmatpush1.msra.mxu0 %v509
      %555 = vmatprep.subr.mxu0 0.0
      %556 = vmatpush1.msra.mxu0 %v508
      %557 = vmatprep.subr.mxu0 0.0
      %558 = vmatpush2.msra.mxu0 0.0
      %559 = vmatprep.subr.mxu0 0.0
      %560 = vmatpush2.msra.mxu0 0.0
      %561 = vmatprep.subr.mxu0 0.0
      %562 = vmatpush2.msra.mxu0 0.0
      %563 = vmatprep.subr.mxu0 0.0
      %564 = vmatpush2.msra.mxu0 0.0
      %565 = vmatprep.subr.mxu0 0.0
      %566 = vmatpush2.msra.mxu0 0.0
      %567 = vmatprep.subr.mxu0 0.0
      %568 = vmatpush2.msra.mxu0 0.0
      %569 = vmatprep.subr.mxu0 0.0
      %570 = vmatpush2.msra.mxu0 0.0
      %571 = vmatprep.subr.mxu0 0.0
      %572 = vmatpush2.msra.mxu0 0.0
      %573 = vmatprep.subr.mxu0 0.0
      %574 = vmatpush2.msra.mxu0 0.0
      %575 = vmatprep.subr.mxu0 0.0
      %576 = vmatpush2.msra.mxu0 0.0
      %577 = vmatprep.subr.mxu0 0.0
      %578 = vmatpush2.msra.mxu0 0.0
      %579 = vmatprep.subr.mxu0 0.0
      %580 = vmatpush2.msra.mxu0 0.0
      %581 = vmatprep.subr.mxu0 0.0
      %582 = vmatpush2.msra.mxu0 0.0
      %583 = vmatprep.subr.mxu0 0.0
      %584 = vmatpush2.msra.mxu0 0.0
      %585 = vmatprep.subr.mxu0 0.0
      %586 = vmatpush2.msra.mxu0 0.0
      %587 = vmatprep.subr.mxu0 0.0
      %588 = vmatpush2.msra.mxu0 0.0
      %589 = vmatprep.mubr.f32.mxu0 0.0
      %590 = vmatmul.mubr.f32.gmra.mxu0 %v395
      %v591 = vpop.f32.mrf.mxu0
      %v592 = vadd.f32 0.0, %v591
      %v593 = vpop.f32.mrf.mxu0
      %594 = vdwg.mxu0
      %v595 = vadd.f32 %v524, %v592
      %596 = vst [vmem:[#allocation2] sm:$0xff] %v595
      %p597 = scmp.eq.s32.totalorder %s23, 1
      // Predicated region
      $region53: #{sgat_forward.7} parent=47 // pred_check
        %p598 = pneg %p597
      $region54: #{sgat_forward.7} parent=47 // pred_check_branch
        %600 = sbr.rel (%p598) target = $region56
      $region55: #{sgat_forward.7} parent=47 // pred_region
        %v601 = vld [vmem:[#allocation2] sm:$0xff]
        %v602 = vld [vmem:[%s369] sm:$0xff]
        %v603 = vld [vmem:[%s365] sm:$0xff]
        %605 = vset.pattern.permute.xlu0 0
        %606 = vperm.xlu0 %605, %v602
        %v607 = vpop.permute.xlu0 %606
        %v609 = vmul.f32 %v607, %v603
        %v610 = vadd.f32 %v601, %v609
        %v611 = vld [vmem:[%s373] sm:$0xff]
        %613 = vset.pattern.permute.xlu0 0
        %614 = vperm.xlu0 %613, %v611
        %v615 = vpop.permute.xlu0 %614
        %v617 = vmul.f32 %v610, %v615
        %v618 = vld [vmem:[%s6] sm:$0x1]
        %v620 = vlaneseq
        %v621 = vshrl.u32 %v620, 7
        %v622 = vsub.s32 0, %v621
        %v623 = vrot.slane %v618, %v622
        %v625 = vadd.f32 %v617, %v623
        %v626 = vmax.f32 %v625, 0.0
        %627 = vst [vmem:[%s377] sm:$0xff] %v626
      $region56: #{sgat_forward.7} parent=47 // pred_fallthru
        _
      %p628 = scmp.lt.s32.totalorder %s22, 2
      %s629 = scalar_select %p628, %s22, 2
      %s630 = smul.addr %s629, 8
      %s631 = scalar_lea.vmem %s7, %s630
      // Predicated region
      $region57: #{sgat_forward.7} parent=47 // pred_check
        %p632 = pneg %p225
      $region58: #{sgat_forward.7} parent=47 // pred_check_branch
        %634 = sbr.rel (%p632) target = $region60
      $region59: #{sgat_forward.7} parent=47 // pred_region
        _
      $region60: #{sgat_forward.7} parent=47 // pred_fallthru
        _
    $region48: #{sgat_forward.7} parent=5 // pred_fallthru
      _
    %p635 = scmp.le.s32.totalorder 2, %s13
    // Predicated region
    $region61: #{sgat_forward.7} parent=5 // pred_check
      %p636 = pneg %p635
    $region62: #{sgat_forward.7} parent=5 // pred_check_branch
      %638 = sbr.rel (%p636) target = $region64
    $region63: #{sgat_forward.7} parent=5 // pred_region
      %s639 = ssub.s32 %s13, 2
      // Predicated region
      $region65: #{sgat_forward.7} parent=63 // pred_check
        %p640 = pneg %p231
      $region66: #{sgat_forward.7} parent=63 // pred_check_branch
        %642 = sbr.rel (%p640) target = $region68
      $region67: #{sgat_forward.7} parent=63 // pred_region
        %p643 = scmp.lt.s32.totalorder %s24, 2
        %s644 = scalar_select %p643, %s24, 2
        %s645 = smul.addr %s644, 8
        %s646 = scalar_lea.vmem %s7, %s645
      $region68: #{sgat_forward.7} parent=63 // pred_fallthru
        _
    $region64: #{sgat_forward.7} parent=5 // pred_fallthru
      _
  $region6: #{sgat_forward.7} parent=0 // loop_footer
    %s17 = sadd.s32 1, %s13
  $region7: #{sgat_forward.7} parent=0 // loop_footer_branch
    %12 = sbr.rel target = $region3
  $region8: #{sgat_forward.7} parent=0 // loop_exit
    _

// kernel: sgat_forward.9
$region0: #{sgat_forward.9}
  #allocation0 [shape = 'u32[]', space=smem, size = 0x4, offset = 0x4, fixed_abs, tag = 'smem constant byte address 0x4 - core index']
  #allocation1 [shape = 'u32[144,128]{1,0:T(1,128)}', space=vmem, size = 0x12000, scoped, tag = 'internal scratch']
  %s0 = inlined_call_operand.vmem [shape: f32[8,128], index: 0, kind: input, shape index: {}]
  %s1 = inlined_call_operand.vmem [shape: f32[128,256], index: 1, kind: input, shape index: {}]
  %s2 = inlined_call_operand.vmem [shape: f32[8,256], index: 2, kind: output, shape index: {}]
  %s3 = sld [smem:[#allocation0]]
  $region18: #{sgat_forward.9} parent=0
    _
  %s5 = ssub.s32 1, %s3
  %s6 = scalar_select 0, %s5, %s3
  // Predicated region
  $region2: #{sgat_forward.9} parent=0 // pred_check
    _
  $region3: #{sgat_forward.9} parent=0 // pred_check_branch
    %8 = sbr.rel (0) target = $region5
  $region4: #{sgat_forward.9} parent=0 // pred_region
    _
  $region5: #{sgat_forward.9} parent=0 // pred_fallthru
    _
  // Predicated region
  $region6: #{sgat_forward.9} parent=0 // pred_check
    _
  $region7: #{sgat_forward.9} parent=0 // pred_check_branch
    %10 = sbr.rel (0) target = $region9
  $region8: #{sgat_forward.9} parent=0 // pred_region
    _
  $region9: #{sgat_forward.9} parent=0 // pred_fallthru
    _
  %v11 = vld [vmem:[%s0] sm:$0xff]
  %v12 = vld [vmem:[%s1] sm:$0xff]
  %v13 = vld [vmem:[%s1 + $0x8] sm:$0xff]
  %v14 = vld [vmem:[%s1 + $0x10] sm:$0xff]
  %v15 = vld [vmem:[%s1 + $0x18] sm:$0xff]
  %v16 = vld [vmem:[%s1 + $0x20] sm:$0xff]
  %v17 = vld [vmem:[%s1 + $0x28] sm:$0xff]
  %v18 = vld [vmem:[%s1 + $0x30] sm:$0xff]
  %v19 = vld [vmem:[%s1 + $0x38] sm:$0xff]
  %v20 = vld [vmem:[%s1 + $0x40] sm:$0xff]
  %v21 = vld [vmem:[%s1 + $0x48] sm:$0xff]
  %v22 = vld [vmem:[%s1 + $0x50] sm:$0xff]
  %v23 = vld [vmem:[%s1 + $0x58] sm:$0xff]
  %v24 = vld [vmem:[%s1 + $0x60] sm:$0xff]
  %v25 = vld [vmem:[%s1 + $0x68] sm:$0xff]
  %v26 = vld [vmem:[%s1 + $0x70] sm:$0xff]
  %v27 = vld [vmem:[%s1 + $0x78] sm:$0xff]
  %v28 = vld [vmem:[%s1 + $0x80] sm:$0xff]
  %v29 = vld [vmem:[%s1 + $0x88] sm:$0xff]
  %v30 = vld [vmem:[%s1 + $0x90] sm:$0xff]
  %v31 = vld [vmem:[%s1 + $0x98] sm:$0xff]
  %v32 = vld [vmem:[%s1 + $0xa0] sm:$0xff]
  %v33 = vld [vmem:[%s1 + $0xa8] sm:$0xff]
  %v34 = vld [vmem:[%s1 + $0xb0] sm:$0xff]
  %v35 = vld [vmem:[%s1 + $0xb8] sm:$0xff]
  %v36 = vld [vmem:[%s1 + $0xc0] sm:$0xff]
  %v37 = vld [vmem:[%s1 + $0xc8] sm:$0xff]
  %v38 = vld [vmem:[%s1 + $0xd0] sm:$0xff]
  %v39 = vld [vmem:[%s1 + $0xd8] sm:$0xff]
  %v40 = vld [vmem:[%s1 + $0xe0] sm:$0xff]
  %v41 = vld [vmem:[%s1 + $0xe8] sm:$0xff]
  %v42 = vld [vmem:[%s1 + $0xf0] sm:$0xff]
  %v43 = vld [vmem:[%s1 + $0xf8] sm:$0xff]
  %44 = vmatprep.subr.mxu0 %v43
  %45 = vmatpush1.msra.mxu0 %v42
  %46 = vmatprep.subr.mxu0 %v41
  %47 = vmatpush1.msra.mxu0 %v40
  %48 = vmatprep.subr.mxu0 %v39
  %49 = vmatpush1.msra.mxu0 %v38
  %50 = vmatprep.subr.mxu0 %v37
  %51 = vmatpush1.msra.mxu0 %v36
  %52 = vmatprep.subr.mxu0 %v35
  %53 = vmatpush1.msra.mxu0 %v34
  %54 = vmatprep.subr.mxu0 %v33
  %55 = vmatpush1.msra.mxu0 %v32
  %56 = vmatprep.subr.mxu0 %v31
  %57 = vmatpush1.msra.mxu0 %v30
  %58 = vmatprep.subr.mxu0 %v29
  %59 = vmatpush1.msra.mxu0 %v28
  %60 = vmatprep.subr.mxu0 %v27
  %61 = vmatpush1.msra.mxu0 %v26
  %62 = vmatprep.subr.mxu0 %v25
  %63 = vmatpush1.msra.mxu0 %v24
  %64 = vmatprep.subr.mxu0 %v23
  %65 = vmatpush1.msra.mxu0 %v22
  %66 = vmatprep.subr.mxu0 %v21
  %67 = vmatpush1.msra.mxu0 %v20
  %68 = vmatprep.subr.mxu0 %v19
  %69 = vmatpush1.msra.mxu0 %v18
  %70 = vmatprep.subr.mxu0 %v17
  %71 = vmatpush1.msra.mxu0 %v16
  %72 = vmatprep.subr.mxu0 %v15
  %73 = vmatpush1.msra.mxu0 %v14
  %74 = vmatprep.subr.mxu0 %v13
  %75 = vmatpush1.msra.mxu0 %v12
  %76 = vmatprep.subr.mxu0 0.0
  %77 = vmatpush2.msra.mxu0 0.0
  %78 = vmatprep.subr.mxu0 0.0
  %79 = vmatpush2.msra.mxu0 0.0
  %80 = vmatprep.subr.mxu0 0.0
  %81 = vmatpush2.msra.mxu0 0.0
  %82 = vmatprep.subr.mxu0 0.0
  %83 = vmatpush2.msra.mxu0 0.0
  %84 = vmatprep.subr.mxu0 0.0
  %85 = vmatpush2.msra.mxu0 0.0
  %86 = vmatprep.subr.mxu0 0.0
  %87 = vmatpush2.msra.mxu0 0.0
  %88 = vmatprep.subr.mxu0 0.0
  %89 = vmatpush2.msra.mxu0 0.0
  %90 = vmatprep.subr.mxu0 0.0
  %91 = vmatpush2.msra.mxu0 0.0
  %92 = vmatprep.subr.mxu0 0.0
  %93 = vmatpush2.msra.mxu0 0.0
  %94 = vmatprep.subr.mxu0 0.0
  %95 = vmatpush2.msra.mxu0 0.0
  %96 = vmatprep.subr.mxu0 0.0
  %97 = vmatpush2.msra.mxu0 0.0
  %98 = vmatprep.subr.mxu0 0.0
  %99 = vmatpush2.msra.mxu0 0.0
  %100 = vmatprep.subr.mxu0 0.0
  %101 = vmatpush2.msra.mxu0 0.0
  %102 = vmatprep.subr.mxu0 0.0
  %103 = vmatpush2.msra.mxu0 0.0
  %104 = vmatprep.subr.mxu0 0.0
  %105 = vmatpush2.msra.mxu0 0.0
  %106 = vmatprep.subr.mxu0 0.0
  %107 = vmatpush2.msra.mxu0 0.0
  %108 = vmatprep.mubr.f32.mxu0 0.0
  %109 = vmatmul.mubr.f32.gmra.mxu0 %v11
  %v110 = vpop.f32.mrf.mxu0
  %v111 = vadd.f32 0.0, %v110
  %v112 = vpop.f32.mrf.mxu0
  %v113 = vadd.f32 0.0, %v112
  %114 = vdwg.mxu0
  %115 = vst [vmem:[%s2] sm:$0xff] %v111
  %116 = vst [vmem:[%s2 + $0x8] sm:$0xff] %v113
  // Predicated region
  $region10: #{sgat_forward.9} parent=0 // pred_check
    _
  $region11: #{sgat_forward.9} parent=0 // pred_check_branch
    %118 = sbr.rel (0) target = $region13
  $region12: #{sgat_forward.9} parent=0 // pred_region
    _
  $region13: #{sgat_forward.9} parent=0 // pred_fallthru
    _
  // Predicated region
  $region14: #{sgat_forward.9} parent=0 // pred_check
    _
  $region15: #{sgat_forward.9} parent=0 // pred_check_branch
    %120 = sbr.rel (0) target = $region17
  $region16: #{sgat_forward.9} parent=0 // pred_region
    _
  $region17: #{sgat_forward.9} parent=0 // pred_fallthru
    _

// kernel: sgat_forward.8
$region0: #{sgat_forward.8}
  #allocation0 [shape = 'u32[]', space=smem, size = 0x4, offset = 0x4, fixed_abs, tag = 'smem constant byte address 0x4 - core index']
  #allocation1 [shape = 'u32[144,128]{1,0:T(1,128)}', space=vmem, size = 0x12000, scoped, tag = 'internal scratch']
  #allocation2 [shape = 'f32[8,128]{1,0:T(8,128)}', space=vmem, size = 0x1000, scoped, tag = 'scratch operand']
  %s0 = inlined_call_operand.vmem [shape: s32[24,1], index: 0, kind: input, shape index: {}]
  %s1 = inlined_call_operand.vmem [shape: f32[24,128], index: 1, kind: input, shape index: {}]
  %s2 = inlined_call_operand.vmem [shape: f32[8,1], index: 2, kind: input, shape index: {}]
  %s3 = inlined_call_operand.vmem [shape: f32[8,128], index: 3, kind: output, shape index: {}]
  %s4 = sld [smem:[#allocation0]]
  $region30: #{sgat_forward.8} parent=0
    _
  %s6 = ssub.s32 1, %s4
  %s7 = scalar_select 0, %s6, %s4
  // Predicated region
  $region2: #{sgat_forward.8} parent=0 // pred_check
    _
  $region3: #{sgat_forward.8} parent=0 // pred_check_branch
    %9 = sbr.rel (0) target = $region5
  $region4: #{sgat_forward.8} parent=0 // pred_region
    _
  $region5: #{sgat_forward.8} parent=0 // pred_fallthru
    _
  // Predicated region
  $region6: #{sgat_forward.8} parent=0 // pred_check
    _
  $region7: #{sgat_forward.8} parent=0 // pred_check_branch
    %11 = sbr.rel (0) target = $region9
  $region8: #{sgat_forward.8} parent=0 // pred_region
    _
  $region9: #{sgat_forward.8} parent=0 // pred_fallthru
    _
  // Predicated region
  $region10: #{sgat_forward.8} parent=0 // pred_check
    _
  $region11: #{sgat_forward.8} parent=0 // pred_check_branch
    %13 = sbr.rel (0) target = $region13
  $region12: #{sgat_forward.8} parent=0 // pred_region
    _
  $region13: #{sgat_forward.8} parent=0 // pred_fallthru
    _
  %p14 = scmp.eq.s32.totalorder 0, 0
  // Predicated region
  $region14: #{sgat_forward.8} parent=0 // pred_check
    %p15 = pneg %p14
  $region15: #{sgat_forward.8} parent=0 // pred_check_branch
    %17 = sbr.rel (%p15) target = $region17
  $region16: #{sgat_forward.8} parent=0 // pred_region
    %18 = vst [vmem:[#allocation2] sm:$0xff] -3e+38
  $region17: #{sgat_forward.8} parent=0 // pred_fallthru
    _
  %v19 = vld [vmem:[%s1] sm:$0xff]
  %v20 = vld [vmem:[%s1 + $0x8] sm:$0xff]
  %v21 = vld [vmem:[%s1 + $0x10] sm:$0xff]
  %v22 = vld [vmem:[%s0] sm:$0xff]
  %v23 = vld [vmem:[%s0 + $0x8] sm:$0xff]
  %v24 = vld [vmem:[%s0 + $0x10] sm:$0xff]
  %s25 = smul.u32 0, 8
  %v26 = vstv %s25
  %vm27 = vcmp.eq.s32.totalorder %v22, %v26
  %vm28 = vcmp.eq.s32.totalorder %v23, %v26
  %vm29 = vcmp.eq.s32.totalorder %v24, %v26
  %v30 = vsel %vm27, 1, 0
  %v31 = vsel %vm28, 1, 0
  %v32 = vsel %vm29, 1, 0
  %33 = vset.pattern.permute.xlu0 0
  %34 = vperm.xlu0 %33, %v30
  %v35 = vpop.permute.xlu0 %34
  %36 = vset.pattern.permute.xlu0 0
  %37 = vperm.xlu0 %36, %v31
  %v38 = vpop.permute.xlu0 %37
  %39 = vset.pattern.permute.xlu0 0
  %40 = vperm.xlu0 %39, %v32
  %v41 = vpop.permute.xlu0 %40
  %vm42 = vcmp.eq.s32.totalorder %v35, 1
  %vm43 = vcmp.eq.s32.totalorder %v38, 1
  %vm44 = vcmp.eq.s32.totalorder %v41, 1
  %v45 = vsel %vm42, %v19, -3e+38
  %v46 = vsel %vm43, %v20, -3e+38
  %v47 = vsel %vm44, %v21, -3e+38
  %v48 = vmax.f32 %v45, %v46
  %v49 = vmax.f32 %v48, %v47
  %v50 = vrot.slane %v49, 4
  %v51 = vmax.f32 %v49, %v50
  %v52 = vrot.slane %v51, 2
  %v53 = vmax.f32 %v51, %v52
  %v54 = vrot.slane %v53, 1
  %v55 = vmax.f32 %v53, %v54
  %v56 = vld [vmem:[#allocation2] sm:$0x1]
  %v57 = vmax.f32 %v56, %v55
  %58 = vst [vmem:[#allocation2] sm:$0x1] %v57
  %s59 = sadd.s32 %s25, 1
  %v60 = vstv %s59
  %vm61 = vcmp.eq.s32.totalorder %v22, %v60
  %vm62 = vcmp.eq.s32.totalorder %v23, %v60
  %vm63 = vcmp.eq.s32.totalorder %v24, %v60
  %v64 = vsel %vm61, 1, 0
  %v65 = vsel %vm62, 1, 0
  %v66 = vsel %vm63, 1, 0
  %67 = vset.pattern.permute.xlu0 0
  %68 = vperm.xlu0 %67, %v64
  %v69 = vpop.permute.xlu0 %68
  %70 = vset.pattern.permute.xlu0 0
  %71 = vperm.xlu0 %70, %v65
  %v72 = vpop.permute.xlu0 %71
  %73 = vset.pattern.permute.xlu0 0
  %74 = vperm.xlu0 %73, %v66
  %v75 = vpop.permute.xlu0 %74
  %vm76 = vcmp.eq.s32.totalorder %v69, 1
  %vm77 = vcmp.eq.s32.totalorder %v72, 1
  %vm78 = vcmp.eq.s32.totalorder %v75, 1
  %v79 = vsel %vm76, %v19, -3e+38
  %v80 = vsel %vm77, %v20, -3e+38
  %v81 = vsel %vm78, %v21, -3e+38
  %v82 = vmax.f32 %v79, %v80
  %v83 = vmax.f32 %v82, %v81
  %v84 = vrot.slane %v83, 4
  %v85 = vmax.f32 %v83, %v84
  %v86 = vrot.slane %v85, 2
  %v87 = vmax.f32 %v85, %v86
  %v88 = vrot.slane %v87, 1
  %v89 = vmax.f32 %v87, %v88
  %v90 = vld [vmem:[#allocation2 + $0x1] sm:$0x1]
  %v91 = vmax.f32 %v90, %v89
  %92 = vst [vmem:[#allocation2 + $0x1] sm:$0x1] %v91
  %s93 = sadd.s32 %s25, 2
  %v94 = vstv %s93
  %vm95 = vcmp.eq.s32.totalorder %v22, %v94
  %vm96 = vcmp.eq.s32.totalorder %v23, %v94
  %vm97 = vcmp.eq.s32.totalorder %v24, %v94
  %v98 = vsel %vm95, 1, 0
  %v99 = vsel %vm96, 1, 0
  %v100 = vsel %vm97, 1, 0
  %101 = vset.pattern.permute.xlu0 0
  %102 = vperm.xlu0 %101, %v98
  %v103 = vpop.permute.xlu0 %102
  %104 = vset.pattern.permute.xlu0 0
  %105 = vperm.xlu0 %104, %v99
  %v106 = vpop.permute.xlu0 %105
  %107 = vset.pattern.permute.xlu0 0
  %108 = vperm.xlu0 %107, %v100
  %v109 = vpop.permute.xlu0 %108
  %vm110 = vcmp.eq.s32.totalorder %v103, 1
  %vm111 = vcmp.eq.s32.totalorder %v106, 1
  %vm112 = vcmp.eq.s32.totalorder %v109, 1
  %v113 = vsel %vm110, %v19, -3e+38
  %v114 = vsel %vm111, %v20, -3e+38
  %v115 = vsel %vm112, %v21, -3e+38
  %v116 = vmax.f32 %v113, %v114
  %v117 = vmax.f32 %v116, %v115
  %v118 = vrot.slane %v117, 4
  %v119 = vmax.f32 %v117, %v118
  %v120 = vrot.slane %v119, 2
  %v121 = vmax.f32 %v119, %v120
  %v122 = vrot.slane %v121, 1
  %v123 = vmax.f32 %v121, %v122
  %v124 = vld [vmem:[#allocation2 + $0x2] sm:$0x1]
  %v125 = vmax.f32 %v124, %v123
  %126 = vst [vmem:[#allocation2 + $0x2] sm:$0x1] %v125
  %s127 = sadd.s32 %s25, 3
  %v128 = vstv %s127
  %vm129 = vcmp.eq.s32.totalorder %v22, %v128
  %vm130 = vcmp.eq.s32.totalorder %v23, %v128
  %vm131 = vcmp.eq.s32.totalorder %v24, %v128
  %v132 = vsel %vm129, 1, 0
  %v133 = vsel %vm130, 1, 0
  %v134 = vsel %vm131, 1, 0
  %135 = vset.pattern.permute.xlu0 0
  %136 = vperm.xlu0 %135, %v132
  %v137 = vpop.permute.xlu0 %136
  %138 = vset.pattern.permute.xlu0 0
  %139 = vperm.xlu0 %138, %v133
  %v140 = vpop.permute.xlu0 %139
  %141 = vset.pattern.permute.xlu0 0
  %142 = vperm.xlu0 %141, %v134
  %v143 = vpop.permute.xlu0 %142
  %vm144 = vcmp.eq.s32.totalorder %v137, 1
  %vm145 = vcmp.eq.s32.totalorder %v140, 1
  %vm146 = vcmp.eq.s32.totalorder %v143, 1
  %v147 = vsel %vm144, %v19, -3e+38
  %v148 = vsel %vm145, %v20, -3e+38
  %v149 = vsel %vm146, %v21, -3e+38
  %v150 = vmax.f32 %v147, %v148
  %v151 = vmax.f32 %v150, %v149
  %v152 = vrot.slane %v151, 4
  %v153 = vmax.f32 %v151, %v152
  %v154 = vrot.slane %v153, 2
  %v155 = vmax.f32 %v153, %v154
  %v156 = vrot.slane %v155, 1
  %v157 = vmax.f32 %v155, %v156
  %v158 = vld [vmem:[#allocation2 + $0x3] sm:$0x1]
  %v159 = vmax.f32 %v158, %v157
  %160 = vst [vmem:[#allocation2 + $0x3] sm:$0x1] %v159
  %s161 = sadd.s32 %s25, 4
  %v162 = vstv %s161
  %vm163 = vcmp.eq.s32.totalorder %v22, %v162
  %vm164 = vcmp.eq.s32.totalorder %v23, %v162
  %vm165 = vcmp.eq.s32.totalorder %v24, %v162
  %v166 = vsel %vm163, 1, 0
  %v167 = vsel %vm164, 1, 0
  %v168 = vsel %vm165, 1, 0
  %169 = vset.pattern.permute.xlu0 0
  %170 = vperm.xlu0 %169, %v166
  %v171 = vpop.permute.xlu0 %170
  %172 = vset.pattern.permute.xlu0 0
  %173 = vperm.xlu0 %172, %v167
  %v174 = vpop.permute.xlu0 %173
  %175 = vset.pattern.permute.xlu0 0
  %176 = vperm.xlu0 %175, %v168
  %v177 = vpop.permute.xlu0 %176
  %vm178 = vcmp.eq.s32.totalorder %v171, 1
  %vm179 = vcmp.eq.s32.totalorder %v174, 1
  %vm180 = vcmp.eq.s32.totalorder %v177, 1
  %v181 = vsel %vm178, %v19, -3e+38
  %v182 = vsel %vm179, %v20, -3e+38
  %v183 = vsel %vm180, %v21, -3e+38
  %v184 = vmax.f32 %v181, %v182
  %v185 = vmax.f32 %v184, %v183
  %v186 = vrot.slane %v185, 4
  %v187 = vmax.f32 %v185, %v186
  %v188 = vrot.slane %v187, 2
  %v189 = vmax.f32 %v187, %v188
  %v190 = vrot.slane %v189, 1
  %v191 = vmax.f32 %v189, %v190
  %v192 = vld [vmem:[#allocation2 + $0x4] sm:$0x1]
  %v193 = vmax.f32 %v192, %v191
  %194 = vst [vmem:[#allocation2 + $0x4] sm:$0x1] %v193
  %s195 = sadd.s32 %s25, 5
  %v196 = vstv %s195
  %vm197 = vcmp.eq.s32.totalorder %v22, %v196
  %vm198 = vcmp.eq.s32.totalorder %v23, %v196
  %vm199 = vcmp.eq.s32.totalorder %v24, %v196
  %v200 = vsel %vm197, 1, 0
  %v201 = vsel %vm198, 1, 0
  %v202 = vsel %vm199, 1, 0
  %203 = vset.pattern.permute.xlu0 0
  %204 = vperm.xlu0 %203, %v200
  %v205 = vpop.permute.xlu0 %204
  %206 = vset.pattern.permute.xlu0 0
  %207 = vperm.xlu0 %206, %v201
  %v208 = vpop.permute.xlu0 %207
  %209 = vset.pattern.permute.xlu0 0
  %210 = vperm.xlu0 %209, %v202
  %v211 = vpop.permute.xlu0 %210
  %vm212 = vcmp.eq.s32.totalorder %v205, 1
  %vm213 = vcmp.eq.s32.totalorder %v208, 1
  %vm214 = vcmp.eq.s32.totalorder %v211, 1
  %v215 = vsel %vm212, %v19, -3e+38
  %v216 = vsel %vm213, %v20, -3e+38
  %v217 = vsel %vm214, %v21, -3e+38
  %v218 = vmax.f32 %v215, %v216
  %v219 = vmax.f32 %v218, %v217
  %v220 = vrot.slane %v219, 4
  %v221 = vmax.f32 %v219, %v220
  %v222 = vrot.slane %v221, 2
  %v223 = vmax.f32 %v221, %v222
  %v224 = vrot.slane %v223, 1
  %v225 = vmax.f32 %v223, %v224
  %v226 = vld [vmem:[#allocation2 + $0x5] sm:$0x1]
  %v227 = vmax.f32 %v226, %v225
  %228 = vst [vmem:[#allocation2 + $0x5] sm:$0x1] %v227
  %s229 = sadd.s32 %s25, 6
  %v230 = vstv %s229
  %vm231 = vcmp.eq.s32.totalorder %v22, %v230
  %vm232 = vcmp.eq.s32.totalorder %v23, %v230
  %vm233 = vcmp.eq.s32.totalorder %v24, %v230
  %v234 = vsel %vm231, 1, 0
  %v235 = vsel %vm232, 1, 0
  %v236 = vsel %vm233, 1, 0
  %237 = vset.pattern.permute.xlu0 0
  %238 = vperm.xlu0 %237, %v234
  %v239 = vpop.permute.xlu0 %238
  %240 = vset.pattern.permute.xlu0 0
  %241 = vperm.xlu0 %240, %v235
  %v242 = vpop.permute.xlu0 %241
  %243 = vset.pattern.permute.xlu0 0
  %244 = vperm.xlu0 %243, %v236
  %v245 = vpop.permute.xlu0 %244
  %vm246 = vcmp.eq.s32.totalorder %v239, 1
  %vm247 = vcmp.eq.s32.totalorder %v242, 1
  %vm248 = vcmp.eq.s32.totalorder %v245, 1
  %v249 = vsel %vm246, %v19, -3e+38
  %v250 = vsel %vm247, %v20, -3e+38
  %v251 = vsel %vm248, %v21, -3e+38
  %v252 = vmax.f32 %v249, %v250
  %v253 = vmax.f32 %v252, %v251
  %v254 = vrot.slane %v253, 4
  %v255 = vmax.f32 %v253, %v254
  %v256 = vrot.slane %v255, 2
  %v257 = vmax.f32 %v255, %v256
  %v258 = vrot.slane %v257, 1
  %v259 = vmax.f32 %v257, %v258
  %v260 = vld [vmem:[#allocation2 + $0x6] sm:$0x1]
  %v261 = vmax.f32 %v260, %v259
  %262 = vst [vmem:[#allocation2 + $0x6] sm:$0x1] %v261
  %s263 = sadd.s32 %s25, 7
  %v264 = vstv %s263
  %vm265 = vcmp.eq.s32.totalorder %v22, %v264
  %vm266 = vcmp.eq.s32.totalorder %v23, %v264
  %vm267 = vcmp.eq.s32.totalorder %v24, %v264
  %v268 = vsel %vm265, 1, 0
  %v269 = vsel %vm266, 1, 0
  %v270 = vsel %vm267, 1, 0
  %271 = vset.pattern.permute.xlu0 0
  %272 = vperm.xlu0 %271, %v268
  %v273 = vpop.permute.xlu0 %272
  %274 = vset.pattern.permute.xlu0 0
  %275 = vperm.xlu0 %274, %v269
  %v276 = vpop.permute.xlu0 %275
  %277 = vset.pattern.permute.xlu0 0
  %278 = vperm.xlu0 %277, %v270
  %v279 = vpop.permute.xlu0 %278
  %vm280 = vcmp.eq.s32.totalorder %v273, 1
  %vm281 = vcmp.eq.s32.totalorder %v276, 1
  %vm282 = vcmp.eq.s32.totalorder %v279, 1
  %v283 = vsel %vm280, %v19, -3e+38
  %v284 = vsel %vm281, %v20, -3e+38
  %v285 = vsel %vm282, %v21, -3e+38
  %v286 = vmax.f32 %v283, %v284
  %v287 = vmax.f32 %v286, %v285
  %v288 = vrot.slane %v287, 4
  %v289 = vmax.f32 %v287, %v288
  %v290 = vrot.slane %v289, 2
  %v291 = vmax.f32 %v289, %v290
  %v292 = vrot.slane %v291, 1
  %v293 = vmax.f32 %v291, %v292
  %v294 = vld [vmem:[#allocation2 + $0x7] sm:$0x1]
  %v295 = vmax.f32 %v294, %v293
  %296 = vst [vmem:[#allocation2 + $0x7] sm:$0x1] %v295
  // Predicated region
  $region18: #{sgat_forward.8} parent=0 // pred_check
    %p297 = pneg %p14
  $region19: #{sgat_forward.8} parent=0 // pred_check_branch
    %299 = sbr.rel (%p297) target = $region21
  $region20: #{sgat_forward.8} parent=0 // pred_region
    %v300 = vld [vmem:[%s2] sm:$0xff]
    %vm301 = vcmp.gt.f32.partialorder %v300, 0.0
    %v302 = vld [vmem:[#allocation2] sm:$0xff]
    %v303 = vsel %vm301, 1, 0
    %304 = vset.pattern.permute.xlu0 0
    %305 = vperm.xlu0 %304, %v303
    %v306 = vpop.permute.xlu0 %305
    %vm307 = vcmp.eq.s32.totalorder %v306, 1
    %v308 = vsel %vm307, %v302, 0.0
    %309 = vst [vmem:[%s3] sm:$0xff] %v308
  $region21: #{sgat_forward.8} parent=0 // pred_fallthru
    _
  // Predicated region
  $region22: #{sgat_forward.8} parent=0 // pred_check
    _
  $region23: #{sgat_forward.8} parent=0 // pred_check_branch
    %311 = sbr.rel (0) target = $region25
  $region24: #{sgat_forward.8} parent=0 // pred_region
    _
  $region25: #{sgat_forward.8} parent=0 // pred_fallthru
    _
  // Predicated region
  $region26: #{sgat_forward.8} parent=0 // pred_check
    _
  $region27: #{sgat_forward.8} parent=0 // pred_check_branch
    %313 = sbr.rel (0) target = $region29
  $region28: #{sgat_forward.8} parent=0 // pred_region
    _
  $region29: #{sgat_forward.8} parent=0 // pred_fallthru
    _

// kernel: sgat_forward.10
$region0: #{sgat_forward.10}
  #allocation0 [shape = 'u32[]', space=smem, size = 0x4, offset = 0x4, fixed_abs, tag = 'smem constant byte address 0x4 - core index']
  #allocation1 [shape = 'u32[144,128]{1,0:T(1,128)}', space=vmem, size = 0x12000, scoped, tag = 'internal scratch']
  #allocation2 [shape = 'f32[8,128]{1,0:T(8,128)}', space=vmem, size = 0x1000, scoped, tag = 'scratch operand']
  %s0 = inlined_call_operand.vmem [shape: s32[1,256], index: 0, kind: input, shape index: {}]
  %s1 = inlined_call_operand.vmem [shape: f32[256,128], index: 1, kind: input, shape index: {}]
  %s2 = inlined_call_operand.vmem [shape: f32[256,1], index: 2, kind: input, shape index: {}]
  %s3 = inlined_call_operand.vmem [shape: f32[8,128], index: 3, kind: input, shape index: {}]
  %s4 = inlined_call_operand.vmem [shape: f32[8,1], index: 4, kind: input, shape index: {}]
  %s5 = inlined_call_operand.vmem [shape: f32[8,1], index: 5, kind: input, shape index: {}]
  %s6 = inlined_call_operand.vmem [shape: f32[1,128], index: 6, kind: input, shape index: {}]
  %s7 = inlined_call_operand.vmem [shape: f32[8,128], index: 7, kind: output, shape index: {}]
  %s8 = sld [smem:[#allocation0]]
  $region69: #{sgat_forward.10} parent=0
    _
  %s10 = ssub.s32 1, %s8
  %s11 = scalar_select 0, %s10, %s8
  loop: start=0, step=1, limit=4
  $region2: #{sgat_forward.10} parent=0 // loop_pre_header
    _
  $region3: #{sgat_forward.10} parent=0 // loop_header
    %s13 = sphi 0, %s17
    %p14 = scmp.ge.s32.totalorder %s13, 4
    %s20 = sphi 0, %s32
    %s21 = sphi 0, %s28
    %s22 = sphi 0, %s20
    %s23 = sphi 0, %s21
    %s24 = sphi 0, %s22
    %s25 = sphi 0, %s23
    %s35 = sphi 0, %s37
    %s38 = sphi 0, %s35
    %s39 = sphi 0, %s38
    %s55 = sphi 0, %s39
    %s61 = sphi 0, %s63
    %s64 = sphi 0, %s61
    %s65 = sphi 0, %s64
    %s81 = sphi 0, %s65
    %s87 = sphi 0, %s89
    %s90 = sphi 0, %s87
    %s91 = sphi 0, %s90
    %s107 = sphi 0, %s91
    %s113 = sphi 0, %s115
    %s116 = sphi 0, %s113
    %s117 = sphi 0, %s116
    %s133 = sphi 0, %s117
    %s139 = sphi 0, %s141
    %s142 = sphi 0, %s139
    %s143 = sphi 0, %s142
    %s159 = sphi 0, %s143
    %s165 = sphi 0, %s167
    %s168 = sphi 0, %s165
    %s169 = sphi 0, %s168
    %s185 = sphi 0, %s169
    %s189 = sphi 0, %s189
    %s191 = sphi 0, %s189
    %s192 = sphi 0, %s191
    %s206 = sphi 0, %s192
    %s212 = sphi 0, %s214
    %s215 = sphi 0, %s212
    %s216 = sphi 0, %s215
    %s232 = sphi 0, %s216
  $region4: #{sgat_forward.10} parent=0 // loop_header_branch
    %16 = sbr.rel (%p14) target = $region8
  $region5: #{sgat_forward.10} parent=0 // loop_body
    %s18 = ssub.s32 %s13, 1
    %s19 = ssub.s32 %s13, 2
    %s26 = sadd.s32 1, %s21
    %p27 = scmp.ge.s32.totalorder %s26, 2
    %s28 = scalar_select %p27, 0, %s26
    %s29 = sadd.s32 1, %s20
    %s30 = scalar_select %p27, %s29, %s20
    %p31 = scmp.ge.s32.totalorder %s30, 1
    %s32 = scalar_select %p31, 0, %s30
    %s33 = ssub.s32 %s21, %s28
    %p34 = scmp.eq.s32.totalorder %s33, 0
    %s36 = sadd.s32 %s35, 1
    %s37 = scalar_select %p34, %s35, %s36
    %p40 = pneg %p34
    %p41 = scmp.eq.s32.totalorder %s13, 1
    %p42 = por %p40, %p41
    %p43 = scmp.ne.s32.totalorder %s35, %s38
    %p44 = scmp.eq.s32.totalorder %s13, 0
    %p45 = por %p43, %p44
    %p46 = scmp.ne.s32.totalorder %s35, %s38
    %p47 = scmp.eq.s32.totalorder %s18, 1
    %p48 = por %p46, %p47
    %p49 = scmp.ne.s32.totalorder %s38, %s39
    %p50 = scmp.eq.s32.totalorder %s18, 0
    %p51 = por %p49, %p50
    %p52 = scmp.ne.s32.totalorder %s38, %s39
    %p53 = scmp.eq.s32.totalorder %s19, 1
    %p54 = por %p52, %p53
    %p56 = scmp.ne.s32.totalorder %s39, %s55
    %p57 = scmp.eq.s32.totalorder %s19, 0
    %p58 = por %p56, %p57
    %s59 = ssub.s32 %s21, %s28
    %p60 = scmp.eq.s32.totalorder %s59, 0
    %s62 = sadd.s32 %s61, 1
    %s63 = scalar_select %p60, %s61, %s62
    %p66 = pneg %p60
    %p67 = scmp.eq.s32.totalorder %s13, 1
    %p68 = por %p66, %p67
    %p69 = scmp.ne.s32.totalorder %s61, %s64
    %p70 = scmp.eq.s32.totalorder %s13, 0
    %p71 = por %p69, %p70
    %p72 = scmp.ne.s32.totalorder %s61, %s64
    %p73 = scmp.eq.s32.totalorder %s18, 1
    %p74 = por %p72, %p73
    %p75 = scmp.ne.s32.totalorder %s64, %s65
    %p76 = scmp.eq.s32.totalorder %s18, 0
    %p77 = por %p75, %p76
    %p78 = scmp.ne.s32.totalorder %s64, %s65
    %p79 = scmp.eq.s32.totalorder %s19, 1
    %p80 = por %p78, %p79
    %p82 = scmp.ne.s32.totalorder %s65, %s81
    %p83 = scmp.eq.s32.totalorder %s19, 0
    %p84 = por %p82, %p83
    %s85 = ssub.s32 %s21, %s28
    %p86 = scmp.eq.s32.totalorder %s85, 0
    %s88 = sadd.s32 %s87, 1
    %s89 = scalar_select %p86, %s87, %s88
    %p92 = pneg %p86
    %p93 = scmp.eq.s32.totalorder %s13, 1
    %p94 = por %p92, %p93
    %p95 = scmp.ne.s32.totalorder %s87, %s90
    %p96 = scmp.eq.s32.totalorder %s13, 0
    %p97 = por %p95, %p96
    %p98 = scmp.ne.s32.totalorder %s87, %s90
    %p99 = scmp.eq.s32.totalorder %s18, 1
    %p100 = por %p98, %p99
    %p101 = scmp.ne.s32.totalorder %s90, %s91
    %p102 = scmp.eq.s32.totalorder %s18, 0
    %p103 = por %p101, %p102
    %p104 = scmp.ne.s32.totalorder %s90, %s91
    %p105 = scmp.eq.s32.totalorder %s19, 1
    %p106 = por %p104, %p105
    %p108 = scmp.ne.s32.totalorder %s91, %s107
    %p109 = scmp.eq.s32.totalorder %s19, 0
    %p110 = por %p108, %p109
    %s111 = ssub.s32 %s20, %s32
    %p112 = scmp.eq.s32.totalorder %s111, 0
    %s114 = sadd.s32 %s113, 1
    %s115 = scalar_select %p112, %s113, %s114
    %p118 = pneg %p112
    %p119 = scmp.eq.s32.totalorder %s13, 1
    %p120 = por %p118, %p119
    %p121 = scmp.ne.s32.totalorder %s113, %s116
    %p122 = scmp.eq.s32.totalorder %s13, 0
    %p123 = por %p121, %p122
    %p124 = scmp.ne.s32.totalorder %s113, %s116
    %p125 = scmp.eq.s32.totalorder %s18, 1
    %p126 = por %p124, %p125
    %p127 = scmp.ne.s32.totalorder %s116, %s117
    %p128 = scmp.eq.s32.totalorder %s18, 0
    %p129 = por %p127, %p128
    %p130 = scmp.ne.s32.totalorder %s116, %s117
    %p131 = scmp.eq.s32.totalorder %s19, 1
    %p132 = por %p130, %p131
    %p134 = scmp.ne.s32.totalorder %s117, %s133
    %p135 = scmp.eq.s32.totalorder %s19, 0
    %p136 = por %p134, %p135
    %s137 = ssub.s32 %s20, %s32
    %p138 = scmp.eq.s32.totalorder %s137, 0
    %s140 = sadd.s32 %s139, 1
    %s141 = scalar_select %p138, %s139, %s140
    %p144 = pneg %p138
    %p145 = scmp.eq.s32.totalorder %s13, 1
    %p146 = por %p144, %p145
    %p147 = scmp.ne.s32.totalorder %s139, %s142
    %p148 = scmp.eq.s32.totalorder %s13, 0
    %p149 = por %p147, %p148
    %p150 = scmp.ne.s32.totalorder %s139, %s142
    %p151 = scmp.eq.s32.totalorder %s18, 1
    %p152 = por %p150, %p151
    %p153 = scmp.ne.s32.totalorder %s142, %s143
    %p154 = scmp.eq.s32.totalorder %s18, 0
    %p155 = por %p153, %p154
    %p156 = scmp.ne.s32.totalorder %s142, %s143
    %p157 = scmp.eq.s32.totalorder %s19, 1
    %p158 = por %p156, %p157
    %p160 = scmp.ne.s32.totalorder %s143, %s159
    %p161 = scmp.eq.s32.totalorder %s19, 0
    %p162 = por %p160, %p161
    %s163 = ssub.s32 %s20, %s32
    %p164 = scmp.eq.s32.totalorder %s163, 0
    %s166 = sadd.s32 %s165, 1
    %s167 = scalar_select %p164, %s165, %s166
    %p170 = pneg %p164
    %p171 = scmp.eq.s32.totalorder %s13, 1
    %p172 = por %p170, %p171
    %p173 = scmp.ne.s32.totalorder %s165, %s168
    %p174 = scmp.eq.s32.totalorder %s13, 0
    %p175 = por %p173, %p174
    %p176 = scmp.ne.s32.totalorder %s165, %s168
    %p177 = scmp.eq.s32.totalorder %s18, 1
    %p178 = por %p176, %p177
    %p179 = scmp.ne.s32.totalorder %s168, %s169
    %p180 = scmp.eq.s32.totalorder %s18, 0
    %p181 = por %p179, %p180
    %p182 = scmp.ne.s32.totalorder %s168, %s169
    %p183 = scmp.eq.s32.totalorder %s19, 1
    %p184 = por %p182, %p183
    %p186 = scmp.ne.s32.totalorder %s169, %s185
    %p187 = scmp.eq.s32.totalorder %s19, 0
    %p188 = por %p186, %p187
    %s190 = sadd.s32 %s189, 1
    %p193 = scmp.eq.s32.totalorder %s13, 1
    %p194 = scmp.ne.s32.totalorder %s189, %s191
    %p195 = scmp.eq.s32.totalorder %s13, 0
    %p196 = por %p194, %p195
    %p197 = scmp.ne.s32.totalorder %s189, %s191
    %p198 = scmp.eq.s32.totalorder %s18, 1
    %p199 = por %p197, %p198
    %p200 = scmp.ne.s32.totalorder %s191, %s192
    %p201 = scmp.eq.s32.totalorder %s18, 0
    %p202 = por %p200, %p201
    %p203 = scmp.ne.s32.totalorder %s191, %s192
    %p204 = scmp.eq.s32.totalorder %s19, 1
    %p205 = por %p203, %p204
    %p207 = scmp.ne.s32.totalorder %s192, %s206
    %p208 = scmp.eq.s32.totalorder %s19, 0
    %p209 = por %p207, %p208
    %s210 = ssub.s32 %s20, %s32
    %p211 = scmp.eq.s32.totalorder %s210, 0
    %s213 = sadd.s32 %s212, 1
    %s214 = scalar_select %p211, %s212, %s213
    %p217 = pneg %p211
    %p218 = scmp.eq.s32.totalorder %s13, 1
    %p219 = por %p217, %p218
    %p220 = scmp.ne.s32.totalorder %s212, %s215
    %p221 = scmp.eq.s32.totalorder %s13, 0
    %p222 = por %p220, %p221
    %p223 = scmp.ne.s32.totalorder %s212, %s215
    %p224 = scmp.eq.s32.totalorder %s18, 1
    %p225 = por %p223, %p224
    %p226 = scmp.ne.s32.totalorder %s215, %s216
    %p227 = scmp.eq.s32.totalorder %s18, 0
    %p228 = por %p226, %p227
    %p229 = scmp.ne.s32.totalorder %s215, %s216
    %p230 = scmp.eq.s32.totalorder %s19, 1
    %p231 = por %p229, %p230
    %p233 = scmp.ne.s32.totalorder %s216, %s232
    %p234 = scmp.eq.s32.totalorder %s19, 0
    %p235 = por %p233, %p234
    %p236 = scmp.le.s32.totalorder 1, %s13
    %p237 = scmp.lt.s32.totalorder %s13, 3
    %p238 = pnand %p236, %p237
    %p239 = pneg %p238
    // Predicated region
    $region9: #{sgat_forward.10} parent=5 // pred_check
      _
    $region10: #{sgat_forward.10} parent=5 // pred_check_branch
      %241 = sbr.rel (%p238) target = $region12
    $region11: #{sgat_forward.10} parent=5 // pred_region
      %s242 = ssub.s32 %s13, 1
      // Predicated region
      $region13: #{sgat_forward.10} parent=11 // pred_check
        %p243 = pneg %p129
      $region14: #{sgat_forward.10} parent=11 // pred_check_branch
        %245 = sbr.rel (%p243) target = $region16
      $region15: #{sgat_forward.10} parent=11 // pred_region
        %p246 = scmp.lt.s32.totalorder %s22, 0
        %s247 = scalar_select %p246, %s22, 0
        %s248 = smul.addr %s247, 8
        %s249 = scalar_lea.vmem %s3, %s248
      $region16: #{sgat_forward.10} parent=11 // pred_fallthru
        _
      // Predicated region
      $region17: #{sgat_forward.10} parent=11 // pred_check
        %p250 = pneg %p155
      $region18: #{sgat_forward.10} parent=11 // pred_check_branch
        %252 = sbr.rel (%p250) target = $region20
      $region19: #{sgat_forward.10} parent=11 // pred_region
        %p253 = scmp.lt.s32.totalorder %s22, 0
        %s254 = scalar_select %p253, %s22, 0
        %s255 = smul.addr %s254, 8
        %s256 = scalar_lea.vmem %s4, %s255
      $region20: #{sgat_forward.10} parent=11 // pred_fallthru
        _
      // Predicated region
      $region21: #{sgat_forward.10} parent=11 // pred_check
        %p257 = pneg %p181
      $region22: #{sgat_forward.10} parent=11 // pred_check_branch
        %259 = sbr.rel (%p257) target = $region24
      $region23: #{sgat_forward.10} parent=11 // pred_region
        %p260 = scmp.lt.s32.totalorder %s22, 0
        %s261 = scalar_select %p260, %s22, 0
        %s262 = smul.addr %s261, 8
        %s263 = scalar_lea.vmem %s5, %s262
      $region24: #{sgat_forward.10} parent=11 // pred_fallthru
        _
      // Predicated region
      $region25: #{sgat_forward.10} parent=11 // pred_check
        %p264 = pneg %p202
      $region26: #{sgat_forward.10} parent=11 // pred_check_branch
        %266 = sbr.rel (%p264) target = $region28
      $region27: #{sgat_forward.10} parent=11 // pred_region
        _
      $region28: #{sgat_forward.10} parent=11 // pred_fallthru
        _
    $region12: #{sgat_forward.10} parent=5 // pred_fallthru
      _
    %p267 = scmp.lt.s32.totalorder %s13, 2
    // Predicated region
    $region29: #{sgat_forward.10} parent=5 // pred_check
      %p268 = pneg %p267
    $region30: #{sgat_forward.10} parent=5 // pred_check_branch
      %270 = sbr.rel (%p268) target = $region32
    $region31: #{sgat_forward.10} parent=5 // pred_region
      // Predicated region
      $region33: #{sgat_forward.10} parent=31 // pred_check
        %p271 = pneg %p45
      $region34: #{sgat_forward.10} parent=31 // pred_check_branch
        %273 = sbr.rel (%p271) target = $region36
      $region35: #{sgat_forward.10} parent=31 // pred_region
        %p274 = scmp.lt.s32.totalorder %s21, 1
        %s275 = scalar_select %p274, %s21, 1
        %s276 = scalar_lea.vmem %s0, %s275
      $region36: #{sgat_forward.10} parent=31 // pred_fallthru
        _
      // Predicated region
      $region37: #{sgat_forward.10} parent=31 // pred_check
        %p277 = pneg %p71
      $region38: #{sgat_forward.10} parent=31 // pred_check_branch
        %279 = sbr.rel (%p277) target = $region40
      $region39: #{sgat_forward.10} parent=31 // pred_region
        %s280 = smul.u32 16, %s21
        %p281 = scmp.lt.s32.totalorder %s280, 31
        %s282 = scalar_select %p281, %s280, 31
        %s283 = smul.addr %s282, 8
        %s284 = scalar_lea.vmem %s1, %s283
        %s285 = smul.u32 16, %s21
      $region40: #{sgat_forward.10} parent=31 // pred_fallthru
        _
      // Predicated region
      $region41: #{sgat_forward.10} parent=31 // pred_check
        %p286 = pneg %p97
      $region42: #{sgat_forward.10} parent=31 // pred_check_branch
        %288 = sbr.rel (%p286) target = $region44
      $region43: #{sgat_forward.10} parent=31 // pred_region
        %s289 = smul.u32 16, %s21
        %p290 = scmp.lt.s32.totalorder %s289, 31
        %s291 = scalar_select %p290, %s289, 31
        %s292 = smul.addr %s291, 8
        %s293 = scalar_lea.vmem %s2, %s292
        %s294 = smul.u32 16, %s21
      $region44: #{sgat_forward.10} parent=31 // pred_fallthru
        _
    $region32: #{sgat_forward.10} parent=5 // pred_fallthru
      _
    %p295 = scmp.le.s32.totalorder 1, %s13
    %p296 = scmp.lt.s32.totalorder %s13, 3
    %p297 = pnand %p295, %p296
    %p298 = pneg %p297
    // Predicated region
    $region45: #{sgat_forward.10} parent=5 // pred_check
      _
    $region46: #{sgat_forward.10} parent=5 // pred_check_branch
      %300 = sbr.rel (%p297) target = $region48
    $region47: #{sgat_forward.10} parent=5 // pred_region
      %s301 = ssub.s32 %s13, 1
      %p302 = scmp.lt.s32.totalorder %s23, 1
      %s303 = scalar_select %p302, %s23, 1
      %s304 = scalar_lea.vmem %s0, %s303
      %p305 = pneg %p51
      %p306 = pneg %p48
      %s307 = smul.u32 16, %s23
      %p308 = scmp.lt.s32.totalorder %s307, 31
      %s309 = scalar_select %p308, %s307, 31
      %s310 = smul.addr %s309, 8
      %s311 = scalar_lea.vmem %s1, %s310
      %p312 = pneg %p77
      %p313 = pneg %p74
      %s314 = smul.u32 16, %s23
      %p315 = scmp.lt.s32.totalorder %s314, 31
      %s316 = scalar_select %p315, %s314, 31
      %s317 = smul.addr %s316, 8
      %s318 = scalar_lea.vmem %s2, %s317
      %p319 = pneg %p103
      %p320 = pneg %p100
      %p321 = scmp.lt.s32.totalorder %s22, 0
      %s322 = scalar_select %p321, %s22, 0
      %s323 = smul.addr %s322, 8
      %s324 = scalar_lea.vmem %s3, %s323
      %p325 = pneg %p129
      %p326 = pneg %p126
      %p327 = scmp.lt.s32.totalorder %s22, 0
      %s328 = scalar_select %p327, %s22, 0
      %s329 = smul.addr %s328, 8
      %s330 = scalar_lea.vmem %s4, %s329
      %p331 = pneg %p155
      %p332 = pneg %p152
      %p333 = scmp.lt.s32.totalorder %s22, 0
      %s334 = scalar_select %p333, %s22, 0
      %s335 = smul.addr %s334, 8
      %s336 = scalar_lea.vmem %s5, %s335
      %p337 = pneg %p181
      %p338 = pneg %p178
      %p339 = pneg %p202
      %p340 = pneg %p199
      %p341 = pneg %p228
      %p342 = pneg %p225
      %p343 = scmp.lt.s32.totalorder %s22, 0
      %s344 = scalar_select %p343, %s22, 0
      %s345 = smul.addr %s344, 8
      %s346 = scalar_lea.vmem %s7, %s345
      %p347 = scmp.lt.s32.totalorder %s23, 1
      %s348 = scalar_select %p347, %s23, 1
      %s349 = scalar_lea.vmem %s0, %s348
      %s350 = smul.u32 16, %s23
      %p351 = scmp.lt.s32.totalorder %s350, 31
      %s352 = scalar_select %p351, %s350, 31
      %s353 = smul.addr %s352, 8
      %s354 = scalar_lea.vmem %s1, %s353
      %s355 = smul.u32 16, %s23
      %s356 = smul.u32 16, %s23
      %p357 = scmp.lt.s32.totalorder %s356, 31
      %s358 = scalar_select %p357, %s356, 31
      %s359 = smul.addr %s358, 8
      %s360 = scalar_lea.vmem %s2, %s359
      %s361 = smul.u32 16, %s23
      %p362 = scmp.lt.s32.totalorder %s22, 0
      %s363 = scalar_select %p362, %s22, 0
      %s364 = smul.addr %s363, 8
      %s365 = scalar_lea.vmem %s3, %s364
      %p366 = scmp.lt.s32.totalorder %s22, 0
      %s367 = scalar_select %p366, %s22, 0
      %s368 = smul.addr %s367, 8
      %s369 = scalar_lea.vmem %s4, %s368
      %p370 = scmp.lt.s32.totalorder %s22, 0
      %s371 = scalar_select %p370, %s22, 0
      %s372 = smul.addr %s371, 8
      %s373 = scalar_lea.vmem %s5, %s372
      %p374 = scmp.lt.s32.totalorder %s22, 0
      %s375 = scalar_select %p374, %s22, 0
      %s376 = smul.addr %s375, 8
      %s377 = scalar_lea.vmem %s7, %s376
      %p378 = scmp.eq.s32.totalorder %s23, 0
      // Predicated region
      $region49: #{sgat_forward.10} parent=47 // pred_check
        %p379 = pneg %p378
      $region50: #{sgat_forward.10} parent=47 // pred_check_branch
        %381 = sbr.rel (%p379) target = $region52
      $region51: #{sgat_forward.10} parent=47 // pred_region
        %382 = vst [vmem:[#allocation2] sm:$0xff] 0.0
      $region52: #{sgat_forward.10} parent=47 // pred_fallthru
        _
      %s383 = smul.u32 %s22, 8
      %v384 = vlaneseq
      %v385 = vshrl.u32 %v384, 7
      %v386 = vstv %s383
      %v387 = vadd.s32 %v386, %v385
      %v388 = vld [vmem:[%s349] sm:$0x1]
      %v389 = vlaneseq
      %v390 = vshrl.u32 %v389, 7
      %v391 = vsub.s32 0, %v390
      %v392 = vrot.slane %v388, %v391
      %vm393 = vcmp.eq.s32.totalorder %v387, %v392
      %v394 = vsel %vm393, 1, 0
      %v395 = vcvt.s32.f32 %v394
      %v396 = vld [vmem:[%s360] sm:$0xff]
      %v397 = vld [vmem:[%s360 + $0x8] sm:$0xff]
      %v398 = vld [vmem:[%s360 + $0x10] sm:$0xff]
      %v399 = vld [vmem:[%s360 + $0x18] sm:$0xff]
      %v400 = vld [vmem:[%s360 + $0x20] sm:$0xff]
      %v401 = vld [vmem:[%s360 + $0x28] sm:$0xff]
      %v402 = vld [vmem:[%s360 + $0x30] sm:$0xff]
      %v403 = vld [vmem:[%s360 + $0x38] sm:$0xff]
      %v404 = vld [vmem:[%s360 + $0x40] sm:$0xff]
      %v405 = vld [vmem:[%s360 + $0x48] sm:$0xff]
      %v406 = vld [vmem:[%s360 + $0x50] sm:$0xff]
      %v407 = vld [vmem:[%s360 + $0x58] sm:$0xff]
      %v408 = vld [vmem:[%s360 + $0x60] sm:$0xff]
      %v409 = vld [vmem:[%s360 + $0x68] sm:$0xff]
      %v410 = vld [vmem:[%s360 + $0x70] sm:$0xff]
      %v411 = vld [vmem:[%s360 + $0x78] sm:$0xff]
      %v412 = vld [vmem:[%s354] sm:$0xff]
      %v413 = vld [vmem:[%s354 + $0x8] sm:$0xff]
      %v414 = vld [vmem:[%s354 + $0x10] sm:$0xff]
      %v415 = vld [vmem:[%s354 + $0x18] sm:$0xff]
      %v416 = vld [vmem:[%s354 + $0x20] sm:$0xff]
      %v417 = vld [vmem:[%s354 + $0x28] sm:$0xff]
      %v418 = vld [vmem:[%s354 + $0x30] sm:$0xff]
      %v419 = vld [vmem:[%s354 + $0x38] sm:$0xff]
      %v420 = vld [vmem:[%s354 + $0x40] sm:$0xff]
      %v421 = vld [vmem:[%s354 + $0x48] sm:$0xff]
      %v422 = vld [vmem:[%s354 + $0x50] sm:$0xff]
      %v423 = vld [vmem:[%s354 + $0x58] sm:$0xff]
      %v424 = vld [vmem:[%s354 + $0x60] sm:$0xff]
      %v425 = vld [vmem:[%s354 + $0x68] sm:$0xff]
      %v426 = vld [vmem:[%s354 + $0x70] sm:$0xff]
      %v427 = vld [vmem:[%s354 + $0x78] sm:$0xff]
      %429 = vset.pattern.permute.xlu0 0
      %430 = vperm.xlu0 %429, %v396
      %v431 = vpop.permute.xlu0 %430
      %434 = vset.pattern.permute.xlu0 0
      %435 = vperm.xlu0 %434, %v397
      %v436 = vpop.permute.xlu0 %435
      %439 = vset.pattern.permute.xlu0 0
      %440 = vperm.xlu0 %439, %v398
      %v441 = vpop.permute.xlu0 %440
      %444 = vset.pattern.permute.xlu0 0
      %445 = vperm.xlu0 %444, %v399
      %v446 = vpop.permute.xlu0 %445
      %449 = vset.pattern.permute.xlu0 0
      %450 = vperm.xlu0 %449, %v400
      %v451 = vpop.permute.xlu0 %450
      %454 = vset.pattern.permute.xlu0 0
      %455 = vperm.xlu0 %454, %v401
      %v456 = vpop.permute.xlu0 %455
      %459 = vset.pattern.permute.xlu0 0
      %460 = vperm.xlu0 %459, %v402
      %v461 = vpop.permute.xlu0 %460
      %464 = vset.pattern.permute.xlu0 0
      %465 = vperm.xlu0 %464, %v403
      %v466 = vpop.permute.xlu0 %465
      %469 = vset.pattern.permute.xlu0 0
      %470 = vperm.xlu0 %469, %v404
      %v471 = vpop.permute.xlu0 %470
      %474 = vset.pattern.permute.xlu0 0
      %475 = vperm.xlu0 %474, %v405
      %v476 = vpop.permute.xlu0 %475
      %479 = vset.pattern.permute.xlu0 0
      %480 = vperm.xlu0 %479, %v406
      %v481 = vpop.permute.xlu0 %480
      %484 = vset.pattern.permute.xlu0 0
      %485 = vperm.xlu0 %484, %v407
      %v486 = vpop.permute.xlu0 %485
      %489 = vset.pattern.permute.xlu0 0
      %490 = vperm.xlu0 %489, %v408
      %v491 = vpop.permute.xlu0 %490
      %494 = vset.pattern.permute.xlu0 0
      %495 = vperm.xlu0 %494, %v409
      %v496 = vpop.permute.xlu0 %495
      %499 = vset.pattern.permute.xlu0 0
      %500 = vperm.xlu0 %499, %v410
      %v501 = vpop.permute.xlu0 %500
      %504 = vset.pattern.permute.xlu0 0
      %505 = vperm.xlu0 %504, %v411
      %v506 = vpop.permute.xlu0 %505
      %v508 = vmul.f32 %v431, %v412
      %v509 = vmul.f32 %v436, %v413
      %v510 = vmul.f32 %v441, %v414
      %v511 = vmul.f32 %v446, %v415
      %v512 = vmul.f32 %v451, %v416
      %v513 = vmul.f32 %v456, %v417
      %v514 = vmul.f32 %v461, %v418
      %v515 = vmul.f32 %v466, %v419
      %v516 = vmul.f32 %v471, %v420
      %v517 = vmul.f32 %v476, %v421
      %v518 = vmul.f32 %v481, %v422
      %v519 = vmul.f32 %v486, %v423
      %v520 = vmul.f32 %v491, %v424
      %v521 = vmul.f32 %v496, %v425
      %v522 = vmul.f32 %v501, %v426
      %v523 = vmul.f32 %v506, %v427
      %v524 = vld [vmem:[#allocation2] sm:$0xff]
      %525 = vmatprep.subr.mxu0 0.0
      %526 = vmatpush1.msra.mxu0 %v523
      %527 = vmatprep.subr.mxu0 0.0
      %528 = vmatpush1.msra.mxu0 %v522
      %529 = vmatprep.subr.mxu0 0.0
      %530 = vmatpush1.msra.mxu0 %v521
      %531 = vmatprep.subr.mxu0 0.0
      %532 = vmatpush1.msra.mxu0 %v520
      %533 = vmatprep.subr.mxu0 0.0
      %534 = vmatpush1.msra.mxu0 %v519
      %535 = vmatprep.subr.mxu0 0.0
      %536 = vmatpush1.msra.mxu0 %v518
      %537 = vmatprep.subr.mxu0 0.0
      %538 = vmatpush1.msra.mxu0 %v517
      %539 = vmatprep.subr.mxu0 0.0
      %540 = vmatpush1.msra.mxu0 %v516
      %541 = vmatprep.subr.mxu0 0.0
      %542 = vmatpush1.msra.mxu0 %v515
      %543 = vmatprep.subr.mxu0 0.0
      %544 = vmatpush1.msra.mxu0 %v514
      %545 = vmatprep.subr.mxu0 0.0
      %546 = vmatpush1.msra.mxu0 %v513
      %547 = vmatprep.subr.mxu0 0.0
      %548 = vmatpush1.msra.mxu0 %v512
      %549 = vmatprep.subr.mxu0 0.0
      %550 = vmatpush1.msra.mxu0 %v511
      %551 = vmatprep.subr.mxu0 0.0
      %552 = vmatpush1.msra.mxu0 %v510
      %553 = vmatprep.subr.mxu0 0.0
      %554 = vmatpush1.msra.mxu0 %v509
      %555 = vmatprep.subr.mxu0 0.0
      %556 = vmatpush1.msra.mxu0 %v508
      %557 = vmatprep.subr.mxu0 0.0
      %558 = vmatpush2.msra.mxu0 0.0
      %559 = vmatprep.subr.mxu0 0.0
      %560 = vmatpush2.msra.mxu0 0.0
      %561 = vmatprep.subr.mxu0 0.0
      %562 = vmatpush2.msra.mxu0 0.0
      %563 = vmatprep.subr.mxu0 0.0
      %564 = vmatpush2.msra.mxu0 0.0
      %565 = vmatprep.subr.mxu0 0.0
      %566 = vmatpush2.msra.mxu0 0.0
      %567 = vmatprep.subr.mxu0 0.0
      %568 = vmatpush2.msra.mxu0 0.0
      %569 = vmatprep.subr.mxu0 0.0
      %570 = vmatpush2.msra.mxu0 0.0
      %571 = vmatprep.subr.mxu0 0.0
      %572 = vmatpush2.msra.mxu0 0.0
      %573 = vmatprep.subr.mxu0 0.0
      %574 = vmatpush2.msra.mxu0 0.0
      %575 = vmatprep.subr.mxu0 0.0
      %576 = vmatpush2.msra.mxu0 0.0
      %577 = vmatprep.subr.mxu0 0.0
      %578 = vmatpush2.msra.mxu0 0.0
      %579 = vmatprep.subr.mxu0 0.0
      %580 = vmatpush2.msra.mxu0 0.0
      %581 = vmatprep.subr.mxu0 0.0
      %582 = vmatpush2.msra.mxu0 0.0
      %583 = vmatprep.subr.mxu0 0.0
      %584 = vmatpush2.msra.mxu0 0.0
      %585 = vmatprep.subr.mxu0 0.0
      %586 = vmatpush2.msra.mxu0 0.0
      %587 = vmatprep.subr.mxu0 0.0
      %588 = vmatpush2.msra.mxu0 0.0
      %589 = vmatprep.mubr.f32.mxu0 0.0
      %590 = vmatmul.mubr.f32.gmra.mxu0 %v395
      %v591 = vpop.f32.mrf.mxu0
      %v592 = vadd.f32 0.0, %v591
      %v593 = vpop.f32.mrf.mxu0
      %594 = vdwg.mxu0
      %v595 = vadd.f32 %v524, %v592
      %596 = vst [vmem:[#allocation2] sm:$0xff] %v595
      %p597 = scmp.eq.s32.totalorder %s23, 1
      // Predicated region
      $region53: #{sgat_forward.10} parent=47 // pred_check
        %p598 = pneg %p597
      $region54: #{sgat_forward.10} parent=47 // pred_check_branch
        %600 = sbr.rel (%p598) target = $region56
      $region55: #{sgat_forward.10} parent=47 // pred_region
        %v601 = vld [vmem:[#allocation2] sm:$0xff]
        %v602 = vld [vmem:[%s369] sm:$0xff]
        %v603 = vld [vmem:[%s365] sm:$0xff]
        %605 = vset.pattern.permute.xlu0 0
        %606 = vperm.xlu0 %605, %v602
        %v607 = vpop.permute.xlu0 %606
        %v609 = vmul.f32 %v607, %v603
        %v610 = vadd.f32 %v601, %v609
        %v611 = vld [vmem:[%s373] sm:$0xff]
        %613 = vset.pattern.permute.xlu0 0
        %614 = vperm.xlu0 %613, %v611
        %v615 = vpop.permute.xlu0 %614
        %v617 = vmul.f32 %v610, %v615
        %v618 = vld [vmem:[%s6] sm:$0x1]
        %v620 = vlaneseq
        %v621 = vshrl.u32 %v620, 7
        %v622 = vsub.s32 0, %v621
        %v623 = vrot.slane %v618, %v622
        %v625 = vadd.f32 %v617, %v623
        %v626 = vmax.f32 %v625, 0.0
        %627 = vst [vmem:[%s377] sm:$0xff] %v626
      $region56: #{sgat_forward.10} parent=47 // pred_fallthru
        _
      %p628 = scmp.lt.s32.totalorder %s22, 0
      %s629 = scalar_select %p628, %s22, 0
      %s630 = smul.addr %s629, 8
      %s631 = scalar_lea.vmem %s7, %s630
      // Predicated region
      $region57: #{sgat_forward.10} parent=47 // pred_check
        %p632 = pneg %p225
      $region58: #{sgat_forward.10} parent=47 // pred_check_branch
        %634 = sbr.rel (%p632) target = $region60
      $region59: #{sgat_forward.10} parent=47 // pred_region
        _
      $region60: #{sgat_forward.10} parent=47 // pred_fallthru
        _
      // Predicated region
      $region61: #{sgat_forward.10} parent=47 // pred_check
        %p635 = pneg %p225
      $region62: #{sgat_forward.10} parent=47 // pred_check_branch
        %637 = sbr.rel (%p635) target = $region64
      $region63: #{sgat_forward.10} parent=47 // pred_region
        %p638 = scmp.lt.s32.totalorder %s22, 0
        %s639 = scalar_select %p638, %s22, 0
        %s640 = smul.addr %s639, 8
        %s641 = scalar_lea.vmem %s7, %s640
      $region64: #{sgat_forward.10} parent=47 // pred_fallthru
        _
    $region48: #{sgat_forward.10} parent=5 // pred_fallthru
      _
    %p642 = scmp.le.s32.totalorder 2, %s13
    // Predicated region
    $region65: #{sgat_forward.10} parent=5 // pred_check
      %p643 = pneg %p642
    $region66: #{sgat_forward.10} parent=5 // pred_check_branch
      %645 = sbr.rel (%p643) target = $region68
    $region67: #{sgat_forward.10} parent=5 // pred_region
      %s646 = ssub.s32 %s13, 2
    $region68: #{sgat_forward.10} parent=5 // pred_fallthru
      _
  $region6: #{sgat_forward.10} parent=0 // loop_footer
    %s17 = sadd.s32 1, %s13
  $region7: #{sgat_forward.10} parent=0 // loop_footer_branch
    %12 = sbr.rel target = $region3
  $region8: #{sgat_forward.10} parent=0 // loop_exit
    _

// kernel: sgat_forward.11
$region0: #{sgat_forward.11}
  #allocation0 [shape = 'u32[]', space=smem, size = 0x4, offset = 0x4, fixed_abs, tag = 'smem constant byte address 0x4 - core index']
  #allocation1 [shape = 'u32[144,128]{1,0:T(1,128)}', space=vmem, size = 0x12000, scoped, tag = 'internal scratch']
  #allocation2 [shape = 'f32[8,128]{1,0:T(8,128)}', space=vmem, size = 0x1000, scoped, tag = 'scratch operand']
  %s0 = inlined_call_operand.vmem [shape: s32[8,1], index: 0, kind: input, shape index: {}]
  %s1 = inlined_call_operand.vmem [shape: f32[8,1], index: 1, kind: input, shape index: {}]
  %s2 = inlined_call_operand.vmem [shape: s32[1,8], index: 2, kind: input, shape index: {}]
  %s3 = inlined_call_operand.vmem [shape: f32[8,128], index: 3, kind: input, shape index: {}]
  %s4 = inlined_call_operand.vmem [shape: f32[128,128], index: 4, kind: input, shape index: {}]
  %s5 = inlined_call_operand.vmem [shape: f32[1,128], index: 5, kind: input, shape index: {}]
  %s6 = inlined_call_operand.vmem [shape: f32[128,128], index: 6, kind: input, shape index: {}]
  %s7 = inlined_call_operand.vmem [shape: f32[1,128], index: 7, kind: input, shape index: {}]
  %s8 = inlined_call_operand.vmem [shape: f32[8,128], index: 8, kind: output, shape index: {}]
  %s9 = sld [smem:[#allocation0]]
  $region42: #{sgat_forward.11} parent=0
    _
  %s11 = ssub.s32 1, %s9
  %s12 = scalar_select 0, %s11, %s9
  // Predicated region
  $region2: #{sgat_forward.11} parent=0 // pred_check
    _
  $region3: #{sgat_forward.11} parent=0 // pred_check_branch
    %14 = sbr.rel (0) target = $region5
  $region4: #{sgat_forward.11} parent=0 // pred_region
    _
  $region5: #{sgat_forward.11} parent=0 // pred_fallthru
    _
  // Predicated region
  $region6: #{sgat_forward.11} parent=0 // pred_check
    _
  $region7: #{sgat_forward.11} parent=0 // pred_check_branch
    %16 = sbr.rel (0) target = $region9
  $region8: #{sgat_forward.11} parent=0 // pred_region
    _
  $region9: #{sgat_forward.11} parent=0 // pred_fallthru
    _
  // Predicated region
  $region10: #{sgat_forward.11} parent=0 // pred_check
    _
  $region11: #{sgat_forward.11} parent=0 // pred_check_branch
    %18 = sbr.rel (0) target = $region13
  $region12: #{sgat_forward.11} parent=0 // pred_region
    _
  $region13: #{sgat_forward.11} parent=0 // pred_fallthru
    _
  // Predicated region
  $region14: #{sgat_forward.11} parent=0 // pred_check
    _
  $region15: #{sgat_forward.11} parent=0 // pred_check_branch
    %20 = sbr.rel (0) target = $region17
  $region16: #{sgat_forward.11} parent=0 // pred_region
    _
  $region17: #{sgat_forward.11} parent=0 // pred_fallthru
    _
  // Predicated region
  $region18: #{sgat_forward.11} parent=0 // pred_check
    _
  $region19: #{sgat_forward.11} parent=0 // pred_check_branch
    %22 = sbr.rel (0) target = $region21
  $region20: #{sgat_forward.11} parent=0 // pred_region
    _
  $region21: #{sgat_forward.11} parent=0 // pred_fallthru
    _
  // Predicated region
  $region22: #{sgat_forward.11} parent=0 // pred_check
    _
  $region23: #{sgat_forward.11} parent=0 // pred_check_branch
    %24 = sbr.rel (0) target = $region25
  $region24: #{sgat_forward.11} parent=0 // pred_region
    _
  $region25: #{sgat_forward.11} parent=0 // pred_fallthru
    _
  // Predicated region
  $region26: #{sgat_forward.11} parent=0 // pred_check
    _
  $region27: #{sgat_forward.11} parent=0 // pred_check_branch
    %26 = sbr.rel (0) target = $region29
  $region28: #{sgat_forward.11} parent=0 // pred_region
    _
  $region29: #{sgat_forward.11} parent=0 // pred_fallthru
    _
  // Predicated region
  $region30: #{sgat_forward.11} parent=0 // pred_check
    _
  $region31: #{sgat_forward.11} parent=0 // pred_check_branch
    %28 = sbr.rel (0) target = $region33
  $region32: #{sgat_forward.11} parent=0 // pred_region
    _
  $region33: #{sgat_forward.11} parent=0 // pred_fallthru
    _
  %v29 = vld [vmem:[%s3] sm:$0xff]
  %v30 = vld [vmem:[%s0] sm:$0xff]
  %vm31 = vcmp.eq.s32.totalorder %v30, 0
  %v32 = vsel %vm31, 1, 0
  %33 = vset.pattern.permute.xlu0 0
  %34 = vperm.xlu0 %33, %v32
  %v35 = vpop.permute.xlu0 %34
  %vm36 = vcmp.eq.s32.totalorder %v35, 1
  %v37 = vsel %vm36, %v29, -3e+38
  %v38 = vrot.slane %v37, 4
  %v39 = vmax.f32 %v37, %v38
  %v40 = vrot.slane %v39, 2
  %v41 = vmax.f32 %v39, %v40
  %v42 = vrot.slane %v41, 1
  %v43 = vmax.f32 %v41, %v42
  %44 = vst [vmem:[#allocation2] sm:$0x1] %v43
  %vm45 = vcmp.eq.s32.totalorder %v30, 1
  %v46 = vsel %vm45, 1, 0
  %47 = vset.pattern.permute.xlu0 0
  %48 = vperm.xlu0 %47, %v46
  %v49 = vpop.permute.xlu0 %48
  %vm50 = vcmp.eq.s32.totalorder %v49, 1
  %v51 = vsel %vm50, %v29, -3e+38
  %v52 = vrot.slane %v51, 4
  %v53 = vmax.f32 %v51, %v52
  %v54 = vrot.slane %v53, 2
  %v55 = vmax.f32 %v53, %v54
  %v56 = vrot.slane %v55, 1
  %v57 = vmax.f32 %v55, %v56
  %58 = vst [vmem:[#allocation2 + $0x1] sm:$0x1] %v57
  %vm59 = vcmp.eq.s32.totalorder %v30, 2
  %v60 = vsel %vm59, 1, 0
  %61 = vset.pattern.permute.xlu0 0
  %62 = vperm.xlu0 %61, %v60
  %v63 = vpop.permute.xlu0 %62
  %vm64 = vcmp.eq.s32.totalorder %v63, 1
  %v65 = vsel %vm64, %v29, -3e+38
  %v66 = vrot.slane %v65, 4
  %v67 = vmax.f32 %v65, %v66
  %v68 = vrot.slane %v67, 2
  %v69 = vmax.f32 %v67, %v68
  %v70 = vrot.slane %v69, 1
  %v71 = vmax.f32 %v69, %v70
  %72 = vst [vmem:[#allocation2 + $0x2] sm:$0x1] %v71
  %vm73 = vcmp.eq.s32.totalorder %v30, 3
  %v74 = vsel %vm73, 1, 0
  %75 = vset.pattern.permute.xlu0 0
  %76 = vperm.xlu0 %75, %v74
  %v77 = vpop.permute.xlu0 %76
  %vm78 = vcmp.eq.s32.totalorder %v77, 1
  %v79 = vsel %vm78, %v29, -3e+38
  %v80 = vrot.slane %v79, 4
  %v81 = vmax.f32 %v79, %v80
  %v82 = vrot.slane %v81, 2
  %v83 = vmax.f32 %v81, %v82
  %v84 = vrot.slane %v83, 1
  %v85 = vmax.f32 %v83, %v84
  %86 = vst [vmem:[#allocation2 + $0x3] sm:$0x1] %v85
  %vm87 = vcmp.eq.s32.totalorder %v30, 4
  %v88 = vsel %vm87, 1, 0
  %89 = vset.pattern.permute.xlu0 0
  %90 = vperm.xlu0 %89, %v88
  %v91 = vpop.permute.xlu0 %90
  %vm92 = vcmp.eq.s32.totalorder %v91, 1
  %v93 = vsel %vm92, %v29, -3e+38
  %v94 = vrot.slane %v93, 4
  %v95 = vmax.f32 %v93, %v94
  %v96 = vrot.slane %v95, 2
  %v97 = vmax.f32 %v95, %v96
  %v98 = vrot.slane %v97, 1
  %v99 = vmax.f32 %v97, %v98
  %100 = vst [vmem:[#allocation2 + $0x4] sm:$0x1] %v99
  %vm101 = vcmp.eq.s32.totalorder %v30, 5
  %v102 = vsel %vm101, 1, 0
  %103 = vset.pattern.permute.xlu0 0
  %104 = vperm.xlu0 %103, %v102
  %v105 = vpop.permute.xlu0 %104
  %vm106 = vcmp.eq.s32.totalorder %v105, 1
  %v107 = vsel %vm106, %v29, -3e+38
  %v108 = vrot.slane %v107, 4
  %v109 = vmax.f32 %v107, %v108
  %v110 = vrot.slane %v109, 2
  %v111 = vmax.f32 %v109, %v110
  %v112 = vrot.slane %v111, 1
  %v113 = vmax.f32 %v111, %v112
  %114 = vst [vmem:[#allocation2 + $0x5] sm:$0x1] %v113
  %vm115 = vcmp.eq.s32.totalorder %v30, 6
  %v116 = vsel %vm115, 1, 0
  %117 = vset.pattern.permute.xlu0 0
  %118 = vperm.xlu0 %117, %v116
  %v119 = vpop.permute.xlu0 %118
  %vm120 = vcmp.eq.s32.totalorder %v119, 1
  %v121 = vsel %vm120, %v29, -3e+38
  %v122 = vrot.slane %v121, 4
  %v123 = vmax.f32 %v121, %v122
  %v124 = vrot.slane %v123, 2
  %v125 = vmax.f32 %v123, %v124
  %v126 = vrot.slane %v125, 1
  %v127 = vmax.f32 %v125, %v126
  %128 = vst [vmem:[#allocation2 + $0x6] sm:$0x1] %v127
  %vm129 = vcmp.eq.s32.totalorder %v30, 7
  %v130 = vsel %vm129, 1, 0
  %131 = vset.pattern.permute.xlu0 0
  %132 = vperm.xlu0 %131, %v130
  %v133 = vpop.permute.xlu0 %132
  %vm134 = vcmp.eq.s32.totalorder %v133, 1
  %v135 = vsel %vm134, %v29, -3e+38
  %v136 = vrot.slane %v135, 4
  %v137 = vmax.f32 %v135, %v136
  %v138 = vrot.slane %v137, 2
  %v139 = vmax.f32 %v137, %v138
  %v140 = vrot.slane %v139, 1
  %v141 = vmax.f32 %v139, %v140
  %142 = vst [vmem:[#allocation2 + $0x7] sm:$0x1] %v141
  %v143 = vld [vmem:[%s1] sm:$0xff]
  %vm144 = vcmp.gt.f32.partialorder %v143, 0.0
  %v145 = vld [vmem:[#allocation2] sm:$0xff]
  %v146 = vsel %vm144, 1, 0
  %147 = vset.pattern.permute.xlu0 0
  %148 = vperm.xlu0 %147, %v146
  %v149 = vpop.permute.xlu0 %148
  %vm150 = vcmp.eq.s32.totalorder %v149, 1
  %v151 = vsel %vm150, %v145, 0.0
  %v152 = vlaneseq
  %v153 = vshrl.u32 %v152, 7
  %v154 = vld [vmem:[%s2] sm:$0x1]
  %v155 = vlaneseq
  %v156 = vshrl.u32 %v155, 7
  %v157 = vsub.s32 0, %v156
  %v158 = vrot.slane %v154, %v157
  %vm159 = vcmp.eq.s32.totalorder %v153, %v158
  %v160 = vsel %vm159, 1, 0
  %v161 = vcvt.s32.f32 %v160
  %vm162 = vcmask 64512
  %v163 = vsel %vm162, %v161, 0.0
  %164 = vadd.xlane.f32.xlu0 %v163
  %v165 = vpop.xlane.xlu0 %164
  %vm166 = vcmp.gt.f32.partialorder %v165, 0.0
  %v167 = vmax.f32 %v165, 1.0
  %v168 = vrcp.pop %v167
  %v169 = vmul.f32 1.0, %v168
  %v170 = vsel %vm166, %v169, 0.0
  %v171 = vmul.f32 %v161, %v170
  %v173 = vsel %vm162, %v171, 0
  %175 = vmatprep.subr.mxu0 0.0
  %176 = vmatpush1.msra.mxu0 0.0
  %177 = vmatprep.subr.mxu0 0.0
  %178 = vmatpush1.msra.mxu0 0.0
  %179 = vmatprep.subr.mxu0 0.0
  %180 = vmatpush1.msra.mxu0 0.0
  %181 = vmatprep.subr.mxu0 0.0
  %182 = vmatpush1.msra.mxu0 0.0
  %183 = vmatprep.subr.mxu0 0.0
  %184 = vmatpush1.msra.mxu0 0.0
  %185 = vmatprep.subr.mxu0 0.0
  %186 = vmatpush1.msra.mxu0 0.0
  %187 = vmatprep.subr.mxu0 0.0
  %188 = vmatpush1.msra.mxu0 0.0
  %189 = vmatprep.subr.mxu0 0.0
  %190 = vmatpush1.msra.mxu0 0.0
  %191 = vmatprep.subr.mxu0 0.0
  %192 = vmatpush1.msra.mxu0 0.0
  %193 = vmatprep.subr.mxu0 0.0
  %194 = vmatpush1.msra.mxu0 0.0
  %195 = vmatprep.subr.mxu0 0.0
  %196 = vmatpush1.msra.mxu0 0.0
  %197 = vmatprep.subr.mxu0 0.0
  %198 = vmatpush1.msra.mxu0 0.0
  %199 = vmatprep.subr.mxu0 0.0
  %200 = vmatpush1.msra.mxu0 0.0
  %201 = vmatprep.subr.mxu0 0.0
  %202 = vmatpush1.msra.mxu0 0.0
  %203 = vmatprep.subr.mxu0 0.0
  %204 = vmatpush1.msra.mxu0 0.0
  %205 = vmatprep.subr.mxu0 0.0
  %206 = vmatpush1.msra.mxu0 %v151
  %207 = vmatprep.subr.mxu0 0.0
  %208 = vmatpush2.msra.mxu0 0.0
  %209 = vmatprep.subr.mxu0 0.0
  %210 = vmatpush2.msra.mxu0 0.0
  %211 = vmatprep.subr.mxu0 0.0
  %212 = vmatpush2.msra.mxu0 0.0
  %213 = vmatprep.subr.mxu0 0.0
  %214 = vmatpush2.msra.mxu0 0.0
  %215 = vmatprep.subr.mxu0 0.0
  %216 = vmatpush2.msra.mxu0 0.0
  %217 = vmatprep.subr.mxu0 0.0
  %218 = vmatpush2.msra.mxu0 0.0
  %219 = vmatprep.subr.mxu0 0.0
  %220 = vmatpush2.msra.mxu0 0.0
  %221 = vmatprep.subr.mxu0 0.0
  %222 = vmatpush2.msra.mxu0 0.0
  %223 = vmatprep.subr.mxu0 0.0
  %224 = vmatpush2.msra.mxu0 0.0
  %225 = vmatprep.subr.mxu0 0.0
  %226 = vmatpush2.msra.mxu0 0.0
  %227 = vmatprep.subr.mxu0 0.0
  %228 = vmatpush2.msra.mxu0 0.0
  %229 = vmatprep.subr.mxu0 0.0
  %230 = vmatpush2.msra.mxu0 0.0
  %231 = vmatprep.subr.mxu0 0.0
  %232 = vmatpush2.msra.mxu0 0.0
  %233 = vmatprep.subr.mxu0 0.0
  %234 = vmatpush2.msra.mxu0 0.0
  %235 = vmatprep.subr.mxu0 0.0
  %236 = vmatpush2.msra.mxu0 0.0
  %237 = vmatprep.subr.mxu0 0.0
  %238 = vmatpush2.msra.mxu0 0.0
  %239 = vmatprep.mubr.f32.mxu0 0.0
  %240 = vmatmul.mubr.f32.gmra.mxu0 %v173
  %v241 = vpop.f32.mrf.mxu0
  %v242 = vadd.f32 0.0, %v241
  %v243 = vpop.f32.mrf.mxu0
  %244 = vdwg.mxu0
  %v245 = vld [vmem:[%s4] sm:$0xff]
  %v246 = vld [vmem:[%s4 + $0x8] sm:$0xff]
  %v247 = vld [vmem:[%s4 + $0x10] sm:$0xff]
  %v248 = vld [vmem:[%s4 + $0x18] sm:$0xff]
  %v249 = vld [vmem:[%s4 + $0x20] sm:$0xff]
  %v250 = vld [vmem:[%s4 + $0x28] sm:$0xff]
  %v251 = vld [vmem:[%s4 + $0x30] sm:$0xff]
  %v252 = vld [vmem:[%s4 + $0x38] sm:$0xff]
  %v253 = vld [vmem:[%s4 + $0x40] sm:$0xff]
  %v254 = vld [vmem:[%s4 + $0x48] sm:$0xff]
  %v255 = vld [vmem:[%s4 + $0x50] sm:$0xff]
  %v256 = vld [vmem:[%s4 + $0x58] sm:$0xff]
  %v257 = vld [vmem:[%s4 + $0x60] sm:$0xff]
  %v258 = vld [vmem:[%s4 + $0x68] sm:$0xff]
  %v259 = vld [vmem:[%s4 + $0x70] sm:$0xff]
  %v260 = vld [vmem:[%s4 + $0x78] sm:$0xff]
  %v261 = vld [vmem:[%s5] sm:$0x1]
  %v263 = vlaneseq
  %v264 = vshrl.u32 %v263, 7
  %v265 = vsub.s32 0, %v264
  %v266 = vrot.slane %v261, %v265
  %268 = vmatprep.subr.mxu0 0.0
  %269 = vmatpush1.msra.mxu0 %v260
  %270 = vmatprep.subr.mxu0 0.0
  %271 = vmatpush1.msra.mxu0 %v259
  %272 = vmatprep.subr.mxu0 0.0
  %273 = vmatpush1.msra.mxu0 %v258
  %274 = vmatprep.subr.mxu0 0.0
  %275 = vmatpush1.msra.mxu0 %v257
  %276 = vmatprep.subr.mxu0 0.0
  %277 = vmatpush1.msra.mxu0 %v256
  %278 = vmatprep.subr.mxu0 0.0
  %279 = vmatpush1.msra.mxu0 %v255
  %280 = vmatprep.subr.mxu0 0.0
  %281 = vmatpush1.msra.mxu0 %v254
  %282 = vmatprep.subr.mxu0 0.0
  %283 = vmatpush1.msra.mxu0 %v253
  %284 = vmatprep.subr.mxu0 0.0
  %285 = vmatpush1.msra.mxu0 %v252
  %286 = vmatprep.subr.mxu0 0.0
  %287 = vmatpush1.msra.mxu0 %v251
  %288 = vmatprep.subr.mxu0 0.0
  %289 = vmatpush1.msra.mxu0 %v250
  %290 = vmatprep.subr.mxu0 0.0
  %291 = vmatpush1.msra.mxu0 %v249
  %292 = vmatprep.subr.mxu0 0.0
  %293 = vmatpush1.msra.mxu0 %v248
  %294 = vmatprep.subr.mxu0 0.0
  %295 = vmatpush1.msra.mxu0 %v247
  %296 = vmatprep.subr.mxu0 0.0
  %297 = vmatpush1.msra.mxu0 %v246
  %298 = vmatprep.subr.mxu0 0.0
  %299 = vmatpush1.msra.mxu0 %v245
  %300 = vmatprep.subr.mxu0 0.0
  %301 = vmatpush2.msra.mxu0 0.0
  %302 = vmatprep.subr.mxu0 0.0
  %303 = vmatpush2.msra.mxu0 0.0
  %304 = vmatprep.subr.mxu0 0.0
  %305 = vmatpush2.msra.mxu0 0.0
  %306 = vmatprep.subr.mxu0 0.0
  %307 = vmatpush2.msra.mxu0 0.0
  %308 = vmatprep.subr.mxu0 0.0
  %309 = vmatpush2.msra.mxu0 0.0
  %310 = vmatprep.subr.mxu0 0.0
  %311 = vmatpush2.msra.mxu0 0.0
  %312 = vmatprep.subr.mxu0 0.0
  %313 = vmatpush2.msra.mxu0 0.0
  %314 = vmatprep.subr.mxu0 0.0
  %315 = vmatpush2.msra.mxu0 0.0
  %316 = vmatprep.subr.mxu0 0.0
  %317 = vmatpush2.msra.mxu0 0.0
  %318 = vmatprep.subr.mxu0 0.0
  %319 = vmatpush2.msra.mxu0 0.0
  %320 = vmatprep.subr.mxu0 0.0
  %321 = vmatpush2.msra.mxu0 0.0
  %322 = vmatprep.subr.mxu0 0.0
  %323 = vmatpush2.msra.mxu0 0.0
  %324 = vmatprep.subr.mxu0 0.0
  %325 = vmatpush2.msra.mxu0 0.0
  %326 = vmatprep.subr.mxu0 0.0
  %327 = vmatpush2.msra.mxu0 0.0
  %328 = vmatprep.subr.mxu0 0.0
  %329 = vmatpush2.msra.mxu0 0.0
  %330 = vmatprep.subr.mxu0 0.0
  %331 = vmatpush2.msra.mxu0 0.0
  %332 = vmatprep.mubr.f32.mxu0 0.0
  %333 = vmatmul.mubr.f32.gmra.mxu0 %v242
  %v334 = vpop.f32.mrf.mxu0
  %v335 = vadd.f32 %v266, %v334
  %v336 = vpop.f32.mrf.mxu0
  %337 = vdwg.mxu0
  %v338 = vmax.f32 %v335, 0.0
  %v339 = vld [vmem:[%s6] sm:$0xff]
  %v340 = vld [vmem:[%s6 + $0x8] sm:$0xff]
  %v341 = vld [vmem:[%s6 + $0x10] sm:$0xff]
  %v342 = vld [vmem:[%s6 + $0x18] sm:$0xff]
  %v343 = vld [vmem:[%s6 + $0x20] sm:$0xff]
  %v344 = vld [vmem:[%s6 + $0x28] sm:$0xff]
  %v345 = vld [vmem:[%s6 + $0x30] sm:$0xff]
  %v346 = vld [vmem:[%s6 + $0x38] sm:$0xff]
  %v347 = vld [vmem:[%s6 + $0x40] sm:$0xff]
  %v348 = vld [vmem:[%s6 + $0x48] sm:$0xff]
  %v349 = vld [vmem:[%s6 + $0x50] sm:$0xff]
  %v350 = vld [vmem:[%s6 + $0x58] sm:$0xff]
  %v351 = vld [vmem:[%s6 + $0x60] sm:$0xff]
  %v352 = vld [vmem:[%s6 + $0x68] sm:$0xff]
  %v353 = vld [vmem:[%s6 + $0x70] sm:$0xff]
  %v354 = vld [vmem:[%s6 + $0x78] sm:$0xff]
  %v355 = vld [vmem:[%s7] sm:$0x1]
  %v357 = vlaneseq
  %v358 = vshrl.u32 %v357, 7
  %v359 = vsub.s32 0, %v358
  %v360 = vrot.slane %v355, %v359
  %362 = vmatprep.subr.mxu0 0.0
  %363 = vmatpush1.msra.mxu0 %v354
  %364 = vmatprep.subr.mxu0 0.0
  %365 = vmatpush1.msra.mxu0 %v353
  %366 = vmatprep.subr.mxu0 0.0
  %367 = vmatpush1.msra.mxu0 %v352
  %368 = vmatprep.subr.mxu0 0.0
  %369 = vmatpush1.msra.mxu0 %v351
  %370 = vmatprep.subr.mxu0 0.0
  %371 = vmatpush1.msra.mxu0 %v350
  %372 = vmatprep.subr.mxu0 0.0
  %373 = vmatpush1.msra.mxu0 %v349
  %374 = vmatprep.subr.mxu0 0.0
  %375 = vmatpush1.msra.mxu0 %v348
  %376 = vmatprep.subr.mxu0 0.0
  %377 = vmatpush1.msra.mxu0 %v347
  %378 = vmatprep.subr.mxu0 0.0
  %379 = vmatpush1.msra.mxu0 %v346
  %380 = vmatprep.subr.mxu0 0.0
  %381 = vmatpush1.msra.mxu0 %v345
  %382 = vmatprep.subr.mxu0 0.0
  %383 = vmatpush1.msra.mxu0 %v344
  %384 = vmatprep.subr.mxu0 0.0
  %385 = vmatpush1.msra.mxu0 %v343
  %386 = vmatprep.subr.mxu0 0.0
  %387 = vmatpush1.msra.mxu0 %v342
  %388 = vmatprep.subr.mxu0 0.0
  %389 = vmatpush1.msra.mxu0 %v341
  %390 = vmatprep.subr.mxu0 0.0
  %391 = vmatpush1.msra.mxu0 %v340
  %392 = vmatprep.subr.mxu0 0.0
  %393 = vmatpush1.msra.mxu0 %v339
  %394 = vmatprep.subr.mxu0 0.0
  %395 = vmatpush2.msra.mxu0 0.0
  %396 = vmatprep.subr.mxu0 0.0
  %397 = vmatpush2.msra.mxu0 0.0
  %398 = vmatprep.subr.mxu0 0.0
  %399 = vmatpush2.msra.mxu0 0.0
  %400 = vmatprep.subr.mxu0 0.0
  %401 = vmatpush2.msra.mxu0 0.0
  %402 = vmatprep.subr.mxu0 0.0
  %403 = vmatpush2.msra.mxu0 0.0
  %404 = vmatprep.subr.mxu0 0.0
  %405 = vmatpush2.msra.mxu0 0.0
  %406 = vmatprep.subr.mxu0 0.0
  %407 = vmatpush2.msra.mxu0 0.0
  %408 = vmatprep.subr.mxu0 0.0
  %409 = vmatpush2.msra.mxu0 0.0
  %410 = vmatprep.subr.mxu0 0.0
  %411 = vmatpush2.msra.mxu0 0.0
  %412 = vmatprep.subr.mxu0 0.0
  %413 = vmatpush2.msra.mxu0 0.0
  %414 = vmatprep.subr.mxu0 0.0
  %415 = vmatpush2.msra.mxu0 0.0
  %416 = vmatprep.subr.mxu0 0.0
  %417 = vmatpush2.msra.mxu0 0.0
  %418 = vmatprep.subr.mxu0 0.0
  %419 = vmatpush2.msra.mxu0 0.0
  %420 = vmatprep.subr.mxu0 0.0
  %421 = vmatpush2.msra.mxu0 0.0
  %422 = vmatprep.subr.mxu0 0.0
  %423 = vmatpush2.msra.mxu0 0.0
  %424 = vmatprep.subr.mxu0 0.0
  %425 = vmatpush2.msra.mxu0 0.0
  %426 = vmatprep.mubr.f32.mxu0 0.0
  %427 = vmatmul.mubr.f32.gmra.mxu0 %v338
  %v428 = vpop.f32.mrf.mxu0
  %v429 = vadd.f32 %v360, %v428
  %v430 = vpop.f32.mrf.mxu0
  %431 = vdwg.mxu0
  %432 = vst [vmem:[%s8] sm:$0xff] %v429
  // Predicated region
  $region34: #{sgat_forward.11} parent=0 // pred_check
    _
  $region35: #{sgat_forward.11} parent=0 // pred_check_branch
    %434 = sbr.rel (0) target = $region37
  $region36: #{sgat_forward.11} parent=0 // pred_region
    _
  $region37: #{sgat_forward.11} parent=0 // pred_fallthru
    _
  // Predicated region
  $region38: #{sgat_forward.11} parent=0 // pred_check
    _
  $region39: #{sgat_forward.11} parent=0 // pred_check_branch
    %436 = sbr.rel (0) target = $region41
  $region40: #{sgat_forward.11} parent=0 // pred_region
    _
  $region41: #{sgat_forward.11} parent=0 // pred_fallthru
    _

</llo_original>
